<compile_context>
chip_gen: v6e
topology: v6e:2x2x1
jax: 0.10.0
libtpu: 0.0.40
codegen_flags: <defaults>
</compile_context>

<pallas_src>
import functools
import math

import jax
import jax.numpy as jnp
from jax.experimental import pallas as pl
from jax.experimental.pallas import tpu as pltpu


# ---------------------------------------------------------------------------
# Pallas kernel: whole decoder stack, one (batch_block, layer) grid step at a time
# ---------------------------------------------------------------------------
def _decoder_stack_kernel(
    tgt_ref, mem_ref,
    saqkv_w_ref, saqkv_b_ref, saout_w_ref, saout_b_ref,
    caq_w_ref, caq_b_ref, cakv_w_ref, cakv_b_ref, caout_w_ref, caout_b_ref,
    ff1_w_ref, ff1_b_ref, ff2_w_ref, ff2_b_ref,
    n1_g_ref, n1_b_ref, n2_g_ref, n2_b_ref, n3_g_ref, n3_b_ref,
    out_ref,
    x_scr,
    *, nhead: int,
):
    d = tgt_ref.shape[-1]
    dh = d // nhead
    scale = 1.0 / math.sqrt(dh)
    cdt = saqkv_w_ref.dtype                 # matmul compute dtype (bf16)
    layer = pl.program_id(1)

    # Load the target block into the resident f32 activation scratch at layer 0.
    @pl.when(layer == 0)
    def _():
        x_scr[...] = tgt_ref[...].astype(jnp.float32)

    x = x_scr[...]                           # (bt, T, D) f32
    mem = mem_ref[...]                       # (bt, S, D) compute dtype (cast in wrapper)

    def linear(v, w_ref, b_ref):
        # (bt, n, Din) @ (Din, Dout) with f32 accumulation; leading-dim reshapes are free.
        bt_, n_, din = v.shape
        y = jax.lax.dot_general(
            v.reshape(bt_ * n_, din).astype(cdt), w_ref[...],
            (((1,), (0,)), ((), ())), preferred_element_type=jnp.float32)
        return y.reshape(bt_, n_, -1) + b_ref[...]

    def layer_norm(v, g_ref, b_ref):
        mu = jnp.mean(v, axis=-1, keepdims=True)
        var = jnp.mean(jnp.square(v - mu), axis=-1, keepdims=True)
        return (v - mu) * jax.lax.rsqrt(var + 1e-5) * g_ref[...] + b_ref[...]

    def attention(q, k, v):
        # q (pre-scaled by 1/sqrt(dh)): (bt, nq, D) cdt; k/v: (bt, nkv, D) cdt.
        # Per-head contiguous lane slices feed batched (over bt) 3-D dot_generals;
        # no per-(batch, head) Python loops, no stacking.
        heads = []
        for h in range(nhead):               # static loop, unrolled at trace time
            lo, hi = h * dh, (h + 1) * dh
            qh, kh, vh = q[:, :, lo:hi], k[:, :, lo:hi], v[:, :, lo:hi]
            sc = jax.lax.dot_general(qh, kh, (((2,), (2,)), ((0,), (0,))),
                                     preferred_element_type=jnp.float32)
            sc = sc - jnp.max(sc, axis=-1, keepdims=True)
            p = jnp.exp(sc)                                   # f32 (EUP)
            denom = jnp.sum(p, axis=-1, keepdims=True)        # f32
            oh = jax.lax.dot_general(p.astype(cdt), vh, (((2,), (1,)), ((0,), (0,))),
                                     preferred_element_type=jnp.float32)
            heads.append((oh * pl.reciprocal(denom, approx=True)).astype(cdt))
        return jnp.concatenate(heads, axis=-1)                # (bt, nq, D) cdt

    # --- 1) self-attention (fused QKV) + residual + LayerNorm -----------------
    qkv = linear(x, saqkv_w_ref, saqkv_b_ref)                 # (bt, T, 3D) f32
    q = (qkv[..., :d] * scale).astype(cdt)                    # scale folded into q
    k = qkv[..., d:2 * d].astype(cdt)
    v = qkv[..., 2 * d:].astype(cdt)
    sa = attention(q, k, v)
    x1 = layer_norm(x + linear(sa, saout_w_ref, saout_b_ref), n1_g_ref, n1_b_ref)

    # --- 2) cross-attention (fused KV on memory) + residual + LayerNorm --------
    q2 = (linear(x1, caq_w_ref, caq_b_ref) * scale).astype(cdt)
    kv = linear(mem, cakv_w_ref, cakv_b_ref)                  # (bt, S, 2D) f32
    ca = attention(q2, kv[..., :d].astype(cdt), kv[..., d:].astype(cdt))
    x2 = layer_norm(x1 + linear(ca, caout_w_ref, caout_b_ref), n2_g_ref, n2_b_ref)

    # --- 3) feed-forward (ReLU) + residual + LayerNorm (dropout = identity) ----
    h = jnp.maximum(linear(x2, ff1_w_ref, ff1_b_ref), 0.0).astype(cdt)   # bf16 hidden
    x3 = layer_norm(x2 + linear(h, ff2_w_ref, ff2_b_ref), n3_g_ref, n3_b_ref)

    x_scr[...] = x3                                           # carry to next layer

    @pl.when(layer == pl.num_programs(1) - 1)
    def _():
        out_ref[...] = x3.astype(out_ref.dtype)


# ---------------------------------------------------------------------------
# Weight packing: PyTorch-layout params -> stacked, pre-transposed bf16 matmul weights
# ---------------------------------------------------------------------------
_PACKED_ORDER = (
    "saqkv_w", "saqkv_b", "saout_w", "saout_b",
    "caq_w", "caq_b", "cakv_w", "cakv_b", "caout_w", "caout_b",
    "ff1_w", "ff1_b", "ff2_w", "ff2_b",
    "n1_g", "n1_b", "n2_g", "n2_b", "n3_g", "n3_b",
)


def pack_params(params, compute_dtype=jnp.bfloat16):
    """Stack per-layer params along a leading layer axis; pre-transpose matmul weights
    (kernel does x @ W with no in-kernel .T) and cast them to compute_dtype.
    Biases and LayerNorm params stay f32."""
    D = params[0]["sa_out_w"].shape[0]

    def stk(fn):
        return jnp.stack([fn(p) for p in params])

    cdt = compute_dtype
    return dict(
        saqkv_w=stk(lambda p: p["sa_in_w"].T).astype(cdt),        # (L, D, 3D)
        saqkv_b=stk(lambda p: p["sa_in_b"]),                      # (L, 1, 3D)
        saout_w=stk(lambda p: p["sa_out_w"].T).astype(cdt),       # (L, D, D)
        saout_b=stk(lambda p: p["sa_out_b"]),                     # (L, 1, D)
        caq_w=stk(lambda p: p["ca_in_w"][:D].T).astype(cdt),      # (L, D, D)
        caq_b=stk(lambda p: p["ca_in_b"][:, :D]),                 # (L, 1, D)
        cakv_w=stk(lambda p: p["ca_in_w"][D:].T).astype(cdt),     # (L, D, 2D)
        cakv_b=stk(lambda p: p["ca_in_b"][:, D:]),                # (L, 1, 2D)
        caout_w=stk(lambda p: p["ca_out_w"].T).astype(cdt),       # (L, D, D)
        caout_b=stk(lambda p: p["ca_out_b"]),                     # (L, 1, D)
        ff1_w=stk(lambda p: p["l1_w"].T).astype(cdt),             # (L, D, F)
        ff1_b=stk(lambda p: p["l1_b"]),                           # (L, 1, F)
        ff2_w=stk(lambda p: p["l2_w"].T).astype(cdt),             # (L, F, D)
        ff2_b=stk(lambda p: p["l2_b"]),                           # (L, 1, D)
        n1_g=stk(lambda p: p["n1_g"]), n1_b=stk(lambda p: p["n1_b"]),
        n2_g=stk(lambda p: p["n2_g"]), n2_b=stk(lambda p: p["n2_b"]),
        n3_g=stk(lambda p: p["n3_g"]), n3_b=stk(lambda p: p["n3_b"]),
    )


# ---------------------------------------------------------------------------
# VMEM-aware batch-block selection (generation-aware: 128 MiB v5e/v6e, 64 MiB v7x)
# ---------------------------------------------------------------------------
def _vmem_capacity_bytes():
    try:
        info = pltpu.get_tpu_info()
        cap = getattr(info, "vmem_capacity_bytes", None)
        if cap:
            return int(cap)
    except Exception:
        pass
    return 64 * 1024 * 1024          # conservative (v7x) fallback


def _vmem_bytes_estimate(bt, T, S, D, F, nhead):
    """Rough per-grid-step VMEM footprint (double-buffered weight/IO blocks + f32
    intermediates).  Used only to pick bt; headroom is left in the budget."""
    f32, bf16 = 4, 2
    rows_t, rows_s = bt * T, bt * S
    # per-layer weight block: bf16 matmul weights + f32 biases / LN params
    w = (8 * D * D + 2 * D * F) * bf16 + (8 * D + 2 * F + 6 * D) * f32
    io = 2 * rows_t * D * f32            # tgt block   (double-buffered)
    io += 2 * rows_s * D * bf16          # memory block (bf16)
    io += 2 * rows_t * D * f32           # output block
    scr = rows_t * D * f32               # resident activation scratch
    inter = 3 * rows_t * D * f32                                   # fused QKV
    inter += 2 * bt * nhead * T * max(T, S) * f32                  # scores + probs
    inter += rows_t * F * (f32 + bf16)                             # ff1 out + bf16 h
    inter += 8 * rows_t * D * f32                                  # misc f32 temps
    return 2 * w + io + scr + inter


def _pick_batch_block(B, T, S, D, F, nhead, vmem_budget_bytes, target_rows=256):
    """Smallest divisor of B with bt*T >= target_rows (good MXU row fill) that fits
    the VMEM budget; otherwise the largest divisor that fits."""
    divisors = [bt for bt in range(1, B + 1) if B % bt == 0]
    fitting = [bt for bt in divisors
               if _vmem_bytes_estimate(bt, T, S, D, F, nhead) <= vmem_budget_bytes]
    if not fitting:
        return 1
    for bt in fitting:
        if bt * T >= target_rows:
            return bt
    return max(fitting)


# ---------------------------------------------------------------------------
# Wrapper: one pallas_call for the whole decoder stack
# ---------------------------------------------------------------------------
def trajectory_decoder_forward(tgt, memory, packed, *, nhead, batch_block=None):
    """tgt: (B, T, D) f32, memory: (B, S, D).  packed: dict from pack_params()."""
    B, T, D = tgt.shape
    _, S, _ = memory.shape
    L = packed["saqkv_w"].shape[0]
    F = packed["ff1_w"].shape[-1]
    cdt = packed["saqkv_w"].dtype

    cap = _vmem_capacity_bytes()
    if batch_block is None:
        bt = _pick_batch_block(B, T, S, D, F, nhead, int(cap * 0.70))
    else:
        bt = batch_block
    assert B % bt == 0, "batch_block must divide batch size"

    # memory is only ever consumed through bf16 matmuls -> halve its DMA / VMEM bytes.
    memory = memory.astype(cdt)

    weight_args = tuple(packed[k] for k in _PACKED_ORDER)

    def act_spec(n):
        return pl.BlockSpec((bt, n, D), lambda b, l: (b, 0, 0))

    def layer_spec(arr):
        # (L, r, c) stacked param -> (r, c) block for layer l (leading layer dim squeezed).
        return pl.BlockSpec((None,) + arr.shape[1:], lambda b, l: (l, 0, 0))

    in_specs = ([act_spec(T), act_spec(S)] + [layer_spec(w) for w in weight_args])

    kernel = functools.partial(_decoder_stack_kernel, nhead=nhead)

    return pl.pallas_call(
        kernel,
        out_shape=jax.ShapeDtypeStruct((B, T, D), tgt.dtype),
        grid=(B // bt, L),
        in_specs=in_specs,
        out_specs=pl.BlockSpec((bt, T, D), lambda b, l: (b, 0, 0)),
        scratch_shapes=[pltpu.VMEM((bt, T, D), jnp.float32)],
        compiler_params=pltpu.CompilerParams(
            dimension_semantics=("parallel", "arbitrary"),
            vmem_limit_bytes=int(cap * 0.85)),
    )(tgt, memory, *weight_args)


# ---------------------------------------------------------------------------
# Deterministic parameter init (PyTorch-layout shapes)
# ---------------------------------------------------------------------------
def init_params(key, d_model, nhead, num_layers, dim_feedforward):
    params = []
    for l in range(num_layers):
        lk = jax.random.fold_in(key, l)
        ks = jax.random.split(lk, 8)
        s = 0.1
        params.append(dict(
            sa_in_w=jax.random.normal(ks[0], (3 * d_model, d_model), jnp.float32) * s,
            sa_in_b=jax.random.normal(ks[1], (1, 3 * d_model), jnp.float32) * s,
            sa_out_w=jax.random.normal(ks[2], (d_model, d_model), jnp.float32) * s,
            sa_out_b=jnp.zeros((1, d_model), jnp.float32),
            ca_in_w=jax.random.normal(ks[3], (3 * d_model, d_model), jnp.float32) * s,
            ca_in_b=jax.random.normal(ks[4], (1, 3 * d_model), jnp.float32) * s,
            ca_out_w=jax.random.normal(ks[5], (d_model, d_model), jnp.float32) * s,
            ca_out_b=jnp.zeros((1, d_model), jnp.float32),
            l1_w=jax.random.normal(ks[6], (dim_feedforward, d_model), jnp.float32) * s,
            l1_b=jnp.zeros((1, dim_feedforward), jnp.float32),
            l2_w=jax.random.normal(ks[7], (d_model, dim_feedforward), jnp.float32) * s,
            l2_b=jnp.zeros((1, d_model), jnp.float32),
            n1_g=jnp.ones((1, d_model), jnp.float32), n1_b=jnp.zeros((1, d_model), jnp.float32),
            n2_g=jnp.ones((1, d_model), jnp.float32), n2_b=jnp.zeros((1, d_model), jnp.float32),
            n3_g=jnp.ones((1, d_model), jnp.float32), n3_b=jnp.zeros((1, d_model), jnp.float32),
        ))
    return params


def _bf16_weight_params(params):
    """Quantize matmul weights to bf16-and-back so the reference isolates the kernel's
    own (activation/softmax) approximations from intended weight quantization."""
    out = []
    for p in params:
        p2 = dict(p)
        for k in ("sa_in_w", "sa_out_w", "ca_in_w", "ca_out_w", "l1_w", "l2_w"):
            p2[k] = p[k].astype(jnp.bfloat16).astype(jnp.float32)
        out.append(p2)
    return out


# ---------------------------------------------------------------------------
# Pure-JAX f32 reference (same math, PyTorch conventions)
# ---------------------------------------------------------------------------
def _ref_forward(tgt, memory, params, *, nhead):
    D = tgt.shape[-1]
    Dh = D // nhead

    def ln(v, g, b):
        mu = jnp.mean(v, -1, keepdims=True)
        var = jnp.mean((v - mu) ** 2, -1, keepdims=True)
        return (v - mu) * jax.lax.rsqrt(var + 1e-5) * g[0] + b[0]

    def mha(q_in, kv_in, w, b, ow, ob):
        q = q_in @ w[:D].T + b[0, :D]
        k = kv_in @ w[D:2 * D].T + b[0, D:2 * D]
        v = kv_in @ w[2 * D:].T + b[0, 2 * D:]
        B, T, _ = q.shape
        S = k.shape[1]
        qh = q.reshape(B, T, nhead, Dh).transpose(0, 2, 1, 3)
        kh = k.reshape(B, S, nhead, Dh).transpose(0, 2, 1, 3)
        vh = v.reshape(B, S, nhead, Dh).transpose(0, 2, 1, 3)
        s = jnp.einsum("bhtd,bhsd->bhts", qh, kh) / math.sqrt(Dh)
        p = jax.nn.softmax(s, axis=-1)
        o = jnp.einsum("bhts,bhsd->bhtd", p, vh).transpose(0, 2, 1, 3).reshape(B, T, D)
        return o @ ow.T + ob[0]

    x = tgt
    for lp in params:
        x = ln(x + mha(x, x, lp["sa_in_w"], lp["sa_in_b"], lp["sa_out_w"], lp["sa_out_b"]),
               lp["n1_g"], lp["n1_b"])
        x = ln(x + mha(x, memory, lp["ca_in_w"], lp["ca_in_b"], lp["ca_out_w"], lp["ca_out_b"]),
               lp["n2_g"], lp["n2_b"])
        ff = jnp.maximum(x @ lp["l1_w"].T + lp["l1_b"][0], 0.0) @ lp["l2_w"].T + lp["l2_b"][0]
        x = ln(x + ff, lp["n3_g"], lp["n3_b"])
    return x


if __name__ == "__main__":
    # Small shapes consistent with the module; D is a lane multiple (128) so all
    # matmul / slice widths are lane-friendly (3D=384, 2D=256, F=256, dh=32).
    B, T, S = 2, 8, 16
    d_model, nhead, num_layers, dim_feedforward = 128, 4, 2, 256

    key = jax.random.PRNGKey(0)
    k_tgt, k_mem, k_par = jax.random.split(key, 3)
    tgt = jax.random.normal(k_tgt, (B, T, d_model), jnp.float32)
    memory = jax.random.normal(k_mem, (B, S, d_model), jnp.float32)
    params = init_params(k_par, d_model, nhead, num_layers, dim_feedforward)
    packed = pack_params(params, compute_dtype=jnp.bfloat16)

    out = trajectory_decoder_forward(tgt, memory, packed, nhead=nhead)
    out = jax.block_until_ready(out)

    ref = _ref_forward(tgt, memory, _bf16_weight_params(params), nhead=nhead)
    assert out.shape == (B, T, d_model)
    assert bool(jnp.all(jnp.isfinite(out)))
    max_err = float(jnp.max(jnp.abs(out - ref)))
    assert bool(jnp.allclose(out, ref, atol=5e-2, rtol=5e-2)), max_err

    print("KERNEL_OK")
</pallas_src>

<mosaic_0001>
module attributes {stable_mosaic.version = 11 : i64} {
  func.func @_decoder_stack_kernel(%arg0: i32, %arg1: i32, %arg2: memref<2x8x128xf32, #tpu.memory_space<vmem>>, %arg3: memref<2x16x128xbf16, #tpu.memory_space<vmem>>, %arg4: memref<1x128x384xbf16, #tpu.memory_space<vmem>>, %arg5: memref<1x1x384xf32, #tpu.memory_space<vmem>>, %arg6: memref<1x128x128xbf16, #tpu.memory_space<vmem>>, %arg7: memref<1x1x128xf32, #tpu.memory_space<vmem>>, %arg8: memref<1x128x128xbf16, #tpu.memory_space<vmem>>, %arg9: memref<1x1x128xf32, #tpu.memory_space<vmem>>, %arg10: memref<1x128x256xbf16, #tpu.memory_space<vmem>>, %arg11: memref<1x1x256xf32, #tpu.memory_space<vmem>>, %arg12: memref<1x128x128xbf16, #tpu.memory_space<vmem>>, %arg13: memref<1x1x128xf32, #tpu.memory_space<vmem>>, %arg14: memref<1x128x256xbf16, #tpu.memory_space<vmem>>, %arg15: memref<1x1x256xf32, #tpu.memory_space<vmem>>, %arg16: memref<1x256x128xbf16, #tpu.memory_space<vmem>>, %arg17: memref<1x1x128xf32, #tpu.memory_space<vmem>>, %arg18: memref<1x1x128xf32, #tpu.memory_space<vmem>>, %arg19: memref<1x1x128xf32, #tpu.memory_space<vmem>>, %arg20: memref<1x1x128xf32, #tpu.memory_space<vmem>>, %arg21: memref<1x1x128xf32, #tpu.memory_space<vmem>>, %arg22: memref<1x1x128xf32, #tpu.memory_space<vmem>>, %arg23: memref<1x1x128xf32, #tpu.memory_space<vmem>>, %arg24: memref<2x8x128xf32, #tpu.memory_space<vmem>>, %arg25: memref<2x8x128xf32, #tpu.memory_space<vmem>>) attributes {dimension_semantics = [#tpu.dimension_semantics<parallel>, #tpu.dimension_semantics<arbitrary>], iteration_bounds = array<i64: 1, 2>, scalar_prefetch = 0 : i64, scratch_operands = 1 : i64, tpu.core_type = #tpu.core_type<tc>, window_params = [{transform_indices = @transform_0, window_bounds = array<i64: 2, 8, 128>}, {transform_indices = @transform_1, window_bounds = array<i64: 2, 16, 128>}, {transform_indices = @transform_2, window_bounds = array<i64: 1, 128, 384>}, {transform_indices = @transform_3, window_bounds = array<i64: 1, 1, 384>}, {transform_indices = @transform_4, window_bounds = array<i64: 1, 128, 128>}, {transform_indices = @transform_5, window_bounds = array<i64: 1, 1, 128>}, {transform_indices = @transform_6, window_bounds = array<i64: 1, 128, 128>}, {transform_indices = @transform_7, window_bounds = array<i64: 1, 1, 128>}, {transform_indices = @transform_8, window_bounds = array<i64: 1, 128, 256>}, {transform_indices = @transform_9, window_bounds = array<i64: 1, 1, 256>}, {transform_indices = @transform_10, window_bounds = array<i64: 1, 128, 128>}, {transform_indices = @transform_11, window_bounds = array<i64: 1, 1, 128>}, {transform_indices = @transform_12, window_bounds = array<i64: 1, 128, 256>}, {transform_indices = @transform_13, window_bounds = array<i64: 1, 1, 256>}, {transform_indices = @transform_14, window_bounds = array<i64: 1, 256, 128>}, {transform_indices = @transform_15, window_bounds = array<i64: 1, 1, 128>}, {transform_indices = @transform_16, window_bounds = array<i64: 1, 1, 128>}, {transform_indices = @transform_17, window_bounds = array<i64: 1, 1, 128>}, {transform_indices = @transform_18, window_bounds = array<i64: 1, 1, 128>}, {transform_indices = @transform_19, window_bounds = array<i64: 1, 1, 128>}, {transform_indices = @transform_20, window_bounds = array<i64: 1, 1, 128>}, {transform_indices = @transform_21, window_bounds = array<i64: 1, 1, 128>}, {transform_indices = @transform_22, window_bounds = array<i64: 2, 8, 128>}]} {
    %c0_i32 = arith.constant 0 : i32
    %0 = arith.cmpi eq, %arg1, %c0_i32 : i32
    %1 = arith.extui %0 : i1 to i32
    %c0_i32_0 = arith.constant 0 : i32
    %2 = arith.cmpi ne, %1, %c0_i32_0 : i32
    scf.if %2 {
      %c0_126 = arith.constant 0 : index
      %c0_127 = arith.constant 0 : index
      %c0_128 = arith.constant 0 : index
      %325 = vector.load %arg2[%c0_126, %c0_127, %c0_128] : memref<2x8x128xf32, #tpu.memory_space<vmem>>, vector<2x8x128xf32>
      %c0_129 = arith.constant 0 : index
      %c0_130 = arith.constant 0 : index
      %c0_131 = arith.constant 0 : index
      %326 = vector.load %arg25[%c0_129, %c0_130, %c0_131] : memref<2x8x128xf32, #tpu.memory_space<vmem>>, vector<2x8x128xf32>
      tpu.vector_store %arg25[%c0_129, %c0_130, %c0_131], %325 {strides = array<i32>} : memref<2x8x128xf32, #tpu.memory_space<vmem>>, vector<2x8x128xf32>,
    } else {
    }
    %c0 = arith.constant 0 : index
    %c0_1 = arith.constant 0 : index
    %c0_2 = arith.constant 0 : index
    %3 = vector.load %arg25[%c0, %c0_1, %c0_2] : memref<2x8x128xf32, #tpu.memory_space<vmem>>, vector<2x8x128xf32>
    %c0_3 = arith.constant 0 : index
    %c0_4 = arith.constant 0 : index
    %c0_5 = arith.constant 0 : index
    %4 = vector.load %arg3[%c0_3, %c0_4, %c0_5] : memref<2x16x128xbf16, #tpu.memory_space<vmem>>, vector<2x16x128xbf16>
    %5 = vector.shape_cast %3 : vector<2x8x128xf32> to vector<16x128xf32>
    %6 = arith.truncf %5 : vector<16x128xf32> to vector<16x128xbf16>
    %c0_6 = arith.constant 0 : index
    %c0_7 = arith.constant 0 : index
    %c0_8 = arith.constant 0 : index
    %7 = vector.load %arg4[%c0_6, %c0_7, %c0_8] : memref<1x128x384xbf16, #tpu.memory_space<vmem>>, vector<1x128x384xbf16>
    %8 = vector.shape_cast %7 : vector<1x128x384xbf16> to vector<128x384xbf16>
    %cst = arith.constant dense<0.000000e+00> : vector<16x384xf32>
    %9 = tpu.matmul %6, %8, %cst {dimension_numbers = #tpu.dot_dimension_numbers<[1], [0], [0], [1], [0, 0, 1, 1], [], []>} : vector<16x128xbf16>, vector<128x384xbf16>, vector<16x384xf32> -> vector<16x384xf32>
    %10 = vector.shape_cast %9 : vector<16x384xf32> to vector<2x8x384xf32>
    %c0_9 = arith.constant 0 : index
    %c0_10 = arith.constant 0 : index
    %c0_11 = arith.constant 0 : index
    %11 = vector.load %arg5[%c0_9, %c0_10, %c0_11] : memref<1x1x384xf32, #tpu.memory_space<vmem>>, vector<1x1x384xf32>
    %12 = vector.shape_cast %11 : vector<1x1x384xf32> to vector<1x384xf32>
    %13 = vector.shape_cast %12 : vector<1x384xf32> to vector<1x1x384xf32>
    %14 = vector.broadcast %13 : vector<1x1x384xf32> to vector<2x8x384xf32>
    %15 = arith.addf %10, %14 : vector<2x8x384xf32>
    %16 = vector.extract_strided_slice %15 {offsets = [0, 0, 0], sizes = [2, 8, 128], strides = [1, 1, 1]} : vector<2x8x384xf32> to vector<2x8x128xf32>
    %cst_12 = arith.constant 0.176776692 : f32
    %17 = vector.broadcast %cst_12 : f32 to vector<2x8x128xf32>
    %18 = arith.mulf %16, %17 : vector<2x8x128xf32>
    %19 = arith.truncf %18 : vector<2x8x128xf32> to vector<2x8x128xbf16>
    %20 = vector.extract_strided_slice %15 {offsets = [0, 0, 128], sizes = [2, 8, 128], strides = [1, 1, 1]} : vector<2x8x384xf32> to vector<2x8x128xf32>
    %21 = arith.truncf %20 : vector<2x8x128xf32> to vector<2x8x128xbf16>
    %22 = vector.extract_strided_slice %15 {offsets = [0, 0, 256], sizes = [2, 8, 128], strides = [1, 1, 1]} : vector<2x8x384xf32> to vector<2x8x128xf32>
    %23 = arith.truncf %22 : vector<2x8x128xf32> to vector<2x8x128xbf16>
    %24 = vector.extract_strided_slice %19 {offsets = [0, 0, 0], sizes = [2, 8, 32], strides = [1, 1, 1]} : vector<2x8x128xbf16> to vector<2x8x32xbf16>
    %25 = vector.extract_strided_slice %21 {offsets = [0, 0, 0], sizes = [2, 8, 32], strides = [1, 1, 1]} : vector<2x8x128xbf16> to vector<2x8x32xbf16>
    %26 = vector.extract_strided_slice %23 {offsets = [0, 0, 0], sizes = [2, 8, 32], strides = [1, 1, 1]} : vector<2x8x128xbf16> to vector<2x8x32xbf16>
    %cst_13 = arith.constant dense<0.000000e+00> : vector<2x8x8xf32>
    %27 = tpu.matmul %24, %25, %cst_13 {dimension_numbers = #tpu.dot_dimension_numbers<[2], [2], [1], [1], [0, 0, 0, 1, 1, 1], [0], [0]>} : vector<2x8x32xbf16>, vector<2x8x32xbf16>, vector<2x8x8xf32> -> vector<2x8x8xf32>
    %cst_14 = arith.constant dense<0xFF800000> : vector<2x8xf32>
    %28 = vector.multi_reduction <maximumf>, %27, %cst_14 [2] : vector<2x8x8xf32> to vector<2x8xf32>
    %29 = vector.shape_cast %28 : vector<2x8xf32> to vector<2x8x1xf32>
    %30 = vector.broadcast %29 : vector<2x8x1xf32> to vector<2x8x8xf32>
    %31 = arith.subf %27, %30 : vector<2x8x8xf32>
    %32 = math.exp %31 : vector<2x8x8xf32>
    %cst_15 = arith.constant dense<0.000000e+00> : vector<2x8xf32>
    %33 = vector.multi_reduction <add>, %32, %cst_15 [2] : vector<2x8x8xf32> to vector<2x8xf32>
    %34 = vector.shape_cast %33 : vector<2x8xf32> to vector<2x8x1xf32>
    %35 = arith.truncf %32 : vector<2x8x8xf32> to vector<2x8x8xbf16>
    %cst_16 = arith.constant dense<0.000000e+00> : vector<2x8x32xf32>
    %36 = tpu.matmul %35, %26, %cst_16 {dimension_numbers = #tpu.dot_dimension_numbers<[2], [1], [1], [2], [0, 0, 0, 1, 1, 2], [0], [0]>} : vector<2x8x8xbf16>, vector<2x8x32xbf16>, vector<2x8x32xf32> -> vector<2x8x32xf32>
    %37 = tpu.reciprocal %34 {approx = true} : vector<2x8x1xf32> -> vector<2x8x1xf32>
    %38 = vector.broadcast %37 : vector<2x8x1xf32> to vector<2x8x32xf32>
    %39 = arith.mulf %36, %38 : vector<2x8x32xf32>
    %40 = arith.truncf %39 : vector<2x8x32xf32> to vector<2x8x32xbf16>
    %41 = vector.extract_strided_slice %19 {offsets = [0, 0, 32], sizes = [2, 8, 32], strides = [1, 1, 1]} : vector<2x8x128xbf16> to vector<2x8x32xbf16>
    %42 = vector.extract_strided_slice %21 {offsets = [0, 0, 32], sizes = [2, 8, 32], strides = [1, 1, 1]} : vector<2x8x128xbf16> to vector<2x8x32xbf16>
    %43 = vector.extract_strided_slice %23 {offsets = [0, 0, 32], sizes = [2, 8, 32], strides = [1, 1, 1]} : vector<2x8x128xbf16> to vector<2x8x32xbf16>
    %cst_17 = arith.constant dense<0.000000e+00> : vector<2x8x8xf32>
    %44 = tpu.matmul %41, %42, %cst_17 {dimension_numbers = #tpu.dot_dimension_numbers<[2], [2], [1], [1], [0, 0, 0, 1, 1, 1], [0], [0]>} : vector<2x8x32xbf16>, vector<2x8x32xbf16>, vector<2x8x8xf32> -> vector<2x8x8xf32>
    %cst_18 = arith.constant dense<0xFF800000> : vector<2x8xf32>
    %45 = vector.multi_reduction <maximumf>, %44, %cst_18 [2] : vector<2x8x8xf32> to vector<2x8xf32>
    %46 = vector.shape_cast %45 : vector<2x8xf32> to vector<2x8x1xf32>
    %47 = vector.broadcast %46 : vector<2x8x1xf32> to vector<2x8x8xf32>
    %48 = arith.subf %44, %47 : vector<2x8x8xf32>
    %49 = math.exp %48 : vector<2x8x8xf32>
    %cst_19 = arith.constant dense<0.000000e+00> : vector<2x8xf32>
    %50 = vector.multi_reduction <add>, %49, %cst_19 [2] : vector<2x8x8xf32> to vector<2x8xf32>
    %51 = vector.shape_cast %50 : vector<2x8xf32> to vector<2x8x1xf32>
    %52 = arith.truncf %49 : vector<2x8x8xf32> to vector<2x8x8xbf16>
    %cst_20 = arith.constant dense<0.000000e+00> : vector<2x8x32xf32>
    %53 = tpu.matmul %52, %43, %cst_20 {dimension_numbers = #tpu.dot_dimension_numbers<[2], [1], [1], [2], [0, 0, 0, 1, 1, 2], [0], [0]>} : vector<2x8x8xbf16>, vector<2x8x32xbf16>, vector<2x8x32xf32> -> vector<2x8x32xf32>
    %54 = tpu.reciprocal %51 {approx = true} : vector<2x8x1xf32> -> vector<2x8x1xf32>
    %55 = vector.broadcast %54 : vector<2x8x1xf32> to vector<2x8x32xf32>
    %56 = arith.mulf %53, %55 : vector<2x8x32xf32>
    %57 = arith.truncf %56 : vector<2x8x32xf32> to vector<2x8x32xbf16>
    %58 = vector.extract_strided_slice %19 {offsets = [0, 0, 64], sizes = [2, 8, 32], strides = [1, 1, 1]} : vector<2x8x128xbf16> to vector<2x8x32xbf16>
    %59 = vector.extract_strided_slice %21 {offsets = [0, 0, 64], sizes = [2, 8, 32], strides = [1, 1, 1]} : vector<2x8x128xbf16> to vector<2x8x32xbf16>
    %60 = vector.extract_strided_slice %23 {offsets = [0, 0, 64], sizes = [2, 8, 32], strides = [1, 1, 1]} : vector<2x8x128xbf16> to vector<2x8x32xbf16>
    %cst_21 = arith.constant dense<0.000000e+00> : vector<2x8x8xf32>
    %61 = tpu.matmul %58, %59, %cst_21 {dimension_numbers = #tpu.dot_dimension_numbers<[2], [2], [1], [1], [0, 0, 0, 1, 1, 1], [0], [0]>} : vector<2x8x32xbf16>, vector<2x8x32xbf16>, vector<2x8x8xf32> -> vector<2x8x8xf32>
    %cst_22 = arith.constant dense<0xFF800000> : vector<2x8xf32>
    %62 = vector.multi_reduction <maximumf>, %61, %cst_22 [2] : vector<2x8x8xf32> to vector<2x8xf32>
    %63 = vector.shape_cast %62 : vector<2x8xf32> to vector<2x8x1xf32>
    %64 = vector.broadcast %63 : vector<2x8x1xf32> to vector<2x8x8xf32>
    %65 = arith.subf %61, %64 : vector<2x8x8xf32>
    %66 = math.exp %65 : vector<2x8x8xf32>
    %cst_23 = arith.constant dense<0.000000e+00> : vector<2x8xf32>
    %67 = vector.multi_reduction <add>, %66, %cst_23 [2] : vector<2x8x8xf32> to vector<2x8xf32>
    %68 = vector.shape_cast %67 : vector<2x8xf32> to vector<2x8x1xf32>
    %69 = arith.truncf %66 : vector<2x8x8xf32> to vector<2x8x8xbf16>
    %cst_24 = arith.constant dense<0.000000e+00> : vector<2x8x32xf32>
    %70 = tpu.matmul %69, %60, %cst_24 {dimension_numbers = #tpu.dot_dimension_numbers<[2], [1], [1], [2], [0, 0, 0, 1, 1, 2], [0], [0]>} : vector<2x8x8xbf16>, vector<2x8x32xbf16>, vector<2x8x32xf32> -> vector<2x8x32xf32>
    %71 = tpu.reciprocal %68 {approx = true} : vector<2x8x1xf32> -> vector<2x8x1xf32>
    %72 = vector.broadcast %71 : vector<2x8x1xf32> to vector<2x8x32xf32>
    %73 = arith.mulf %70, %72 : vector<2x8x32xf32>
    %74 = arith.truncf %73 : vector<2x8x32xf32> to vector<2x8x32xbf16>
    %75 = vector.extract_strided_slice %19 {offsets = [0, 0, 96], sizes = [2, 8, 32], strides = [1, 1, 1]} : vector<2x8x128xbf16> to vector<2x8x32xbf16>
    %76 = vector.extract_strided_slice %21 {offsets = [0, 0, 96], sizes = [2, 8, 32], strides = [1, 1, 1]} : vector<2x8x128xbf16> to vector<2x8x32xbf16>
    %77 = vector.extract_strided_slice %23 {offsets = [0, 0, 96], sizes = [2, 8, 32], strides = [1, 1, 1]} : vector<2x8x128xbf16> to vector<2x8x32xbf16>
    %cst_25 = arith.constant dense<0.000000e+00> : vector<2x8x8xf32>
    %78 = tpu.matmul %75, %76, %cst_25 {dimension_numbers = #tpu.dot_dimension_numbers<[2], [2], [1], [1], [0, 0, 0, 1, 1, 1], [0], [0]>} : vector<2x8x32xbf16>, vector<2x8x32xbf16>, vector<2x8x8xf32> -> vector<2x8x8xf32>
    %cst_26 = arith.constant dense<0xFF800000> : vector<2x8xf32>
    %79 = vector.multi_reduction <maximumf>, %78, %cst_26 [2] : vector<2x8x8xf32> to vector<2x8xf32>
    %80 = vector.shape_cast %79 : vector<2x8xf32> to vector<2x8x1xf32>
    %81 = vector.broadcast %80 : vector<2x8x1xf32> to vector<2x8x8xf32>
    %82 = arith.subf %78, %81 : vector<2x8x8xf32>
    %83 = math.exp %82 : vector<2x8x8xf32>
    %cst_27 = arith.constant dense<0.000000e+00> : vector<2x8xf32>
    %84 = vector.multi_reduction <add>, %83, %cst_27 [2] : vector<2x8x8xf32> to vector<2x8xf32>
    %85 = vector.shape_cast %84 : vector<2x8xf32> to vector<2x8x1xf32>
    %86 = arith.truncf %83 : vector<2x8x8xf32> to vector<2x8x8xbf16>
    %cst_28 = arith.constant dense<0.000000e+00> : vector<2x8x32xf32>
    %87 = tpu.matmul %86, %77, %cst_28 {dimension_numbers = #tpu.dot_dimension_numbers<[2], [1], [1], [2], [0, 0, 0, 1, 1, 2], [0], [0]>} : vector<2x8x8xbf16>, vector<2x8x32xbf16>, vector<2x8x32xf32> -> vector<2x8x32xf32>
    %88 = tpu.reciprocal %85 {approx = true} : vector<2x8x1xf32> -> vector<2x8x1xf32>
    %89 = vector.broadcast %88 : vector<2x8x1xf32> to vector<2x8x32xf32>
    %90 = arith.mulf %87, %89 : vector<2x8x32xf32>
    %91 = arith.truncf %90 : vector<2x8x32xf32> to vector<2x8x32xbf16>
    %92 = tpu.concatenate %40, %57, %74, %91 in 2 : vector<2x8x32xbf16>, vector<2x8x32xbf16>, vector<2x8x32xbf16>, vector<2x8x32xbf16> -> vector<2x8x128xbf16>
    %93 = vector.shape_cast %92 : vector<2x8x128xbf16> to vector<16x128xbf16>
    %c0_29 = arith.constant 0 : index
    %c0_30 = arith.constant 0 : index
    %c0_31 = arith.constant 0 : index
    %94 = vector.load %arg6[%c0_29, %c0_30, %c0_31] : memref<1x128x128xbf16, #tpu.memory_space<vmem>>, vector<1x128x128xbf16>
    %95 = vector.shape_cast %94 : vector<1x128x128xbf16> to vector<128x128xbf16>
    %cst_32 = arith.constant dense<0.000000e+00> : vector<16x128xf32>
    %96 = tpu.matmul %93, %95, %cst_32 {dimension_numbers = #tpu.dot_dimension_numbers<[1], [0], [0], [1], [0, 0, 1, 1], [], []>} : vector<16x128xbf16>, vector<128x128xbf16>, vector<16x128xf32> -> vector<16x128xf32>
    %97 = vector.shape_cast %96 : vector<16x128xf32> to vector<2x8x128xf32>
    %c0_33 = arith.constant 0 : index
    %c0_34 = arith.constant 0 : index
    %c0_35 = arith.constant 0 : index
    %98 = vector.load %arg7[%c0_33, %c0_34, %c0_35] : memref<1x1x128xf32, #tpu.memory_space<vmem>>, vector<1x1x128xf32>
    %99 = vector.shape_cast %98 : vector<1x1x128xf32> to vector<1x128xf32>
    %100 = vector.shape_cast %99 : vector<1x128xf32> to vector<1x1x128xf32>
    %101 = vector.broadcast %100 : vector<1x1x128xf32> to vector<2x8x128xf32>
    %102 = arith.addf %97, %101 : vector<2x8x128xf32>
    %103 = arith.addf %3, %102 : vector<2x8x128xf32>
    %cst_36 = arith.constant dense<0.000000e+00> : vector<2x8xf32>
    %104 = vector.multi_reduction <add>, %103, %cst_36 [2] : vector<2x8x128xf32> to vector<2x8xf32>
    %105 = vector.shape_cast %104 : vector<2x8xf32> to vector<2x8x1xf32>
    %cst_37 = arith.constant 1.280000e+02 : f32
    %106 = vector.broadcast %cst_37 : f32 to vector<2x8x1xf32>
    %107 = arith.divf %105, %106 : vector<2x8x1xf32>
    %108 = vector.broadcast %107 : vector<2x8x1xf32> to vector<2x8x128xf32>
    %109 = arith.subf %103, %108 : vector<2x8x128xf32>
    %110 = arith.mulf %109, %109 : vector<2x8x128xf32>
    %cst_38 = arith.constant dense<0.000000e+00> : vector<2x8xf32>
    %111 = vector.multi_reduction <add>, %110, %cst_38 [2] : vector<2x8x128xf32> to vector<2x8xf32>
    %112 = vector.shape_cast %111 : vector<2x8xf32> to vector<2x8x1xf32>
    %cst_39 = arith.constant 1.280000e+02 : f32
    %113 = vector.broadcast %cst_39 : f32 to vector<2x8x1xf32>
    %114 = arith.divf %112, %113 : vector<2x8x1xf32>
    %115 = vector.broadcast %107 : vector<2x8x1xf32> to vector<2x8x128xf32>
    %116 = arith.subf %103, %115 : vector<2x8x128xf32>
    %cst_40 = arith.constant 9.99999974E-6 : f32
    %117 = vector.broadcast %cst_40 : f32 to vector<2x8x1xf32>
    %118 = arith.addf %114, %117 : vector<2x8x1xf32>
    %119 = math.rsqrt %118 : vector<2x8x1xf32>
    %120 = vector.broadcast %119 : vector<2x8x1xf32> to vector<2x8x128xf32>
    %121 = arith.mulf %116, %120 : vector<2x8x128xf32>
    %c0_41 = arith.constant 0 : index
    %c0_42 = arith.constant 0 : index
    %c0_43 = arith.constant 0 : index
    %122 = vector.load %arg18[%c0_41, %c0_42, %c0_43] : memref<1x1x128xf32, #tpu.memory_space<vmem>>, vector<1x1x128xf32>
    %123 = vector.shape_cast %122 : vector<1x1x128xf32> to vector<1x128xf32>
    %124 = vector.shape_cast %123 : vector<1x128xf32> to vector<1x1x128xf32>
    %125 = vector.broadcast %124 : vector<1x1x128xf32> to vector<2x8x128xf32>
    %126 = arith.mulf %121, %125 : vector<2x8x128xf32>
    %c0_44 = arith.constant 0 : index
    %c0_45 = arith.constant 0 : index
    %c0_46 = arith.constant 0 : index
    %127 = vector.load %arg19[%c0_44, %c0_45, %c0_46] : memref<1x1x128xf32, #tpu.memory_space<vmem>>, vector<1x1x128xf32>
    %128 = vector.shape_cast %127 : vector<1x1x128xf32> to vector<1x128xf32>
    %129 = vector.shape_cast %128 : vector<1x128xf32> to vector<1x1x128xf32>
    %130 = vector.broadcast %129 : vector<1x1x128xf32> to vector<2x8x128xf32>
    %131 = arith.addf %126, %130 : vector<2x8x128xf32>
    %132 = vector.shape_cast %131 : vector<2x8x128xf32> to vector<16x128xf32>
    %133 = arith.truncf %132 : vector<16x128xf32> to vector<16x128xbf16>
    %c0_47 = arith.constant 0 : index
    %c0_48 = arith.constant 0 : index
    %c0_49 = arith.constant 0 : index
    %134 = vector.load %arg8[%c0_47, %c0_48, %c0_49] : memref<1x128x128xbf16, #tpu.memory_space<vmem>>, vector<1x128x128xbf16>
    %135 = vector.shape_cast %134 : vector<1x128x128xbf16> to vector<128x128xbf16>
    %cst_50 = arith.constant dense<0.000000e+00> : vector<16x128xf32>
    %136 = tpu.matmul %133, %135, %cst_50 {dimension_numbers = #tpu.dot_dimension_numbers<[1], [0], [0], [1], [0, 0, 1, 1], [], []>} : vector<16x128xbf16>, vector<128x128xbf16>, vector<16x128xf32> -> vector<16x128xf32>
    %137 = vector.shape_cast %136 : vector<16x128xf32> to vector<2x8x128xf32>
    %c0_51 = arith.constant 0 : index
    %c0_52 = arith.constant 0 : index
    %c0_53 = arith.constant 0 : index
    %138 = vector.load %arg9[%c0_51, %c0_52, %c0_53] : memref<1x1x128xf32, #tpu.memory_space<vmem>>, vector<1x1x128xf32>
    %139 = vector.shape_cast %138 : vector<1x1x128xf32> to vector<1x128xf32>
    %140 = vector.shape_cast %139 : vector<1x128xf32> to vector<1x1x128xf32>
    %141 = vector.broadcast %140 : vector<1x1x128xf32> to vector<2x8x128xf32>
    %142 = arith.addf %137, %141 : vector<2x8x128xf32>
    %cst_54 = arith.constant 0.176776692 : f32
    %143 = vector.broadcast %cst_54 : f32 to vector<2x8x128xf32>
    %144 = arith.mulf %142, %143 : vector<2x8x128xf32>
    %145 = arith.truncf %144 : vector<2x8x128xf32> to vector<2x8x128xbf16>
    %146 = vector.shape_cast %4 : vector<2x16x128xbf16> to vector<32x128xbf16>
    %c0_55 = arith.constant 0 : index
    %c0_56 = arith.constant 0 : index
    %c0_57 = arith.constant 0 : index
    %147 = vector.load %arg10[%c0_55, %c0_56, %c0_57] : memref<1x128x256xbf16, #tpu.memory_space<vmem>>, vector<1x128x256xbf16>
    %148 = vector.shape_cast %147 : vector<1x128x256xbf16> to vector<128x256xbf16>
    %cst_58 = arith.constant dense<0.000000e+00> : vector<32x256xf32>
    %149 = tpu.matmul %146, %148, %cst_58 {dimension_numbers = #tpu.dot_dimension_numbers<[1], [0], [0], [1], [0, 0, 1, 1], [], []>} : vector<32x128xbf16>, vector<128x256xbf16>, vector<32x256xf32> -> vector<32x256xf32>
    %150 = vector.shape_cast %149 : vector<32x256xf32> to vector<2x16x256xf32>
    %c0_59 = arith.constant 0 : index
    %c0_60 = arith.constant 0 : index
    %c0_61 = arith.constant 0 : index
    %151 = vector.load %arg11[%c0_59, %c0_60, %c0_61] : memref<1x1x256xf32, #tpu.memory_space<vmem>>, vector<1x1x256xf32>
    %152 = vector.shape_cast %151 : vector<1x1x256xf32> to vector<1x256xf32>
    %153 = vector.shape_cast %152 : vector<1x256xf32> to vector<1x1x256xf32>
    %154 = vector.broadcast %153 : vector<1x1x256xf32> to vector<2x16x256xf32>
    %155 = arith.addf %150, %154 : vector<2x16x256xf32>
    %156 = vector.extract_strided_slice %155 {offsets = [0, 0, 0], sizes = [2, 16, 128], strides = [1, 1, 1]} : vector<2x16x256xf32> to vector<2x16x128xf32>
    %157 = arith.truncf %156 : vector<2x16x128xf32> to vector<2x16x128xbf16>
    %158 = vector.extract_strided_slice %155 {offsets = [0, 0, 128], sizes = [2, 16, 128], strides = [1, 1, 1]} : vector<2x16x256xf32> to vector<2x16x128xf32>
    %159 = arith.truncf %158 : vector<2x16x128xf32> to vector<2x16x128xbf16>
    %160 = vector.extract_strided_slice %145 {offsets = [0, 0, 0], sizes = [2, 8, 32], strides = [1, 1, 1]} : vector<2x8x128xbf16> to vector<2x8x32xbf16>
    %161 = vector.extract_strided_slice %157 {offsets = [0, 0, 0], sizes = [2, 16, 32], strides = [1, 1, 1]} : vector<2x16x128xbf16> to vector<2x16x32xbf16>
    %162 = vector.extract_strided_slice %159 {offsets = [0, 0, 0], sizes = [2, 16, 32], strides = [1, 1, 1]} : vector<2x16x128xbf16> to vector<2x16x32xbf16>
    %cst_62 = arith.constant dense<0.000000e+00> : vector<2x8x16xf32>
    %163 = tpu.matmul %160, %161, %cst_62 {dimension_numbers = #tpu.dot_dimension_numbers<[2], [2], [1], [1], [0, 0, 0, 1, 1, 1], [0], [0]>} : vector<2x8x32xbf16>, vector<2x16x32xbf16>, vector<2x8x16xf32> -> vector<2x8x16xf32>
    %cst_63 = arith.constant dense<0xFF800000> : vector<2x8xf32>
    %164 = vector.multi_reduction <maximumf>, %163, %cst_63 [2] : vector<2x8x16xf32> to vector<2x8xf32>
    %165 = vector.shape_cast %164 : vector<2x8xf32> to vector<2x8x1xf32>
    %166 = vector.broadcast %165 : vector<2x8x1xf32> to vector<2x8x16xf32>
    %167 = arith.subf %163, %166 : vector<2x8x16xf32>
    %168 = math.exp %167 : vector<2x8x16xf32>
    %cst_64 = arith.constant dense<0.000000e+00> : vector<2x8xf32>
    %169 = vector.multi_reduction <add>, %168, %cst_64 [2] : vector<2x8x16xf32> to vector<2x8xf32>
    %170 = vector.shape_cast %169 : vector<2x8xf32> to vector<2x8x1xf32>
    %171 = arith.truncf %168 : vector<2x8x16xf32> to vector<2x8x16xbf16>
    %cst_65 = arith.constant dense<0.000000e+00> : vector<2x8x32xf32>
    %172 = tpu.matmul %171, %162, %cst_65 {dimension_numbers = #tpu.dot_dimension_numbers<[2], [1], [1], [2], [0, 0, 0, 1, 1, 2], [0], [0]>} : vector<2x8x16xbf16>, vector<2x16x32xbf16>, vector<2x8x32xf32> -> vector<2x8x32xf32>
    %173 = tpu.reciprocal %170 {approx = true} : vector<2x8x1xf32> -> vector<2x8x1xf32>
    %174 = vector.broadcast %173 : vector<2x8x1xf32> to vector<2x8x32xf32>
    %175 = arith.mulf %172, %174 : vector<2x8x32xf32>
    %176 = arith.truncf %175 : vector<2x8x32xf32> to vector<2x8x32xbf16>
    %177 = vector.extract_strided_slice %145 {offsets = [0, 0, 32], sizes = [2, 8, 32], strides = [1, 1, 1]} : vector<2x8x128xbf16> to vector<2x8x32xbf16>
    %178 = vector.extract_strided_slice %157 {offsets = [0, 0, 32], sizes = [2, 16, 32], strides = [1, 1, 1]} : vector<2x16x128xbf16> to vector<2x16x32xbf16>
    %179 = vector.extract_strided_slice %159 {offsets = [0, 0, 32], sizes = [2, 16, 32], strides = [1, 1, 1]} : vector<2x16x128xbf16> to vector<2x16x32xbf16>
    %cst_66 = arith.constant dense<0.000000e+00> : vector<2x8x16xf32>
    %180 = tpu.matmul %177, %178, %cst_66 {dimension_numbers = #tpu.dot_dimension_numbers<[2], [2], [1], [1], [0, 0, 0, 1, 1, 1], [0], [0]>} : vector<2x8x32xbf16>, vector<2x16x32xbf16>, vector<2x8x16xf32> -> vector<2x8x16xf32>
    %cst_67 = arith.constant dense<0xFF800000> : vector<2x8xf32>
    %181 = vector.multi_reduction <maximumf>, %180, %cst_67 [2] : vector<2x8x16xf32> to vector<2x8xf32>
    %182 = vector.shape_cast %181 : vector<2x8xf32> to vector<2x8x1xf32>
    %183 = vector.broadcast %182 : vector<2x8x1xf32> to vector<2x8x16xf32>
    %184 = arith.subf %180, %183 : vector<2x8x16xf32>
    %185 = math.exp %184 : vector<2x8x16xf32>
    %cst_68 = arith.constant dense<0.000000e+00> : vector<2x8xf32>
    %186 = vector.multi_reduction <add>, %185, %cst_68 [2] : vector<2x8x16xf32> to vector<2x8xf32>
    %187 = vector.shape_cast %186 : vector<2x8xf32> to vector<2x8x1xf32>
    %188 = arith.truncf %185 : vector<2x8x16xf32> to vector<2x8x16xbf16>
    %cst_69 = arith.constant dense<0.000000e+00> : vector<2x8x32xf32>
    %189 = tpu.matmul %188, %179, %cst_69 {dimension_numbers = #tpu.dot_dimension_numbers<[2], [1], [1], [2], [0, 0, 0, 1, 1, 2], [0], [0]>} : vector<2x8x16xbf16>, vector<2x16x32xbf16>, vector<2x8x32xf32> -> vector<2x8x32xf32>
    %190 = tpu.reciprocal %187 {approx = true} : vector<2x8x1xf32> -> vector<2x8x1xf32>
    %191 = vector.broadcast %190 : vector<2x8x1xf32> to vector<2x8x32xf32>
    %192 = arith.mulf %189, %191 : vector<2x8x32xf32>
    %193 = arith.truncf %192 : vector<2x8x32xf32> to vector<2x8x32xbf16>
    %194 = vector.extract_strided_slice %145 {offsets = [0, 0, 64], sizes = [2, 8, 32], strides = [1, 1, 1]} : vector<2x8x128xbf16> to vector<2x8x32xbf16>
    %195 = vector.extract_strided_slice %157 {offsets = [0, 0, 64], sizes = [2, 16, 32], strides = [1, 1, 1]} : vector<2x16x128xbf16> to vector<2x16x32xbf16>
    %196 = vector.extract_strided_slice %159 {offsets = [0, 0, 64], sizes = [2, 16, 32], strides = [1, 1, 1]} : vector<2x16x128xbf16> to vector<2x16x32xbf16>
    %cst_70 = arith.constant dense<0.000000e+00> : vector<2x8x16xf32>
    %197 = tpu.matmul %194, %195, %cst_70 {dimension_numbers = #tpu.dot_dimension_numbers<[2], [2], [1], [1], [0, 0, 0, 1, 1, 1], [0], [0]>} : vector<2x8x32xbf16>, vector<2x16x32xbf16>, vector<2x8x16xf32> -> vector<2x8x16xf32>
    %cst_71 = arith.constant dense<0xFF800000> : vector<2x8xf32>
    %198 = vector.multi_reduction <maximumf>, %197, %cst_71 [2] : vector<2x8x16xf32> to vector<2x8xf32>
    %199 = vector.shape_cast %198 : vector<2x8xf32> to vector<2x8x1xf32>
    %200 = vector.broadcast %199 : vector<2x8x1xf32> to vector<2x8x16xf32>
    %201 = arith.subf %197, %200 : vector<2x8x16xf32>
    %202 = math.exp %201 : vector<2x8x16xf32>
    %cst_72 = arith.constant dense<0.000000e+00> : vector<2x8xf32>
    %203 = vector.multi_reduction <add>, %202, %cst_72 [2] : vector<2x8x16xf32> to vector<2x8xf32>
    %204 = vector.shape_cast %203 : vector<2x8xf32> to vector<2x8x1xf32>
    %205 = arith.truncf %202 : vector<2x8x16xf32> to vector<2x8x16xbf16>
    %cst_73 = arith.constant dense<0.000000e+00> : vector<2x8x32xf32>
    %206 = tpu.matmul %205, %196, %cst_73 {dimension_numbers = #tpu.dot_dimension_numbers<[2], [1], [1], [2], [0, 0, 0, 1, 1, 2], [0], [0]>} : vector<2x8x16xbf16>, vector<2x16x32xbf16>, vector<2x8x32xf32> -> vector<2x8x32xf32>
    %207 = tpu.reciprocal %204 {approx = true} : vector<2x8x1xf32> -> vector<2x8x1xf32>
    %208 = vector.broadcast %207 : vector<2x8x1xf32> to vector<2x8x32xf32>
    %209 = arith.mulf %206, %208 : vector<2x8x32xf32>
    %210 = arith.truncf %209 : vector<2x8x32xf32> to vector<2x8x32xbf16>
    %211 = vector.extract_strided_slice %145 {offsets = [0, 0, 96], sizes = [2, 8, 32], strides = [1, 1, 1]} : vector<2x8x128xbf16> to vector<2x8x32xbf16>
    %212 = vector.extract_strided_slice %157 {offsets = [0, 0, 96], sizes = [2, 16, 32], strides = [1, 1, 1]} : vector<2x16x128xbf16> to vector<2x16x32xbf16>
    %213 = vector.extract_strided_slice %159 {offsets = [0, 0, 96], sizes = [2, 16, 32], strides = [1, 1, 1]} : vector<2x16x128xbf16> to vector<2x16x32xbf16>
    %cst_74 = arith.constant dense<0.000000e+00> : vector<2x8x16xf32>
    %214 = tpu.matmul %211, %212, %cst_74 {dimension_numbers = #tpu.dot_dimension_numbers<[2], [2], [1], [1], [0, 0, 0, 1, 1, 1], [0], [0]>} : vector<2x8x32xbf16>, vector<2x16x32xbf16>, vector<2x8x16xf32> -> vector<2x8x16xf32>
    %cst_75 = arith.constant dense<0xFF800000> : vector<2x8xf32>
    %215 = vector.multi_reduction <maximumf>, %214, %cst_75 [2] : vector<2x8x16xf32> to vector<2x8xf32>
    %216 = vector.shape_cast %215 : vector<2x8xf32> to vector<2x8x1xf32>
    %217 = vector.broadcast %216 : vector<2x8x1xf32> to vector<2x8x16xf32>
    %218 = arith.subf %214, %217 : vector<2x8x16xf32>
    %219 = math.exp %218 : vector<2x8x16xf32>
    %cst_76 = arith.constant dense<0.000000e+00> : vector<2x8xf32>
    %220 = vector.multi_reduction <add>, %219, %cst_76 [2] : vector<2x8x16xf32> to vector<2x8xf32>
    %221 = vector.shape_cast %220 : vector<2x8xf32> to vector<2x8x1xf32>
    %222 = arith.truncf %219 : vector<2x8x16xf32> to vector<2x8x16xbf16>
    %cst_77 = arith.constant dense<0.000000e+00> : vector<2x8x32xf32>
    %223 = tpu.matmul %222, %213, %cst_77 {dimension_numbers = #tpu.dot_dimension_numbers<[2], [1], [1], [2], [0, 0, 0, 1, 1, 2], [0], [0]>} : vector<2x8x16xbf16>, vector<2x16x32xbf16>, vector<2x8x32xf32> -> vector<2x8x32xf32>
    %224 = tpu.reciprocal %221 {approx = true} : vector<2x8x1xf32> -> vector<2x8x1xf32>
    %225 = vector.broadcast %224 : vector<2x8x1xf32> to vector<2x8x32xf32>
    %226 = arith.mulf %223, %225 : vector<2x8x32xf32>
    %227 = arith.truncf %226 : vector<2x8x32xf32> to vector<2x8x32xbf16>
    %228 = tpu.concatenate %176, %193, %210, %227 in 2 : vector<2x8x32xbf16>, vector<2x8x32xbf16>, vector<2x8x32xbf16>, vector<2x8x32xbf16> -> vector<2x8x128xbf16>
    %229 = vector.shape_cast %228 : vector<2x8x128xbf16> to vector<16x128xbf16>
    %c0_78 = arith.constant 0 : index
    %c0_79 = arith.constant 0 : index
    %c0_80 = arith.constant 0 : index
    %230 = vector.load %arg12[%c0_78, %c0_79, %c0_80] : memref<1x128x128xbf16, #tpu.memory_space<vmem>>, vector<1x128x128xbf16>
    %231 = vector.shape_cast %230 : vector<1x128x128xbf16> to vector<128x128xbf16>
    %cst_81 = arith.constant dense<0.000000e+00> : vector<16x128xf32>
    %232 = tpu.matmul %229, %231, %cst_81 {dimension_numbers = #tpu.dot_dimension_numbers<[1], [0], [0], [1], [0, 0, 1, 1], [], []>} : vector<16x128xbf16>, vector<128x128xbf16>, vector<16x128xf32> -> vector<16x128xf32>
    %233 = vector.shape_cast %232 : vector<16x128xf32> to vector<2x8x128xf32>
    %c0_82 = arith.constant 0 : index
    %c0_83 = arith.constant 0 : index
    %c0_84 = arith.constant 0 : index
    %234 = vector.load %arg13[%c0_82, %c0_83, %c0_84] : memref<1x1x128xf32, #tpu.memory_space<vmem>>, vector<1x1x128xf32>
    %235 = vector.shape_cast %234 : vector<1x1x128xf32> to vector<1x128xf32>
    %236 = vector.shape_cast %235 : vector<1x128xf32> to vector<1x1x128xf32>
    %237 = vector.broadcast %236 : vector<1x1x128xf32> to vector<2x8x128xf32>
    %238 = arith.addf %233, %237 : vector<2x8x128xf32>
    %239 = arith.addf %131, %238 : vector<2x8x128xf32>
    %cst_85 = arith.constant dense<0.000000e+00> : vector<2x8xf32>
    %240 = vector.multi_reduction <add>, %239, %cst_85 [2] : vector<2x8x128xf32> to vector<2x8xf32>
    %241 = vector.shape_cast %240 : vector<2x8xf32> to vector<2x8x1xf32>
    %cst_86 = arith.constant 1.280000e+02 : f32
    %242 = vector.broadcast %cst_86 : f32 to vector<2x8x1xf32>
    %243 = arith.divf %241, %242 : vector<2x8x1xf32>
    %244 = vector.broadcast %243 : vector<2x8x1xf32> to vector<2x8x128xf32>
    %245 = arith.subf %239, %244 : vector<2x8x128xf32>
    %246 = arith.mulf %245, %245 : vector<2x8x128xf32>
    %cst_87 = arith.constant dense<0.000000e+00> : vector<2x8xf32>
    %247 = vector.multi_reduction <add>, %246, %cst_87 [2] : vector<2x8x128xf32> to vector<2x8xf32>
    %248 = vector.shape_cast %247 : vector<2x8xf32> to vector<2x8x1xf32>
    %cst_88 = arith.constant 1.280000e+02 : f32
    %249 = vector.broadcast %cst_88 : f32 to vector<2x8x1xf32>
    %250 = arith.divf %248, %249 : vector<2x8x1xf32>
    %251 = vector.broadcast %243 : vector<2x8x1xf32> to vector<2x8x128xf32>
    %252 = arith.subf %239, %251 : vector<2x8x128xf32>
    %cst_89 = arith.constant 9.99999974E-6 : f32
    %253 = vector.broadcast %cst_89 : f32 to vector<2x8x1xf32>
    %254 = arith.addf %250, %253 : vector<2x8x1xf32>
    %255 = math.rsqrt %254 : vector<2x8x1xf32>
    %256 = vector.broadcast %255 : vector<2x8x1xf32> to vector<2x8x128xf32>
    %257 = arith.mulf %252, %256 : vector<2x8x128xf32>
    %c0_90 = arith.constant 0 : index
    %c0_91 = arith.constant 0 : index
    %c0_92 = arith.constant 0 : index
    %258 = vector.load %arg20[%c0_90, %c0_91, %c0_92] : memref<1x1x128xf32, #tpu.memory_space<vmem>>, vector<1x1x128xf32>
    %259 = vector.shape_cast %258 : vector<1x1x128xf32> to vector<1x128xf32>
    %260 = vector.shape_cast %259 : vector<1x128xf32> to vector<1x1x128xf32>
    %261 = vector.broadcast %260 : vector<1x1x128xf32> to vector<2x8x128xf32>
    %262 = arith.mulf %257, %261 : vector<2x8x128xf32>
    %c0_93 = arith.constant 0 : index
    %c0_94 = arith.constant 0 : index
    %c0_95 = arith.constant 0 : index
    %263 = vector.load %arg21[%c0_93, %c0_94, %c0_95] : memref<1x1x128xf32, #tpu.memory_space<vmem>>, vector<1x1x128xf32>
    %264 = vector.shape_cast %263 : vector<1x1x128xf32> to vector<1x128xf32>
    %265 = vector.shape_cast %264 : vector<1x128xf32> to vector<1x1x128xf32>
    %266 = vector.broadcast %265 : vector<1x1x128xf32> to vector<2x8x128xf32>
    %267 = arith.addf %262, %266 : vector<2x8x128xf32>
    %268 = vector.shape_cast %267 : vector<2x8x128xf32> to vector<16x128xf32>
    %269 = arith.truncf %268 : vector<16x128xf32> to vector<16x128xbf16>
    %c0_96 = arith.constant 0 : index
    %c0_97 = arith.constant 0 : index
    %c0_98 = arith.constant 0 : index
    %270 = vector.load %arg14[%c0_96, %c0_97, %c0_98] : memref<1x128x256xbf16, #tpu.memory_space<vmem>>, vector<1x128x256xbf16>
    %271 = vector.shape_cast %270 : vector<1x128x256xbf16> to vector<128x256xbf16>
    %cst_99 = arith.constant dense<0.000000e+00> : vector<16x256xf32>
    %272 = tpu.matmul %269, %271, %cst_99 {dimension_numbers = #tpu.dot_dimension_numbers<[1], [0], [0], [1], [0, 0, 1, 1], [], []>} : vector<16x128xbf16>, vector<128x256xbf16>, vector<16x256xf32> -> vector<16x256xf32>
    %273 = vector.shape_cast %272 : vector<16x256xf32> to vector<2x8x256xf32>
    %c0_100 = arith.constant 0 : index
    %c0_101 = arith.constant 0 : index
    %c0_102 = arith.constant 0 : index
    %274 = vector.load %arg15[%c0_100, %c0_101, %c0_102] : memref<1x1x256xf32, #tpu.memory_space<vmem>>, vector<1x1x256xf32>
    %275 = vector.shape_cast %274 : vector<1x1x256xf32> to vector<1x256xf32>
    %276 = vector.shape_cast %275 : vector<1x256xf32> to vector<1x1x256xf32>
    %277 = vector.broadcast %276 : vector<1x1x256xf32> to vector<2x8x256xf32>
    %278 = arith.addf %273, %277 : vector<2x8x256xf32>
    %cst_103 = arith.constant 0.000000e+00 : f32
    %279 = vector.broadcast %cst_103 : f32 to vector<2x8x256xf32>
    %280 = arith.maximumf %278, %279 : vector<2x8x256xf32>
    %281 = arith.truncf %280 : vector<2x8x256xf32> to vector<2x8x256xbf16>
    %282 = vector.shape_cast %281 : vector<2x8x256xbf16> to vector<16x256xbf16>
    %c0_104 = arith.constant 0 : index
    %c0_105 = arith.constant 0 : index
    %c0_106 = arith.constant 0 : index
    %283 = vector.load %arg16[%c0_104, %c0_105, %c0_106] : memref<1x256x128xbf16, #tpu.memory_space<vmem>>, vector<1x256x128xbf16>
    %284 = vector.shape_cast %283 : vector<1x256x128xbf16> to vector<256x128xbf16>
    %cst_107 = arith.constant dense<0.000000e+00> : vector<16x128xf32>
    %285 = tpu.matmul %282, %284, %cst_107 {dimension_numbers = #tpu.dot_dimension_numbers<[1], [0], [0], [1], [0, 0, 1, 1], [], []>} : vector<16x256xbf16>, vector<256x128xbf16>, vector<16x128xf32> -> vector<16x128xf32>
    %286 = vector.shape_cast %285 : vector<16x128xf32> to vector<2x8x128xf32>
    %c0_108 = arith.constant 0 : index
    %c0_109 = arith.constant 0 : index
    %c0_110 = arith.constant 0 : index
    %287 = vector.load %arg17[%c0_108, %c0_109, %c0_110] : memref<1x1x128xf32, #tpu.memory_space<vmem>>, vector<1x1x128xf32>
    %288 = vector.shape_cast %287 : vector<1x1x128xf32> to vector<1x128xf32>
    %289 = vector.shape_cast %288 : vector<1x128xf32> to vector<1x1x128xf32>
    %290 = vector.broadcast %289 : vector<1x1x128xf32> to vector<2x8x128xf32>
    %291 = arith.addf %286, %290 : vector<2x8x128xf32>
    %292 = arith.addf %267, %291 : vector<2x8x128xf32>
    %cst_111 = arith.constant dense<0.000000e+00> : vector<2x8xf32>
    %293 = vector.multi_reduction <add>, %292, %cst_111 [2] : vector<2x8x128xf32> to vector<2x8xf32>
    %294 = vector.shape_cast %293 : vector<2x8xf32> to vector<2x8x1xf32>
    %cst_112 = arith.constant 1.280000e+02 : f32
    %295 = vector.broadcast %cst_112 : f32 to vector<2x8x1xf32>
    %296 = arith.divf %294, %295 : vector<2x8x1xf32>
    %297 = vector.broadcast %296 : vector<2x8x1xf32> to vector<2x8x128xf32>
    %298 = arith.subf %292, %297 : vector<2x8x128xf32>
    %299 = arith.mulf %298, %298 : vector<2x8x128xf32>
    %cst_113 = arith.constant dense<0.000000e+00> : vector<2x8xf32>
    %300 = vector.multi_reduction <add>, %299, %cst_113 [2] : vector<2x8x128xf32> to vector<2x8xf32>
    %301 = vector.shape_cast %300 : vector<2x8xf32> to vector<2x8x1xf32>
    %cst_114 = arith.constant 1.280000e+02 : f32
    %302 = vector.broadcast %cst_114 : f32 to vector<2x8x1xf32>
    %303 = arith.divf %301, %302 : vector<2x8x1xf32>
    %304 = vector.broadcast %296 : vector<2x8x1xf32> to vector<2x8x128xf32>
    %305 = arith.subf %292, %304 : vector<2x8x128xf32>
    %cst_115 = arith.constant 9.99999974E-6 : f32
    %306 = vector.broadcast %cst_115 : f32 to vector<2x8x1xf32>
    %307 = arith.addf %303, %306 : vector<2x8x1xf32>
    %308 = math.rsqrt %307 : vector<2x8x1xf32>
    %309 = vector.broadcast %308 : vector<2x8x1xf32> to vector<2x8x128xf32>
    %310 = arith.mulf %305, %309 : vector<2x8x128xf32>
    %c0_116 = arith.constant 0 : index
    %c0_117 = arith.constant 0 : index
    %c0_118 = arith.constant 0 : index
    %311 = vector.load %arg22[%c0_116, %c0_117, %c0_118] : memref<1x1x128xf32, #tpu.memory_space<vmem>>, vector<1x1x128xf32>
    %312 = vector.shape_cast %311 : vector<1x1x128xf32> to vector<1x128xf32>
    %313 = vector.shape_cast %312 : vector<1x128xf32> to vector<1x1x128xf32>
    %314 = vector.broadcast %313 : vector<1x1x128xf32> to vector<2x8x128xf32>
    %315 = arith.mulf %310, %314 : vector<2x8x128xf32>
    %c0_119 = arith.constant 0 : index
    %c0_120 = arith.constant 0 : index
    %c0_121 = arith.constant 0 : index
    %316 = vector.load %arg23[%c0_119, %c0_120, %c0_121] : memref<1x1x128xf32, #tpu.memory_space<vmem>>, vector<1x1x128xf32>
    %317 = vector.shape_cast %316 : vector<1x1x128xf32> to vector<1x128xf32>
    %318 = vector.shape_cast %317 : vector<1x128xf32> to vector<1x1x128xf32>
    %319 = vector.broadcast %318 : vector<1x1x128xf32> to vector<2x8x128xf32>
    %320 = arith.addf %315, %319 : vector<2x8x128xf32>
    %c0_122 = arith.constant 0 : index
    %c0_123 = arith.constant 0 : index
    %c0_124 = arith.constant 0 : index
    %321 = vector.load %arg25[%c0_122, %c0_123, %c0_124] : memref<2x8x128xf32, #tpu.memory_space<vmem>>, vector<2x8x128xf32>
    tpu.vector_store %arg25[%c0_122, %c0_123, %c0_124], %320 {strides = array<i32>} : memref<2x8x128xf32, #tpu.memory_space<vmem>>, vector<2x8x128xf32>,
    %c1_i32 = arith.constant 1 : i32
    %322 = arith.cmpi eq, %arg1, %c1_i32 : i32
    %323 = arith.extui %322 : i1 to i32
    %c0_i32_125 = arith.constant 0 : i32
    %324 = arith.cmpi ne, %323, %c0_i32_125 : i32
    scf.if %324 {
      %c0_126 = arith.constant 0 : index
      %c0_127 = arith.constant 0 : index
      %c0_128 = arith.constant 0 : index
      %325 = vector.load %arg24[%c0_126, %c0_127, %c0_128] : memref<2x8x128xf32, #tpu.memory_space<vmem>>, vector<2x8x128xf32>
      tpu.vector_store %arg24[%c0_126, %c0_127, %c0_128], %320 {strides = array<i32>} : memref<2x8x128xf32, #tpu.memory_space<vmem>>, vector<2x8x128xf32>,
    } else {
    }
    return
  }
  func.func @transform_0(%arg0: i32, %arg1: i32) -> (i32, i32, i32) {
    %c0_i32 = arith.constant 0 : i32
    %c0_i32_0 = arith.constant 0 : i32
    %c0_i32_1 = arith.constant 0 : i32
    return %arg0, %c0_i32, %c0_i32_0 : i32, i32, i32
  }
  func.func @transform_1(%arg0: i32, %arg1: i32) -> (i32, i32, i32) {
    %c0_i32 = arith.constant 0 : i32
    %c0_i32_0 = arith.constant 0 : i32
    %c0_i32_1 = arith.constant 0 : i32
    return %arg0, %c0_i32, %c0_i32_0 : i32, i32, i32
  }
  func.func @transform_2(%arg0: i32, %arg1: i32) -> (i32, i32, i32) {
    %c0_i32 = arith.constant 0 : i32
    %c0_i32_0 = arith.constant 0 : i32
    %c0_i32_1 = arith.constant 0 : i32
    return %arg1, %c0_i32, %c0_i32_0 : i32, i32, i32
  }
  func.func @transform_3(%arg0: i32, %arg1: i32) -> (i32, i32, i32) {
    %c0_i32 = arith.constant 0 : i32
    %c0_i32_0 = arith.constant 0 : i32
    %c0_i32_1 = arith.constant 0 : i32
    return %arg1, %c0_i32, %c0_i32_0 : i32, i32, i32
  }
  func.func @transform_4(%arg0: i32, %arg1: i32) -> (i32, i32, i32) {
    %c0_i32 = arith.constant 0 : i32
    %c0_i32_0 = arith.constant 0 : i32
    %c0_i32_1 = arith.constant 0 : i32
    return %arg1, %c0_i32, %c0_i32_0 : i32, i32, i32
  }
  func.func @transform_5(%arg0: i32, %arg1: i32) -> (i32, i32, i32) {
    %c0_i32 = arith.constant 0 : i32
    %c0_i32_0 = arith.constant 0 : i32
    %c0_i32_1 = arith.constant 0 : i32
    return %arg1, %c0_i32, %c0_i32_0 : i32, i32, i32
  }
  func.func @transform_6(%arg0: i32, %arg1: i32) -> (i32, i32, i32) {
    %c0_i32 = arith.constant 0 : i32
    %c0_i32_0 = arith.constant 0 : i32
    %c0_i32_1 = arith.constant 0 : i32
    return %arg1, %c0_i32, %c0_i32_0 : i32, i32, i32
  }
  func.func @transform_7(%arg0: i32, %arg1: i32) -> (i32, i32, i32) {
    %c0_i32 = arith.constant 0 : i32
    %c0_i32_0 = arith.constant 0 : i32
    %c0_i32_1 = arith.constant 0 : i32
    return %arg1, %c0_i32, %c0_i32_0 : i32, i32, i32
  }
  func.func @transform_8(%arg0: i32, %arg1: i32) -> (i32, i32, i32) {
    %c0_i32 = arith.constant 0 : i32
    %c0_i32_0 = arith.constant 0 : i32
    %c0_i32_1 = arith.constant 0 : i32
    return %arg1, %c0_i32, %c0_i32_0 : i32, i32, i32
  }
  func.func @transform_9(%arg0: i32, %arg1: i32) -> (i32, i32, i32) {
    %c0_i32 = arith.constant 0 : i32
    %c0_i32_0 = arith.constant 0 : i32
    %c0_i32_1 = arith.constant 0 : i32
    return %arg1, %c0_i32, %c0_i32_0 : i32, i32, i32
  }
  func.func @transform_10(%arg0: i32, %arg1: i32) -> (i32, i32, i32) {
    %c0_i32 = arith.constant 0 : i32
    %c0_i32_0 = arith.constant 0 : i32
    %c0_i32_1 = arith.constant 0 : i32
    return %arg1, %c0_i32, %c0_i32_0 : i32, i32, i32
  }
  func.func @transform_11(%arg0: i32, %arg1: i32) -> (i32, i32, i32) {
    %c0_i32 = arith.constant 0 : i32
    %c0_i32_0 = arith.constant 0 : i32
    %c0_i32_1 = arith.constant 0 : i32
    return %arg1, %c0_i32, %c0_i32_0 : i32, i32, i32
  }
  func.func @transform_12(%arg0: i32, %arg1: i32) -> (i32, i32, i32) {
    %c0_i32 = arith.constant 0 : i32
    %c0_i32_0 = arith.constant 0 : i32
    %c0_i32_1 = arith.constant 0 : i32
    return %arg1, %c0_i32, %c0_i32_0 : i32, i32, i32
  }
  func.func @transform_13(%arg0: i32, %arg1: i32) -> (i32, i32, i32) {
    %c0_i32 = arith.constant 0 : i32
    %c0_i32_0 = arith.constant 0 : i32
    %c0_i32_1 = arith.constant 0 : i32
    return %arg1, %c0_i32, %c0_i32_0 : i32, i32, i32
  }
  func.func @transform_14(%arg0: i32, %arg1: i32) -> (i32, i32, i32) {
    %c0_i32 = arith.constant 0 : i32
    %c0_i32_0 = arith.constant 0 : i32
    %c0_i32_1 = arith.constant 0 : i32
    return %arg1, %c0_i32, %c0_i32_0 : i32, i32, i32
  }
  func.func @transform_15(%arg0: i32, %arg1: i32) -> (i32, i32, i32) {
    %c0_i32 = arith.constant 0 : i32
    %c0_i32_0 = arith.constant 0 : i32
    %c0_i32_1 = arith.constant 0 : i32
    return %arg1, %c0_i32, %c0_i32_0 : i32, i32, i32
  }
  func.func @transform_16(%arg0: i32, %arg1: i32) -> (i32, i32, i32) {
    %c0_i32 = arith.constant 0 : i32
    %c0_i32_0 = arith.constant 0 : i32
    %c0_i32_1 = arith.constant 0 : i32
    return %arg1, %c0_i32, %c0_i32_0 : i32, i32, i32
  }
  func.func @transform_17(%arg0: i32, %arg1: i32) -> (i32, i32, i32) {
    %c0_i32 = arith.constant 0 : i32
    %c0_i32_0 = arith.constant 0 : i32
    %c0_i32_1 = arith.constant 0 : i32
    return %arg1, %c0_i32, %c0_i32_0 : i32, i32, i32
  }
  func.func @transform_18(%arg0: i32, %arg1: i32) -> (i32, i32, i32) {
    %c0_i32 = arith.constant 0 : i32
    %c0_i32_0 = arith.constant 0 : i32
    %c0_i32_1 = arith.constant 0 : i32
    return %arg1, %c0_i32, %c0_i32_0 : i32, i32, i32
  }
  func.func @transform_19(%arg0: i32, %arg1: i32) -> (i32, i32, i32) {
    %c0_i32 = arith.constant 0 : i32
    %c0_i32_0 = arith.constant 0 : i32
    %c0_i32_1 = arith.constant 0 : i32
    return %arg1, %c0_i32, %c0_i32_0 : i32, i32, i32
  }
  func.func @transform_20(%arg0: i32, %arg1: i32) -> (i32, i32, i32) {
    %c0_i32 = arith.constant 0 : i32
    %c0_i32_0 = arith.constant 0 : i32
    %c0_i32_1 = arith.constant 0 : i32
    return %arg1, %c0_i32, %c0_i32_0 : i32, i32, i32
  }
  func.func @transform_21(%arg0: i32, %arg1: i32) -> (i32, i32, i32) {
    %c0_i32 = arith.constant 0 : i32
    %c0_i32_0 = arith.constant 0 : i32
    %c0_i32_1 = arith.constant 0 : i32
    return %arg1, %c0_i32, %c0_i32_0 : i32, i32, i32
  }
  func.func @transform_22(%arg0: i32, %arg1: i32) -> (i32, i32, i32) {
    %c0_i32 = arith.constant 0 : i32
    %c0_i32_0 = arith.constant 0 : i32
    %c0_i32_1 = arith.constant 0 : i32
    return %arg0, %c0_i32, %c0_i32_0 : i32, i32, i32
  }
}

</mosaic_0001>

<llo_original>
// kernel: tpu_custom_call.1
$region0: #{tpu_custom_call.1}
  #allocation0 [shape = 'u32[]', space=smem, size = 0x4, offset = 0x4, fixed_abs, tag = 'smem constant byte address 0x4 - core index']
  #allocation1 [shape = 'u32[144,128]{1,0:T(1,128)}', space=vmem, size = 0x12000, scoped, tag = 'internal scratch']
  #allocation2 [shape = 'f32[2,8,128]{2,1,0:T(8,128)}', space=vmem, size = 0x2000, scoped, tag = 'scratch operand']
  %s0 = inlined_call_operand.hbm [shape: f32[2,8,128], index: 0, kind: input, shape index: {}]
  %s1 = inlined_call_operand.hbm [shape: bf16[2,16,128], index: 1, kind: input, shape index: {}]
  %s2 = inlined_call_operand.hbm [shape: bf16[2,128,384], index: 2, kind: input, shape index: {}]
  %s3 = inlined_call_operand.hbm [shape: f32[2,1,384], index: 3, kind: input, shape index: {}]
  %s4 = inlined_call_operand.hbm [shape: bf16[2,128,128], index: 4, kind: input, shape index: {}]
  %s5 = inlined_call_operand.hbm [shape: f32[2,1,128], index: 5, kind: input, shape index: {}]
  %s6 = inlined_call_operand.hbm [shape: bf16[2,128,128], index: 6, kind: input, shape index: {}]
  %s7 = inlined_call_operand.vmem [shape: f32[2,1,128], index: 7, kind: input, shape index: {}]
  %s8 = inlined_call_operand.hbm [shape: bf16[2,128,256], index: 8, kind: input, shape index: {}]
  %s9 = inlined_call_operand.vmem [shape: f32[2,1,256], index: 9, kind: input, shape index: {}]
  %s10 = inlined_call_operand.hbm [shape: bf16[2,128,128], index: 10, kind: input, shape index: {}]
  %s11 = inlined_call_operand.vmem [shape: f32[2,1,128], index: 11, kind: input, shape index: {}]
  %s12 = inlined_call_operand.hbm [shape: bf16[2,128,256], index: 12, kind: input, shape index: {}]
  %s13 = inlined_call_operand.vmem [shape: f32[2,1,256], index: 13, kind: input, shape index: {}]
  %s14 = inlined_call_operand.hbm [shape: bf16[2,256,128], index: 14, kind: input, shape index: {}]
  %s15 = inlined_call_operand.vmem [shape: f32[2,1,128], index: 15, kind: input, shape index: {}]
  %s16 = inlined_call_operand.vmem [shape: f32[2,1,128], index: 16, kind: input, shape index: {}]
  %s17 = inlined_call_operand.vmem [shape: f32[2,1,128], index: 17, kind: input, shape index: {}]
  %s18 = inlined_call_operand.vmem [shape: f32[2,1,128], index: 18, kind: input, shape index: {}]
  %s19 = inlined_call_operand.vmem [shape: f32[2,1,128], index: 19, kind: input, shape index: {}]
  %s20 = inlined_call_operand.vmem [shape: f32[2,1,128], index: 20, kind: input, shape index: {}]
  %s21 = inlined_call_operand.vmem [shape: f32[2,1,128], index: 21, kind: input, shape index: {}]
  %s22 = inlined_call_operand.hbm [shape: f32[2,8,128], index: 22, kind: output, shape index: {}]
  %s23 = sld [smem:[#allocation0]]
  $region173: #{tpu_custom_call.1} parent=0
    _
  %s25 = ssub.s32 1, %s23
  %s26 = scalar_select 0, %s25, %s23
  $region1: #{tpu_custom_call.1} parent=0
    #allocation3 [shape = 'u8[8192]{0}', space=vmem, size = 0x2000, scoped, tag = 'input window, operand 0, single buffered']
    #allocation4 [shape = 's32[2]{0}', space=sflag, size = 0x8, scoped, tag = 'scoped memory for tpu_custom_call.1']
    #allocation5 [shape = 's32[2]{0}', space=sflag, size = 0x8, scoped, tag = 'scoped memory for tpu_custom_call.1']
    #allocation6 [shape = 'u8[8192]{0}', space=vmem, size = 0x2000, scoped, tag = 'input window, operand 1, single buffered']
    #allocation7 [shape = 's32[1]{0}', space=sflag, size = 0x4, scoped, tag = 'scoped memory for tpu_custom_call.1']
    #allocation8 [shape = 'u8[196608]{0}', space=vmem, size = 0x30000, scoped, tag = 'input window, operand 2']
    #allocation9 [shape = 'u8[3072]{0}', space=vmem, size = 0xc00, scoped, tag = 'input window, operand 3']
    #allocation10 [shape = 'u8[65536]{0}', space=vmem, size = 0x10000, scoped, tag = 'input window, operand 4']
    #allocation11 [shape = 'u8[1024]{0}', space=vmem, size = 0x400, scoped, tag = 'input window, operand 5']
    #allocation12 [shape = 'u8[65536]{0}', space=vmem, size = 0x10000, scoped, tag = 'input window, operand 6']
    #allocation13 [shape = 'u8[131072]{0}', space=vmem, size = 0x20000, scoped, tag = 'input window, operand 8']
    #allocation14 [shape = 'u8[65536]{0}', space=vmem, size = 0x10000, scoped, tag = 'input window, operand 10']
    #allocation15 [shape = 'u8[131072]{0}', space=vmem, size = 0x20000, scoped, tag = 'input window, operand 12']
    #allocation16 [shape = 'u8[131072]{0}', space=vmem, size = 0x20000, scoped, tag = 'input window, operand 14']
    #allocation17 [shape = 'u8[8192]{0}', space=vmem, size = 0x2000, scoped, tag = 'output window, operand 0, single buffered']
    %27 = vsyncpa [#allocation4], 0
    %28 = vsyncpa [#allocation7], 0
    %29 = vsyncpa [#allocation5], 0
    loop: start=0, step=1, limit=4
    $region2: #{tpu_custom_call.1} parent=1 // loop_pre_header
      _
    $region3: #{tpu_custom_call.1} parent=1 // loop_header
      %s31 = sphi 0, %s35
      %p32 = scmp.ge.s32.totalorder %s31, 4
      %s38 = sphi 0, %s50
      %s39 = sphi 0, %s46
      %s40 = sphi 0, %s38
      %s41 = sphi 0, %s39
      %s42 = sphi 0, %s40
      %s43 = sphi 0, %s41
      %s53 = sphi 0, %s55
      %s56 = sphi 0, %s53
      %s57 = sphi 0, %s56
      %s73 = sphi 0, %s57
      %s79 = sphi 0, %s81
      %s82 = sphi 0, %s79
      %s83 = sphi 0, %s82
      %s99 = sphi 0, %s83
      %s105 = sphi 0, %s107
      %s108 = sphi 0, %s105
      %s109 = sphi 0, %s108
      %s125 = sphi 0, %s109
      %s131 = sphi 0, %s133
      %s134 = sphi 0, %s131
      %s135 = sphi 0, %s134
      %s151 = sphi 0, %s135
      %s157 = sphi 0, %s159
      %s160 = sphi 0, %s157
      %s161 = sphi 0, %s160
      %s177 = sphi 0, %s161
      %s183 = sphi 0, %s185
      %s186 = sphi 0, %s183
      %s187 = sphi 0, %s186
      %s203 = sphi 0, %s187
      %s209 = sphi 0, %s211
      %s212 = sphi 0, %s209
      %s213 = sphi 0, %s212
      %s229 = sphi 0, %s213
      %s235 = sphi 0, %s237
      %s238 = sphi 0, %s235
      %s239 = sphi 0, %s238
      %s255 = sphi 0, %s239
      %s261 = sphi 0, %s263
      %s264 = sphi 0, %s261
      %s265 = sphi 0, %s264
      %s281 = sphi 0, %s265
      %s287 = sphi 0, %s289
      %s290 = sphi 0, %s287
      %s291 = sphi 0, %s290
      %s307 = sphi 0, %s291
      %s313 = sphi 0, %s315
      %s316 = sphi 0, %s313
      %s317 = sphi 0, %s316
      %s333 = sphi 0, %s317
      %s339 = sphi 0, %s341
      %s342 = sphi 0, %s339
      %s343 = sphi 0, %s342
      %s359 = sphi 0, %s343
      %s365 = sphi 0, %s367
      %s368 = sphi 0, %s365
      %s369 = sphi 0, %s368
      %s385 = sphi 0, %s369
      %s391 = sphi 0, %s393
      %s394 = sphi 0, %s391
      %s395 = sphi 0, %s394
      %s411 = sphi 0, %s395
      %s417 = sphi 0, %s419
      %s420 = sphi 0, %s417
      %s421 = sphi 0, %s420
      %s437 = sphi 0, %s421
      %s443 = sphi 0, %s445
      %s446 = sphi 0, %s443
      %s447 = sphi 0, %s446
      %s463 = sphi 0, %s447
      %s469 = sphi 0, %s471
      %s472 = sphi 0, %s469
      %s473 = sphi 0, %s472
      %s489 = sphi 0, %s473
      %s495 = sphi 0, %s497
      %s498 = sphi 0, %s495
      %s499 = sphi 0, %s498
      %s515 = sphi 0, %s499
      %s521 = sphi 0, %s523
      %s524 = sphi 0, %s521
      %s525 = sphi 0, %s524
      %s541 = sphi 0, %s525
      %s547 = sphi 0, %s549
      %s550 = sphi 0, %s547
      %s551 = sphi 0, %s550
      %s567 = sphi 0, %s551
      %s573 = sphi 0, %s575
      %s576 = sphi 0, %s573
      %s577 = sphi 0, %s576
      %s593 = sphi 0, %s577
      %s599 = sphi 0, %s601
      %s602 = sphi 0, %s599
      %s603 = sphi 0, %s602
      %s619 = sphi 0, %s603
      %s625 = sphi 0, %s627
      %s628 = sphi 0, %s625
      %s629 = sphi 0, %s628
      %s645 = sphi 0, %s629
    $region4: #{tpu_custom_call.1} parent=1 // loop_header_branch
      %34 = sbr.rel (%p32) target = $region8
    $region5: #{tpu_custom_call.1} parent=1 // loop_body
      %s36 = ssub.s32 %s31, 1
      %s37 = ssub.s32 %s31, 2
      %s44 = sadd.s32 1, %s39
      %p45 = scmp.ge.s32.totalorder %s44, 2
      %s46 = scalar_select %p45, 0, %s44
      %s47 = sadd.s32 1, %s38
      %s48 = scalar_select %p45, %s47, %s38
      %p49 = scmp.ge.s32.totalorder %s48, 1
      %s50 = scalar_select %p49, 0, %s48
      %s51 = ssub.s32 %s38, %s50
      %p52 = scmp.eq.s32.totalorder %s51, 0
      %s54 = sadd.s32 %s53, 1
      %s55 = scalar_select %p52, %s53, %s54
      %p58 = pneg %p52
      %p59 = scmp.eq.s32.totalorder %s31, 1
      %p60 = por %p58, %p59
      %p61 = scmp.ne.s32.totalorder %s53, %s56
      %p62 = scmp.eq.s32.totalorder %s31, 0
      %p63 = por %p61, %p62
      %p64 = scmp.ne.s32.totalorder %s53, %s56
      %p65 = scmp.eq.s32.totalorder %s36, 1
      %p66 = por %p64, %p65
      %p67 = scmp.ne.s32.totalorder %s56, %s57
      %p68 = scmp.eq.s32.totalorder %s36, 0
      %p69 = por %p67, %p68
      %p70 = scmp.ne.s32.totalorder %s56, %s57
      %p71 = scmp.eq.s32.totalorder %s37, 1
      %p72 = por %p70, %p71
      %p74 = scmp.ne.s32.totalorder %s57, %s73
      %p75 = scmp.eq.s32.totalorder %s37, 0
      %p76 = por %p74, %p75
      %s77 = ssub.s32 %s38, %s50
      %p78 = scmp.eq.s32.totalorder %s77, 0
      %s80 = sadd.s32 %s79, 1
      %s81 = scalar_select %p78, %s79, %s80
      %p84 = pneg %p78
      %p85 = scmp.eq.s32.totalorder %s31, 1
      %p86 = por %p84, %p85
      %p87 = scmp.ne.s32.totalorder %s79, %s82
      %p88 = scmp.eq.s32.totalorder %s31, 0
      %p89 = por %p87, %p88
      %p90 = scmp.ne.s32.totalorder %s79, %s82
      %p91 = scmp.eq.s32.totalorder %s36, 1
      %p92 = por %p90, %p91
      %p93 = scmp.ne.s32.totalorder %s82, %s83
      %p94 = scmp.eq.s32.totalorder %s36, 0
      %p95 = por %p93, %p94
      %p96 = scmp.ne.s32.totalorder %s82, %s83
      %p97 = scmp.eq.s32.totalorder %s37, 1
      %p98 = por %p96, %p97
      %p100 = scmp.ne.s32.totalorder %s83, %s99
      %p101 = scmp.eq.s32.totalorder %s37, 0
      %p102 = por %p100, %p101
      %s103 = ssub.s32 %s39, %s46
      %p104 = scmp.eq.s32.totalorder %s103, 0
      %s106 = sadd.s32 %s105, 1
      %s107 = scalar_select %p104, %s105, %s106
      %p110 = pneg %p104
      %p111 = scmp.eq.s32.totalorder %s31, 1
      %p112 = por %p110, %p111
      %p113 = scmp.ne.s32.totalorder %s105, %s108
      %p114 = scmp.eq.s32.totalorder %s31, 0
      %p115 = por %p113, %p114
      %p116 = scmp.ne.s32.totalorder %s105, %s108
      %p117 = scmp.eq.s32.totalorder %s36, 1
      %p118 = por %p116, %p117
      %p119 = scmp.ne.s32.totalorder %s108, %s109
      %p120 = scmp.eq.s32.totalorder %s36, 0
      %p121 = por %p119, %p120
      %p122 = scmp.ne.s32.totalorder %s108, %s109
      %p123 = scmp.eq.s32.totalorder %s37, 1
      %p124 = por %p122, %p123
      %p126 = scmp.ne.s32.totalorder %s109, %s125
      %p127 = scmp.eq.s32.totalorder %s37, 0
      %p128 = por %p126, %p127
      %s129 = ssub.s32 %s39, %s46
      %p130 = scmp.eq.s32.totalorder %s129, 0
      %s132 = sadd.s32 %s131, 1
      %s133 = scalar_select %p130, %s131, %s132
      %p136 = pneg %p130
      %p137 = scmp.eq.s32.totalorder %s31, 1
      %p138 = por %p136, %p137
      %p139 = scmp.ne.s32.totalorder %s131, %s134
      %p140 = scmp.eq.s32.totalorder %s31, 0
      %p141 = por %p139, %p140
      %p142 = scmp.ne.s32.totalorder %s131, %s134
      %p143 = scmp.eq.s32.totalorder %s36, 1
      %p144 = por %p142, %p143
      %p145 = scmp.ne.s32.totalorder %s134, %s135
      %p146 = scmp.eq.s32.totalorder %s36, 0
      %p147 = por %p145, %p146
      %p148 = scmp.ne.s32.totalorder %s134, %s135
      %p149 = scmp.eq.s32.totalorder %s37, 1
      %p150 = por %p148, %p149
      %p152 = scmp.ne.s32.totalorder %s135, %s151
      %p153 = scmp.eq.s32.totalorder %s37, 0
      %p154 = por %p152, %p153
      %s155 = ssub.s32 %s39, %s46
      %p156 = scmp.eq.s32.totalorder %s155, 0
      %s158 = sadd.s32 %s157, 1
      %s159 = scalar_select %p156, %s157, %s158
      %p162 = pneg %p156
      %p163 = scmp.eq.s32.totalorder %s31, 1
      %p164 = por %p162, %p163
      %p165 = scmp.ne.s32.totalorder %s157, %s160
      %p166 = scmp.eq.s32.totalorder %s31, 0
      %p167 = por %p165, %p166
      %p168 = scmp.ne.s32.totalorder %s157, %s160
      %p169 = scmp.eq.s32.totalorder %s36, 1
      %p170 = por %p168, %p169
      %p171 = scmp.ne.s32.totalorder %s160, %s161
      %p172 = scmp.eq.s32.totalorder %s36, 0
      %p173 = por %p171, %p172
      %p174 = scmp.ne.s32.totalorder %s160, %s161
      %p175 = scmp.eq.s32.totalorder %s37, 1
      %p176 = por %p174, %p175
      %p178 = scmp.ne.s32.totalorder %s161, %s177
      %p179 = scmp.eq.s32.totalorder %s37, 0
      %p180 = por %p178, %p179
      %s181 = ssub.s32 %s39, %s46
      %p182 = scmp.eq.s32.totalorder %s181, 0
      %s184 = sadd.s32 %s183, 1
      %s185 = scalar_select %p182, %s183, %s184
      %p188 = pneg %p182
      %p189 = scmp.eq.s32.totalorder %s31, 1
      %p190 = por %p188, %p189
      %p191 = scmp.ne.s32.totalorder %s183, %s186
      %p192 = scmp.eq.s32.totalorder %s31, 0
      %p193 = por %p191, %p192
      %p194 = scmp.ne.s32.totalorder %s183, %s186
      %p195 = scmp.eq.s32.totalorder %s36, 1
      %p196 = por %p194, %p195
      %p197 = scmp.ne.s32.totalorder %s186, %s187
      %p198 = scmp.eq.s32.totalorder %s36, 0
      %p199 = por %p197, %p198
      %p200 = scmp.ne.s32.totalorder %s186, %s187
      %p201 = scmp.eq.s32.totalorder %s37, 1
      %p202 = por %p200, %p201
      %p204 = scmp.ne.s32.totalorder %s187, %s203
      %p205 = scmp.eq.s32.totalorder %s37, 0
      %p206 = por %p204, %p205
      %s207 = ssub.s32 %s39, %s46
      %p208 = scmp.eq.s32.totalorder %s207, 0
      %s210 = sadd.s32 %s209, 1
      %s211 = scalar_select %p208, %s209, %s210
      %p214 = pneg %p208
      %p215 = scmp.eq.s32.totalorder %s31, 1
      %p216 = por %p214, %p215
      %p217 = scmp.ne.s32.totalorder %s209, %s212
      %p218 = scmp.eq.s32.totalorder %s31, 0
      %p219 = por %p217, %p218
      %p220 = scmp.ne.s32.totalorder %s209, %s212
      %p221 = scmp.eq.s32.totalorder %s36, 1
      %p222 = por %p220, %p221
      %p223 = scmp.ne.s32.totalorder %s212, %s213
      %p224 = scmp.eq.s32.totalorder %s36, 0
      %p225 = por %p223, %p224
      %p226 = scmp.ne.s32.totalorder %s212, %s213
      %p227 = scmp.eq.s32.totalorder %s37, 1
      %p228 = por %p226, %p227
      %p230 = scmp.ne.s32.totalorder %s213, %s229
      %p231 = scmp.eq.s32.totalorder %s37, 0
      %p232 = por %p230, %p231
      %s233 = ssub.s32 %s39, %s46
      %p234 = scmp.eq.s32.totalorder %s233, 0
      %s236 = sadd.s32 %s235, 1
      %s237 = scalar_select %p234, %s235, %s236
      %p240 = pneg %p234
      %p241 = scmp.eq.s32.totalorder %s31, 1
      %p242 = por %p240, %p241
      %p243 = scmp.ne.s32.totalorder %s235, %s238
      %p244 = scmp.eq.s32.totalorder %s31, 0
      %p245 = por %p243, %p244
      %p246 = scmp.ne.s32.totalorder %s235, %s238
      %p247 = scmp.eq.s32.totalorder %s36, 1
      %p248 = por %p246, %p247
      %p249 = scmp.ne.s32.totalorder %s238, %s239
      %p250 = scmp.eq.s32.totalorder %s36, 0
      %p251 = por %p249, %p250
      %p252 = scmp.ne.s32.totalorder %s238, %s239
      %p253 = scmp.eq.s32.totalorder %s37, 1
      %p254 = por %p252, %p253
      %p256 = scmp.ne.s32.totalorder %s239, %s255
      %p257 = scmp.eq.s32.totalorder %s37, 0
      %p258 = por %p256, %p257
      %s259 = ssub.s32 %s39, %s46
      %p260 = scmp.eq.s32.totalorder %s259, 0
      %s262 = sadd.s32 %s261, 1
      %s263 = scalar_select %p260, %s261, %s262
      %p266 = pneg %p260
      %p267 = scmp.eq.s32.totalorder %s31, 1
      %p268 = por %p266, %p267
      %p269 = scmp.ne.s32.totalorder %s261, %s264
      %p270 = scmp.eq.s32.totalorder %s31, 0
      %p271 = por %p269, %p270
      %p272 = scmp.ne.s32.totalorder %s261, %s264
      %p273 = scmp.eq.s32.totalorder %s36, 1
      %p274 = por %p272, %p273
      %p275 = scmp.ne.s32.totalorder %s264, %s265
      %p276 = scmp.eq.s32.totalorder %s36, 0
      %p277 = por %p275, %p276
      %p278 = scmp.ne.s32.totalorder %s264, %s265
      %p279 = scmp.eq.s32.totalorder %s37, 1
      %p280 = por %p278, %p279
      %p282 = scmp.ne.s32.totalorder %s265, %s281
      %p283 = scmp.eq.s32.totalorder %s37, 0
      %p284 = por %p282, %p283
      %s285 = ssub.s32 %s39, %s46
      %p286 = scmp.eq.s32.totalorder %s285, 0
      %s288 = sadd.s32 %s287, 1
      %s289 = scalar_select %p286, %s287, %s288
      %p292 = pneg %p286
      %p293 = scmp.eq.s32.totalorder %s31, 1
      %p294 = por %p292, %p293
      %p295 = scmp.ne.s32.totalorder %s287, %s290
      %p296 = scmp.eq.s32.totalorder %s31, 0
      %p297 = por %p295, %p296
      %p298 = scmp.ne.s32.totalorder %s287, %s290
      %p299 = scmp.eq.s32.totalorder %s36, 1
      %p300 = por %p298, %p299
      %p301 = scmp.ne.s32.totalorder %s290, %s291
      %p302 = scmp.eq.s32.totalorder %s36, 0
      %p303 = por %p301, %p302
      %p304 = scmp.ne.s32.totalorder %s290, %s291
      %p305 = scmp.eq.s32.totalorder %s37, 1
      %p306 = por %p304, %p305
      %p308 = scmp.ne.s32.totalorder %s291, %s307
      %p309 = scmp.eq.s32.totalorder %s37, 0
      %p310 = por %p308, %p309
      %s311 = ssub.s32 %s39, %s46
      %p312 = scmp.eq.s32.totalorder %s311, 0
      %s314 = sadd.s32 %s313, 1
      %s315 = scalar_select %p312, %s313, %s314
      %p318 = pneg %p312
      %p319 = scmp.eq.s32.totalorder %s31, 1
      %p320 = por %p318, %p319
      %p321 = scmp.ne.s32.totalorder %s313, %s316
      %p322 = scmp.eq.s32.totalorder %s31, 0
      %p323 = por %p321, %p322
      %p324 = scmp.ne.s32.totalorder %s313, %s316
      %p325 = scmp.eq.s32.totalorder %s36, 1
      %p326 = por %p324, %p325
      %p327 = scmp.ne.s32.totalorder %s316, %s317
      %p328 = scmp.eq.s32.totalorder %s36, 0
      %p329 = por %p327, %p328
      %p330 = scmp.ne.s32.totalorder %s316, %s317
      %p331 = scmp.eq.s32.totalorder %s37, 1
      %p332 = por %p330, %p331
      %p334 = scmp.ne.s32.totalorder %s317, %s333
      %p335 = scmp.eq.s32.totalorder %s37, 0
      %p336 = por %p334, %p335
      %s337 = ssub.s32 %s39, %s46
      %p338 = scmp.eq.s32.totalorder %s337, 0
      %s340 = sadd.s32 %s339, 1
      %s341 = scalar_select %p338, %s339, %s340
      %p344 = pneg %p338
      %p345 = scmp.eq.s32.totalorder %s31, 1
      %p346 = por %p344, %p345
      %p347 = scmp.ne.s32.totalorder %s339, %s342
      %p348 = scmp.eq.s32.totalorder %s31, 0
      %p349 = por %p347, %p348
      %p350 = scmp.ne.s32.totalorder %s339, %s342
      %p351 = scmp.eq.s32.totalorder %s36, 1
      %p352 = por %p350, %p351
      %p353 = scmp.ne.s32.totalorder %s342, %s343
      %p354 = scmp.eq.s32.totalorder %s36, 0
      %p355 = por %p353, %p354
      %p356 = scmp.ne.s32.totalorder %s342, %s343
      %p357 = scmp.eq.s32.totalorder %s37, 1
      %p358 = por %p356, %p357
      %p360 = scmp.ne.s32.totalorder %s343, %s359
      %p361 = scmp.eq.s32.totalorder %s37, 0
      %p362 = por %p360, %p361
      %s363 = ssub.s32 %s39, %s46
      %p364 = scmp.eq.s32.totalorder %s363, 0
      %s366 = sadd.s32 %s365, 1
      %s367 = scalar_select %p364, %s365, %s366
      %p370 = pneg %p364
      %p371 = scmp.eq.s32.totalorder %s31, 1
      %p372 = por %p370, %p371
      %p373 = scmp.ne.s32.totalorder %s365, %s368
      %p374 = scmp.eq.s32.totalorder %s31, 0
      %p375 = por %p373, %p374
      %p376 = scmp.ne.s32.totalorder %s365, %s368
      %p377 = scmp.eq.s32.totalorder %s36, 1
      %p378 = por %p376, %p377
      %p379 = scmp.ne.s32.totalorder %s368, %s369
      %p380 = scmp.eq.s32.totalorder %s36, 0
      %p381 = por %p379, %p380
      %p382 = scmp.ne.s32.totalorder %s368, %s369
      %p383 = scmp.eq.s32.totalorder %s37, 1
      %p384 = por %p382, %p383
      %p386 = scmp.ne.s32.totalorder %s369, %s385
      %p387 = scmp.eq.s32.totalorder %s37, 0
      %p388 = por %p386, %p387
      %s389 = ssub.s32 %s39, %s46
      %p390 = scmp.eq.s32.totalorder %s389, 0
      %s392 = sadd.s32 %s391, 1
      %s393 = scalar_select %p390, %s391, %s392
      %p396 = pneg %p390
      %p397 = scmp.eq.s32.totalorder %s31, 1
      %p398 = por %p396, %p397
      %p399 = scmp.ne.s32.totalorder %s391, %s394
      %p400 = scmp.eq.s32.totalorder %s31, 0
      %p401 = por %p399, %p400
      %p402 = scmp.ne.s32.totalorder %s391, %s394
      %p403 = scmp.eq.s32.totalorder %s36, 1
      %p404 = por %p402, %p403
      %p405 = scmp.ne.s32.totalorder %s394, %s395
      %p406 = scmp.eq.s32.totalorder %s36, 0
      %p407 = por %p405, %p406
      %p408 = scmp.ne.s32.totalorder %s394, %s395
      %p409 = scmp.eq.s32.totalorder %s37, 1
      %p410 = por %p408, %p409
      %p412 = scmp.ne.s32.totalorder %s395, %s411
      %p413 = scmp.eq.s32.totalorder %s37, 0
      %p414 = por %p412, %p413
      %s415 = ssub.s32 %s39, %s46
      %p416 = scmp.eq.s32.totalorder %s415, 0
      %s418 = sadd.s32 %s417, 1
      %s419 = scalar_select %p416, %s417, %s418
      %p422 = pneg %p416
      %p423 = scmp.eq.s32.totalorder %s31, 1
      %p424 = por %p422, %p423
      %p425 = scmp.ne.s32.totalorder %s417, %s420
      %p426 = scmp.eq.s32.totalorder %s31, 0
      %p427 = por %p425, %p426
      %p428 = scmp.ne.s32.totalorder %s417, %s420
      %p429 = scmp.eq.s32.totalorder %s36, 1
      %p430 = por %p428, %p429
      %p431 = scmp.ne.s32.totalorder %s420, %s421
      %p432 = scmp.eq.s32.totalorder %s36, 0
      %p433 = por %p431, %p432
      %p434 = scmp.ne.s32.totalorder %s420, %s421
      %p435 = scmp.eq.s32.totalorder %s37, 1
      %p436 = por %p434, %p435
      %p438 = scmp.ne.s32.totalorder %s421, %s437
      %p439 = scmp.eq.s32.totalorder %s37, 0
      %p440 = por %p438, %p439
      %s441 = ssub.s32 %s39, %s46
      %p442 = scmp.eq.s32.totalorder %s441, 0
      %s444 = sadd.s32 %s443, 1
      %s445 = scalar_select %p442, %s443, %s444
      %p448 = pneg %p442
      %p449 = scmp.eq.s32.totalorder %s31, 1
      %p450 = por %p448, %p449
      %p451 = scmp.ne.s32.totalorder %s443, %s446
      %p452 = scmp.eq.s32.totalorder %s31, 0
      %p453 = por %p451, %p452
      %p454 = scmp.ne.s32.totalorder %s443, %s446
      %p455 = scmp.eq.s32.totalorder %s36, 1
      %p456 = por %p454, %p455
      %p457 = scmp.ne.s32.totalorder %s446, %s447
      %p458 = scmp.eq.s32.totalorder %s36, 0
      %p459 = por %p457, %p458
      %p460 = scmp.ne.s32.totalorder %s446, %s447
      %p461 = scmp.eq.s32.totalorder %s37, 1
      %p462 = por %p460, %p461
      %p464 = scmp.ne.s32.totalorder %s447, %s463
      %p465 = scmp.eq.s32.totalorder %s37, 0
      %p466 = por %p464, %p465
      %s467 = ssub.s32 %s39, %s46
      %p468 = scmp.eq.s32.totalorder %s467, 0
      %s470 = sadd.s32 %s469, 1
      %s471 = scalar_select %p468, %s469, %s470
      %p474 = pneg %p468
      %p475 = scmp.eq.s32.totalorder %s31, 1
      %p476 = por %p474, %p475
      %p477 = scmp.ne.s32.totalorder %s469, %s472
      %p478 = scmp.eq.s32.totalorder %s31, 0
      %p479 = por %p477, %p478
      %p480 = scmp.ne.s32.totalorder %s469, %s472
      %p481 = scmp.eq.s32.totalorder %s36, 1
      %p482 = por %p480, %p481
      %p483 = scmp.ne.s32.totalorder %s472, %s473
      %p484 = scmp.eq.s32.totalorder %s36, 0
      %p485 = por %p483, %p484
      %p486 = scmp.ne.s32.totalorder %s472, %s473
      %p487 = scmp.eq.s32.totalorder %s37, 1
      %p488 = por %p486, %p487
      %p490 = scmp.ne.s32.totalorder %s473, %s489
      %p491 = scmp.eq.s32.totalorder %s37, 0
      %p492 = por %p490, %p491
      %s493 = ssub.s32 %s39, %s46
      %p494 = scmp.eq.s32.totalorder %s493, 0
      %s496 = sadd.s32 %s495, 1
      %s497 = scalar_select %p494, %s495, %s496
      %p500 = pneg %p494
      %p501 = scmp.eq.s32.totalorder %s31, 1
      %p502 = por %p500, %p501
      %p503 = scmp.ne.s32.totalorder %s495, %s498
      %p504 = scmp.eq.s32.totalorder %s31, 0
      %p505 = por %p503, %p504
      %p506 = scmp.ne.s32.totalorder %s495, %s498
      %p507 = scmp.eq.s32.totalorder %s36, 1
      %p508 = por %p506, %p507
      %p509 = scmp.ne.s32.totalorder %s498, %s499
      %p510 = scmp.eq.s32.totalorder %s36, 0
      %p511 = por %p509, %p510
      %p512 = scmp.ne.s32.totalorder %s498, %s499
      %p513 = scmp.eq.s32.totalorder %s37, 1
      %p514 = por %p512, %p513
      %p516 = scmp.ne.s32.totalorder %s499, %s515
      %p517 = scmp.eq.s32.totalorder %s37, 0
      %p518 = por %p516, %p517
      %s519 = ssub.s32 %s39, %s46
      %p520 = scmp.eq.s32.totalorder %s519, 0
      %s522 = sadd.s32 %s521, 1
      %s523 = scalar_select %p520, %s521, %s522
      %p526 = pneg %p520
      %p527 = scmp.eq.s32.totalorder %s31, 1
      %p528 = por %p526, %p527
      %p529 = scmp.ne.s32.totalorder %s521, %s524
      %p530 = scmp.eq.s32.totalorder %s31, 0
      %p531 = por %p529, %p530
      %p532 = scmp.ne.s32.totalorder %s521, %s524
      %p533 = scmp.eq.s32.totalorder %s36, 1
      %p534 = por %p532, %p533
      %p535 = scmp.ne.s32.totalorder %s524, %s525
      %p536 = scmp.eq.s32.totalorder %s36, 0
      %p537 = por %p535, %p536
      %p538 = scmp.ne.s32.totalorder %s524, %s525
      %p539 = scmp.eq.s32.totalorder %s37, 1
      %p540 = por %p538, %p539
      %p542 = scmp.ne.s32.totalorder %s525, %s541
      %p543 = scmp.eq.s32.totalorder %s37, 0
      %p544 = por %p542, %p543
      %s545 = ssub.s32 %s39, %s46
      %p546 = scmp.eq.s32.totalorder %s545, 0
      %s548 = sadd.s32 %s547, 1
      %s549 = scalar_select %p546, %s547, %s548
      %p552 = pneg %p546
      %p553 = scmp.eq.s32.totalorder %s31, 1
      %p554 = por %p552, %p553
      %p555 = scmp.ne.s32.totalorder %s547, %s550
      %p556 = scmp.eq.s32.totalorder %s31, 0
      %p557 = por %p555, %p556
      %p558 = scmp.ne.s32.totalorder %s547, %s550
      %p559 = scmp.eq.s32.totalorder %s36, 1
      %p560 = por %p558, %p559
      %p561 = scmp.ne.s32.totalorder %s550, %s551
      %p562 = scmp.eq.s32.totalorder %s36, 0
      %p563 = por %p561, %p562
      %p564 = scmp.ne.s32.totalorder %s550, %s551
      %p565 = scmp.eq.s32.totalorder %s37, 1
      %p566 = por %p564, %p565
      %p568 = scmp.ne.s32.totalorder %s551, %s567
      %p569 = scmp.eq.s32.totalorder %s37, 0
      %p570 = por %p568, %p569
      %s571 = ssub.s32 %s39, %s46
      %p572 = scmp.eq.s32.totalorder %s571, 0
      %s574 = sadd.s32 %s573, 1
      %s575 = scalar_select %p572, %s573, %s574
      %p578 = pneg %p572
      %p579 = scmp.eq.s32.totalorder %s31, 1
      %p580 = por %p578, %p579
      %p581 = scmp.ne.s32.totalorder %s573, %s576
      %p582 = scmp.eq.s32.totalorder %s31, 0
      %p583 = por %p581, %p582
      %p584 = scmp.ne.s32.totalorder %s573, %s576
      %p585 = scmp.eq.s32.totalorder %s36, 1
      %p586 = por %p584, %p585
      %p587 = scmp.ne.s32.totalorder %s576, %s577
      %p588 = scmp.eq.s32.totalorder %s36, 0
      %p589 = por %p587, %p588
      %p590 = scmp.ne.s32.totalorder %s576, %s577
      %p591 = scmp.eq.s32.totalorder %s37, 1
      %p592 = por %p590, %p591
      %p594 = scmp.ne.s32.totalorder %s577, %s593
      %p595 = scmp.eq.s32.totalorder %s37, 0
      %p596 = por %p594, %p595
      %s597 = ssub.s32 %s39, %s46
      %p598 = scmp.eq.s32.totalorder %s597, 0
      %s600 = sadd.s32 %s599, 1
      %s601 = scalar_select %p598, %s599, %s600
      %p604 = pneg %p598
      %p605 = scmp.eq.s32.totalorder %s31, 1
      %p606 = por %p604, %p605
      %p607 = scmp.ne.s32.totalorder %s599, %s602
      %p608 = scmp.eq.s32.totalorder %s31, 0
      %p609 = por %p607, %p608
      %p610 = scmp.ne.s32.totalorder %s599, %s602
      %p611 = scmp.eq.s32.totalorder %s36, 1
      %p612 = por %p610, %p611
      %p613 = scmp.ne.s32.totalorder %s602, %s603
      %p614 = scmp.eq.s32.totalorder %s36, 0
      %p615 = por %p613, %p614
      %p616 = scmp.ne.s32.totalorder %s602, %s603
      %p617 = scmp.eq.s32.totalorder %s37, 1
      %p618 = por %p616, %p617
      %p620 = scmp.ne.s32.totalorder %s603, %s619
      %p621 = scmp.eq.s32.totalorder %s37, 0
      %p622 = por %p620, %p621
      %s623 = ssub.s32 %s38, %s50
      %p624 = scmp.eq.s32.totalorder %s623, 0
      %s626 = sadd.s32 %s625, 1
      %s627 = scalar_select %p624, %s625, %s626
      %p630 = pneg %p624
      %p631 = scmp.eq.s32.totalorder %s31, 1
      %p632 = por %p630, %p631
      %p633 = scmp.ne.s32.totalorder %s625, %s628
      %p634 = scmp.eq.s32.totalorder %s31, 0
      %p635 = por %p633, %p634
      %p636 = scmp.ne.s32.totalorder %s625, %s628
      %p637 = scmp.eq.s32.totalorder %s36, 1
      %p638 = por %p636, %p637
      %p639 = scmp.ne.s32.totalorder %s628, %s629
      %p640 = scmp.eq.s32.totalorder %s36, 0
      %p641 = por %p639, %p640
      %p642 = scmp.ne.s32.totalorder %s628, %s629
      %p643 = scmp.eq.s32.totalorder %s37, 1
      %p644 = por %p642, %p643
      %p646 = scmp.ne.s32.totalorder %s629, %s645
      %p647 = scmp.eq.s32.totalorder %s37, 0
      %p648 = por %p646, %p647
      %p649 = scmp.le.s32.totalorder 1, %s31
      %p650 = scmp.lt.s32.totalorder %s31, 3
      %p651 = pnand %p649, %p650
      %p652 = pneg %p651
      // Predicated region
      $region9: #{tpu_custom_call.1} parent=5 // pred_check
        _
      $region10: #{tpu_custom_call.1} parent=5 // pred_check_branch
        %654 = sbr.rel (%p651) target = $region12
      $region11: #{tpu_custom_call.1} parent=5 // pred_region
        %s655 = ssub.s32 %s31, 1
        // Predicated region
        $region13: #{tpu_custom_call.1} parent=11 // pred_check
          %p656 = pneg %p69
        $region14: #{tpu_custom_call.1} parent=11 // pred_check_branch
          %658 = sbr.rel (%p656) target = $region16
        $region15: #{tpu_custom_call.1} parent=11 // pred_region
          %s659 = smul.u32 2, %s40
          %s661 = ssub.s32 256, 256
          %662 = vsyncadd [#allocation4], %s661
          %s663 = smul.addr %s659, 128
          %s664 = scalar_lea.hbm %s0, %s663
          %s665 = sshll.u32 [#allocation3], 4
          %s666 = int_to_ptr.vmem [resolvable:$true] %s665
          %671 = dma.hbm_to_vmem [thread:$0]  %s664, 256, %s666, [#allocation4], 128, 128, 8
        $region16: #{tpu_custom_call.1} parent=11 // pred_fallthru
          _
        // Predicated region
        $region17: #{tpu_custom_call.1} parent=11 // pred_check
          %p672 = pneg %p95
        $region18: #{tpu_custom_call.1} parent=11 // pred_check_branch
          %674 = sbr.rel (%p672) target = $region20
        $region19: #{tpu_custom_call.1} parent=11 // pred_region
          %s675 = smul.u32 2, %s40
          %s677 = ssub.s32 256, 256
          %678 = vsyncadd [#allocation7], %s677
          %s679 = smul.addr %s675, 2
          %s680 = smul.addr %s679, 64
          %s681 = scalar_lea.hbm %s1, %s680
          %s682 = sshll.u32 [#allocation6], 4
          %s683 = int_to_ptr.vmem [resolvable:$true] %s682
          %688 = dma.hbm_to_vmem [thread:$0]  %s681, 256, %s683, [#allocation7], 64, 64, 4
        $region20: #{tpu_custom_call.1} parent=11 // pred_fallthru
          _
      $region12: #{tpu_custom_call.1} parent=5 // pred_fallthru
        _
      %p689 = scmp.lt.s32.totalorder %s31, 2
      // Predicated region
      $region21: #{tpu_custom_call.1} parent=5 // pred_check
        %p690 = pneg %p689
      $region22: #{tpu_custom_call.1} parent=5 // pred_check_branch
        %692 = sbr.rel (%p690) target = $region24
      $region23: #{tpu_custom_call.1} parent=5 // pred_region
        // Predicated region
        $region25: #{tpu_custom_call.1} parent=23 // pred_check
          %p693 = pneg %p115
        $region26: #{tpu_custom_call.1} parent=23 // pred_check_branch
          %695 = sbr.rel (%p693) target = $region28
        $region27: #{tpu_custom_call.1} parent=23 // pred_region
          %s696 = sand.u32 %s31, 1
          %s697 = scalar_lea.sflag [#allocation4], %s696
          %s698 = sand.u32 %s105, 1
          %s699 = smul.addr %s698, 192
          %s700 = scalar_lea.vmem [#allocation8], %s699
          %s702 = ssub.s32 3072, 3072
          %703 = vsyncadd %s697, %s702
          %s704 = smul.addr %s39, 48
          %s705 = smul.addr %s704, 64
          %s706 = scalar_lea.hbm %s2, %s705
          %s707 = sshll.u32 %s700, 4
          %s708 = int_to_ptr.vmem [resolvable:$true] %s707
          %713 = dma.hbm_to_vmem [thread:$0]  %s706, 3072, %s708, %s697, 192, 192, 12
        $region28: #{tpu_custom_call.1} parent=23 // pred_fallthru
          _
        // Predicated region
        $region29: #{tpu_custom_call.1} parent=23 // pred_check
          %p714 = pneg %p141
        $region30: #{tpu_custom_call.1} parent=23 // pred_check_branch
          %716 = sbr.rel (%p714) target = $region32
        $region31: #{tpu_custom_call.1} parent=23 // pred_region
          %s717 = sand.u32 %s31, 1
          %s718 = scalar_lea.sflag [#allocation4], %s717
          %s719 = sand.u32 %s131, 1
          %s720 = smul.addr %s719, 3
          %s721 = scalar_lea.vmem [#allocation9], %s720
          %s723 = ssub.s32 48, 48
          %724 = vsyncadd %s718, %s723
          %s725 = smul.addr %s39, 3
          %s726 = smul.addr %s725, 16
          %s727 = scalar_lea.hbm %s3, %s726
          %s729 = sshll.u32 %s721, 4
          %s730 = int_to_ptr.vmem [resolvable:$true] %s729
          %732 = dma.hbm_to_vmem [thread:$0]  %s727, 48, %s730, %s718
        $region32: #{tpu_custom_call.1} parent=23 // pred_fallthru
          _
        // Predicated region
        $region33: #{tpu_custom_call.1} parent=23 // pred_check
          %p733 = pneg %p167
        $region34: #{tpu_custom_call.1} parent=23 // pred_check_branch
          %735 = sbr.rel (%p733) target = $region36
        $region35: #{tpu_custom_call.1} parent=23 // pred_region
          %s736 = sand.u32 %s31, 1
          %s737 = scalar_lea.sflag [#allocation4], %s736
          %s738 = sand.u32 %s157, 1
          %s739 = smul.addr %s738, 64
          %s740 = scalar_lea.vmem [#allocation10], %s739
          %s742 = ssub.s32 1024, 1024
          %743 = vsyncadd %s737, %s742
          %s744 = smul.addr %s39, 16
          %s745 = smul.addr %s744, 64
          %s746 = scalar_lea.hbm %s4, %s745
          %s747 = sshll.u32 %s740, 4
          %s748 = int_to_ptr.vmem [resolvable:$true] %s747
          %753 = dma.hbm_to_vmem [thread:$0]  %s746, 1024, %s748, %s737, 64, 64, 4
        $region36: #{tpu_custom_call.1} parent=23 // pred_fallthru
          _
        // Predicated region
        $region37: #{tpu_custom_call.1} parent=23 // pred_check
          %p754 = pneg %p193
        $region38: #{tpu_custom_call.1} parent=23 // pred_check_branch
          %756 = sbr.rel (%p754) target = $region40
        $region39: #{tpu_custom_call.1} parent=23 // pred_region
          %s757 = sand.u32 %s31, 1
          %s758 = scalar_lea.sflag [#allocation4], %s757
          %s759 = sand.u32 %s183, 1
          %s760 = scalar_lea.vmem [#allocation11], %s759
          %s762 = ssub.s32 16, 16
          %763 = vsyncadd %s758, %s762
          %s764 = smul.addr %s39, 16
          %s765 = scalar_lea.hbm %s5, %s764
          %s767 = sshll.u32 %s760, 4
          %s768 = int_to_ptr.vmem [resolvable:$true] %s767
          %770 = dma.hbm_to_vmem [thread:$0]  %s765, 16, %s768, %s758
        $region40: #{tpu_custom_call.1} parent=23 // pred_fallthru
          _
        // Predicated region
        $region41: #{tpu_custom_call.1} parent=23 // pred_check
          %p771 = pneg %p219
        $region42: #{tpu_custom_call.1} parent=23 // pred_check_branch
          %773 = sbr.rel (%p771) target = $region44
        $region43: #{tpu_custom_call.1} parent=23 // pred_region
          %s774 = sand.u32 %s31, 1
          %s775 = scalar_lea.sflag [#allocation4], %s774
          %s776 = sand.u32 %s209, 1
          %s777 = smul.addr %s776, 64
          %s778 = scalar_lea.vmem [#allocation12], %s777
          %s780 = ssub.s32 1024, 1024
          %781 = vsyncadd %s775, %s780
          %s782 = smul.addr %s39, 16
          %s783 = smul.addr %s782, 64
          %s784 = scalar_lea.hbm %s6, %s783
          %s785 = sshll.u32 %s778, 4
          %s786 = int_to_ptr.vmem [resolvable:$true] %s785
          %791 = dma.hbm_to_vmem [thread:$0]  %s784, 1024, %s786, %s775, 64, 64, 4
        $region44: #{tpu_custom_call.1} parent=23 // pred_fallthru
          _
        // Predicated region
        $region45: #{tpu_custom_call.1} parent=23 // pred_check
          %p792 = pneg %p245
        $region46: #{tpu_custom_call.1} parent=23 // pred_check_branch
          %794 = sbr.rel (%p792) target = $region48
        $region47: #{tpu_custom_call.1} parent=23 // pred_region
          %p795 = scmp.lt.s32.totalorder %s39, 1
          %s796 = scalar_select %p795, %s39, 1
          %s797 = scalar_lea.vmem %s7, %s796
        $region48: #{tpu_custom_call.1} parent=23 // pred_fallthru
          _
        // Predicated region
        $region49: #{tpu_custom_call.1} parent=23 // pred_check
          %p798 = pneg %p271
        $region50: #{tpu_custom_call.1} parent=23 // pred_check_branch
          %800 = sbr.rel (%p798) target = $region52
        $region51: #{tpu_custom_call.1} parent=23 // pred_region
          %s801 = sand.u32 %s31, 1
          %s802 = scalar_lea.sflag [#allocation4], %s801
          %s803 = sand.u32 %s261, 1
          %s804 = smul.addr %s803, 128
          %s805 = scalar_lea.vmem [#allocation13], %s804
          %s807 = ssub.s32 2048, 2048
          %808 = vsyncadd %s802, %s807
          %s809 = smul.addr %s39, 32
          %s810 = smul.addr %s809, 64
          %s811 = scalar_lea.hbm %s8, %s810
          %s812 = sshll.u32 %s805, 4
          %s813 = int_to_ptr.vmem [resolvable:$true] %s812
          %818 = dma.hbm_to_vmem [thread:$0]  %s811, 2048, %s813, %s802, 128, 128, 8
        $region52: #{tpu_custom_call.1} parent=23 // pred_fallthru
          _
        // Predicated region
        $region53: #{tpu_custom_call.1} parent=23 // pred_check
          %p819 = pneg %p297
        $region54: #{tpu_custom_call.1} parent=23 // pred_check_branch
          %821 = sbr.rel (%p819) target = $region56
        $region55: #{tpu_custom_call.1} parent=23 // pred_region
          %p822 = scmp.lt.s32.totalorder %s39, 1
          %s823 = scalar_select %p822, %s39, 1
          %s824 = smul.addr %s823, 2
          %s825 = scalar_lea.vmem %s9, %s824
        $region56: #{tpu_custom_call.1} parent=23 // pred_fallthru
          _
        // Predicated region
        $region57: #{tpu_custom_call.1} parent=23 // pred_check
          %p826 = pneg %p323
        $region58: #{tpu_custom_call.1} parent=23 // pred_check_branch
          %828 = sbr.rel (%p826) target = $region60
        $region59: #{tpu_custom_call.1} parent=23 // pred_region
          %s829 = sand.u32 %s31, 1
          %s830 = scalar_lea.sflag [#allocation4], %s829
          %s831 = sand.u32 %s313, 1
          %s832 = smul.addr %s831, 64
          %s833 = scalar_lea.vmem [#allocation14], %s832
          %s835 = ssub.s32 1024, 1024
          %836 = vsyncadd %s830, %s835
          %s837 = smul.addr %s39, 16
          %s838 = smul.addr %s837, 64
          %s839 = scalar_lea.hbm %s10, %s838
          %s840 = sshll.u32 %s833, 4
          %s841 = int_to_ptr.vmem [resolvable:$true] %s840
          %846 = dma.hbm_to_vmem [thread:$0]  %s839, 1024, %s841, %s830, 64, 64, 4
        $region60: #{tpu_custom_call.1} parent=23 // pred_fallthru
          _
        // Predicated region
        $region61: #{tpu_custom_call.1} parent=23 // pred_check
          %p847 = pneg %p349
        $region62: #{tpu_custom_call.1} parent=23 // pred_check_branch
          %849 = sbr.rel (%p847) target = $region64
        $region63: #{tpu_custom_call.1} parent=23 // pred_region
          %p850 = scmp.lt.s32.totalorder %s39, 1
          %s851 = scalar_select %p850, %s39, 1
          %s852 = scalar_lea.vmem %s11, %s851
        $region64: #{tpu_custom_call.1} parent=23 // pred_fallthru
          _
        // Predicated region
        $region65: #{tpu_custom_call.1} parent=23 // pred_check
          %p853 = pneg %p375
        $region66: #{tpu_custom_call.1} parent=23 // pred_check_branch
          %855 = sbr.rel (%p853) target = $region68
        $region67: #{tpu_custom_call.1} parent=23 // pred_region
          %s856 = sand.u32 %s31, 1
          %s857 = scalar_lea.sflag [#allocation4], %s856
          %s858 = sand.u32 %s365, 1
          %s859 = smul.addr %s858, 128
          %s860 = scalar_lea.vmem [#allocation15], %s859
          %s862 = ssub.s32 2048, 2048
          %863 = vsyncadd %s857, %s862
          %s864 = smul.addr %s39, 32
          %s865 = smul.addr %s864, 64
          %s866 = scalar_lea.hbm %s12, %s865
          %s867 = sshll.u32 %s860, 4
          %s868 = int_to_ptr.vmem [resolvable:$true] %s867
          %873 = dma.hbm_to_vmem [thread:$0]  %s866, 2048, %s868, %s857, 128, 128, 8
        $region68: #{tpu_custom_call.1} parent=23 // pred_fallthru
          _
        // Predicated region
        $region69: #{tpu_custom_call.1} parent=23 // pred_check
          %p874 = pneg %p401
        $region70: #{tpu_custom_call.1} parent=23 // pred_check_branch
          %876 = sbr.rel (%p874) target = $region72
        $region71: #{tpu_custom_call.1} parent=23 // pred_region
          %p877 = scmp.lt.s32.totalorder %s39, 1
          %s878 = scalar_select %p877, %s39, 1
          %s879 = smul.addr %s878, 2
          %s880 = scalar_lea.vmem %s13, %s879
        $region72: #{tpu_custom_call.1} parent=23 // pred_fallthru
          _
        // Predicated region
        $region73: #{tpu_custom_call.1} parent=23 // pred_check
          %p881 = pneg %p427
        $region74: #{tpu_custom_call.1} parent=23 // pred_check_branch
          %883 = sbr.rel (%p881) target = $region76
        $region75: #{tpu_custom_call.1} parent=23 // pred_region
          %s884 = sand.u32 %s31, 1
          %s885 = scalar_lea.sflag [#allocation4], %s884
          %s886 = sand.u32 %s417, 1
          %s887 = smul.addr %s886, 128
          %s888 = scalar_lea.vmem [#allocation16], %s887
          %s890 = ssub.s32 2048, 2048
          %891 = vsyncadd %s885, %s890
          %s892 = smul.addr %s39, 32
          %s893 = smul.addr %s892, 64
          %s894 = scalar_lea.hbm %s14, %s893
          %s895 = sshll.u32 %s888, 4
          %s896 = int_to_ptr.vmem [resolvable:$true] %s895
          %901 = dma.hbm_to_vmem [thread:$0]  %s894, 2048, %s896, %s885, 64, 64, 4
        $region76: #{tpu_custom_call.1} parent=23 // pred_fallthru
          _
        // Predicated region
        $region77: #{tpu_custom_call.1} parent=23 // pred_check
          %p902 = pneg %p453
        $region78: #{tpu_custom_call.1} parent=23 // pred_check_branch
          %904 = sbr.rel (%p902) target = $region80
        $region79: #{tpu_custom_call.1} parent=23 // pred_region
          %p905 = scmp.lt.s32.totalorder %s39, 1
          %s906 = scalar_select %p905, %s39, 1
          %s907 = scalar_lea.vmem %s15, %s906
        $region80: #{tpu_custom_call.1} parent=23 // pred_fallthru
          _
        // Predicated region
        $region81: #{tpu_custom_call.1} parent=23 // pred_check
          %p908 = pneg %p479
        $region82: #{tpu_custom_call.1} parent=23 // pred_check_branch
          %910 = sbr.rel (%p908) target = $region84
        $region83: #{tpu_custom_call.1} parent=23 // pred_region
          %p911 = scmp.lt.s32.totalorder %s39, 1
          %s912 = scalar_select %p911, %s39, 1
          %s913 = scalar_lea.vmem %s16, %s912
        $region84: #{tpu_custom_call.1} parent=23 // pred_fallthru
          _
        // Predicated region
        $region85: #{tpu_custom_call.1} parent=23 // pred_check
          %p914 = pneg %p505
        $region86: #{tpu_custom_call.1} parent=23 // pred_check_branch
          %916 = sbr.rel (%p914) target = $region88
        $region87: #{tpu_custom_call.1} parent=23 // pred_region
          %p917 = scmp.lt.s32.totalorder %s39, 1
          %s918 = scalar_select %p917, %s39, 1
          %s919 = scalar_lea.vmem %s17, %s918
        $region88: #{tpu_custom_call.1} parent=23 // pred_fallthru
          _
        // Predicated region
        $region89: #{tpu_custom_call.1} parent=23 // pred_check
          %p920 = pneg %p531
        $region90: #{tpu_custom_call.1} parent=23 // pred_check_branch
          %922 = sbr.rel (%p920) target = $region92
        $region91: #{tpu_custom_call.1} parent=23 // pred_region
          %p923 = scmp.lt.s32.totalorder %s39, 1
          %s924 = scalar_select %p923, %s39, 1
          %s925 = scalar_lea.vmem %s18, %s924
        $region92: #{tpu_custom_call.1} parent=23 // pred_fallthru
          _
        // Predicated region
        $region93: #{tpu_custom_call.1} parent=23 // pred_check
          %p926 = pneg %p557
        $region94: #{tpu_custom_call.1} parent=23 // pred_check_branch
          %928 = sbr.rel (%p926) target = $region96
        $region95: #{tpu_custom_call.1} parent=23 // pred_region
          %p929 = scmp.lt.s32.totalorder %s39, 1
          %s930 = scalar_select %p929, %s39, 1
          %s931 = scalar_lea.vmem %s19, %s930
        $region96: #{tpu_custom_call.1} parent=23 // pred_fallthru
          _
        // Predicated region
        $region97: #{tpu_custom_call.1} parent=23 // pred_check
          %p932 = pneg %p583
        $region98: #{tpu_custom_call.1} parent=23 // pred_check_branch
          %934 = sbr.rel (%p932) target = $region100
        $region99: #{tpu_custom_call.1} parent=23 // pred_region
          %p935 = scmp.lt.s32.totalorder %s39, 1
          %s936 = scalar_select %p935, %s39, 1
          %s937 = scalar_lea.vmem %s20, %s936
        $region100: #{tpu_custom_call.1} parent=23 // pred_fallthru
          _
        // Predicated region
        $region101: #{tpu_custom_call.1} parent=23 // pred_check
          %p938 = pneg %p609
        $region102: #{tpu_custom_call.1} parent=23 // pred_check_branch
          %940 = sbr.rel (%p938) target = $region104
        $region103: #{tpu_custom_call.1} parent=23 // pred_region
          %p941 = scmp.lt.s32.totalorder %s39, 1
          %s942 = scalar_select %p941, %s39, 1
          %s943 = scalar_lea.vmem %s21, %s942
        $region104: #{tpu_custom_call.1} parent=23 // pred_fallthru
          _
      $region24: #{tpu_custom_call.1} parent=5 // pred_fallthru
        _
      %p944 = scmp.le.s32.totalorder 1, %s31
      %p945 = scmp.lt.s32.totalorder %s31, 3
      %p946 = pnand %p944, %p945
      %p947 = pneg %p946
      // Predicated region
      $region105: #{tpu_custom_call.1} parent=5 // pred_check
        _
      $region106: #{tpu_custom_call.1} parent=5 // pred_check_branch
        %949 = sbr.rel (%p946) target = $region108
      $region107: #{tpu_custom_call.1} parent=5 // pred_region
        %s950 = ssub.s32 %s31, 1
        // Predicated region
        $region109: #{tpu_custom_call.1} parent=107 // pred_check
          %p951 = pneg %p69
        $region110: #{tpu_custom_call.1} parent=107 // pred_check_branch
          %953 = sbr.rel (%p951) target = $region112
        $region111: #{tpu_custom_call.1} parent=107 // pred_region
          %954 = dma.done [#allocation4], 256
        $region112: #{tpu_custom_call.1} parent=107 // pred_fallthru
          _
        // Predicated region
        $region113: #{tpu_custom_call.1} parent=107 // pred_check
          %p955 = pneg %p95
        $region114: #{tpu_custom_call.1} parent=107 // pred_check_branch
          %957 = sbr.rel (%p955) target = $region116
        $region115: #{tpu_custom_call.1} parent=107 // pred_region
          %958 = dma.done [#allocation7], 256
        $region116: #{tpu_custom_call.1} parent=107 // pred_fallthru
          _
        %s959 = sand.u32 %s36, 1
        %s960 = scalar_lea.sflag [#allocation4], %s959
        %s961 = sand.u32 %s108, 1
        %s962 = smul.addr %s961, 192
        %s963 = scalar_lea.vmem [#allocation8], %s962
        // Predicated region
        $region117: #{tpu_custom_call.1} parent=107 // pred_check
          %p964 = pneg %p121
        $region118: #{tpu_custom_call.1} parent=107 // pred_check_branch
          %966 = sbr.rel (%p964) target = $region120
        $region119: #{tpu_custom_call.1} parent=107 // pred_region
          %967 = dma.done %s960, 3072
        $region120: #{tpu_custom_call.1} parent=107 // pred_fallthru
          _
        %s968 = sand.u32 %s36, 1
        %s969 = scalar_lea.sflag [#allocation4], %s968
        %s970 = sand.u32 %s134, 1
        %s971 = smul.addr %s970, 3
        %s972 = scalar_lea.vmem [#allocation9], %s971
        // Predicated region
        $region121: #{tpu_custom_call.1} parent=107 // pred_check
          %p973 = pneg %p147
        $region122: #{tpu_custom_call.1} parent=107 // pred_check_branch
          %975 = sbr.rel (%p973) target = $region124
        $region123: #{tpu_custom_call.1} parent=107 // pred_region
          %976 = dma.done %s969, 48
        $region124: #{tpu_custom_call.1} parent=107 // pred_fallthru
          _
        %s977 = sand.u32 %s36, 1
        %s978 = scalar_lea.sflag [#allocation4], %s977
        %s979 = sand.u32 %s160, 1
        %s980 = smul.addr %s979, 64
        %s981 = scalar_lea.vmem [#allocation10], %s980
        // Predicated region
        $region125: #{tpu_custom_call.1} parent=107 // pred_check
          %p982 = pneg %p173
        $region126: #{tpu_custom_call.1} parent=107 // pred_check_branch
          %984 = sbr.rel (%p982) target = $region128
        $region127: #{tpu_custom_call.1} parent=107 // pred_region
          %985 = dma.done %s978, 1024
        $region128: #{tpu_custom_call.1} parent=107 // pred_fallthru
          _
        %s986 = sand.u32 %s36, 1
        %s987 = scalar_lea.sflag [#allocation4], %s986
        %s988 = sand.u32 %s186, 1
        %s989 = scalar_lea.vmem [#allocation11], %s988
        // Predicated region
        $region129: #{tpu_custom_call.1} parent=107 // pred_check
          %p990 = pneg %p199
        $region130: #{tpu_custom_call.1} parent=107 // pred_check_branch
          %992 = sbr.rel (%p990) target = $region132
        $region131: #{tpu_custom_call.1} parent=107 // pred_region
          %993 = dma.done %s987, 16
        $region132: #{tpu_custom_call.1} parent=107 // pred_fallthru
          _
        %s994 = sand.u32 %s36, 1
        %s995 = scalar_lea.sflag [#allocation4], %s994
        %s996 = sand.u32 %s212, 1
        %s997 = smul.addr %s996, 64
        %s998 = scalar_lea.vmem [#allocation12], %s997
        // Predicated region
        $region133: #{tpu_custom_call.1} parent=107 // pred_check
          %p999 = pneg %p225
        $region134: #{tpu_custom_call.1} parent=107 // pred_check_branch
          %1001 = sbr.rel (%p999) target = $region136
        $region135: #{tpu_custom_call.1} parent=107 // pred_region
          %1002 = dma.done %s995, 1024
        $region136: #{tpu_custom_call.1} parent=107 // pred_fallthru
          _
        %s1003 = sand.u32 %s36, 1
        %s1004 = scalar_lea.sflag [#allocation4], %s1003
        %s1005 = sand.u32 %s264, 1
        %s1006 = smul.addr %s1005, 128
        %s1007 = scalar_lea.vmem [#allocation13], %s1006
        // Predicated region
        $region137: #{tpu_custom_call.1} parent=107 // pred_check
          %p1008 = pneg %p277
        $region138: #{tpu_custom_call.1} parent=107 // pred_check_branch
          %1010 = sbr.rel (%p1008) target = $region140
        $region139: #{tpu_custom_call.1} parent=107 // pred_region
          %1011 = dma.done %s1004, 2048
        $region140: #{tpu_custom_call.1} parent=107 // pred_fallthru
          _
        %s1012 = sand.u32 %s36, 1
        %s1013 = scalar_lea.sflag [#allocation4], %s1012
        %s1014 = sand.u32 %s316, 1
        %s1015 = smul.addr %s1014, 64
        %s1016 = scalar_lea.vmem [#allocation14], %s1015
        // Predicated region
        $region141: #{tpu_custom_call.1} parent=107 // pred_check
          %p1017 = pneg %p329
        $region142: #{tpu_custom_call.1} parent=107 // pred_check_branch
          %1019 = sbr.rel (%p1017) target = $region144
        $region143: #{tpu_custom_call.1} parent=107 // pred_region
          %1020 = dma.done %s1013, 1024
        $region144: #{tpu_custom_call.1} parent=107 // pred_fallthru
          _
        %s1021 = sand.u32 %s36, 1
        %s1022 = scalar_lea.sflag [#allocation4], %s1021
        %s1023 = sand.u32 %s368, 1
        %s1024 = smul.addr %s1023, 128
        %s1025 = scalar_lea.vmem [#allocation15], %s1024
        // Predicated region
        $region145: #{tpu_custom_call.1} parent=107 // pred_check
          %p1026 = pneg %p381
        $region146: #{tpu_custom_call.1} parent=107 // pred_check_branch
          %1028 = sbr.rel (%p1026) target = $region148
        $region147: #{tpu_custom_call.1} parent=107 // pred_region
          %1029 = dma.done %s1022, 2048
        $region148: #{tpu_custom_call.1} parent=107 // pred_fallthru
          _
        %s1030 = sand.u32 %s36, 1
        %s1031 = scalar_lea.sflag [#allocation4], %s1030
        %s1032 = sand.u32 %s420, 1
        %s1033 = smul.addr %s1032, 128
        %s1034 = scalar_lea.vmem [#allocation16], %s1033
        // Predicated region
        $region149: #{tpu_custom_call.1} parent=107 // pred_check
          %p1035 = pneg %p433
        $region150: #{tpu_custom_call.1} parent=107 // pred_check_branch
          %1037 = sbr.rel (%p1035) target = $region152
        $region151: #{tpu_custom_call.1} parent=107 // pred_region
          %1038 = dma.done %s1031, 2048
        $region152: #{tpu_custom_call.1} parent=107 // pred_fallthru
          _
        %p1039 = pneg %p69
        %p1040 = pneg %p66
        %p1041 = pneg %p95
        %p1042 = pneg %p92
        %s1043 = sand.u32 %s36, 1
        %s1044 = scalar_lea.sflag [#allocation4], %s1043
        %s1045 = sand.u32 %s108, 1
        %s1046 = smul.addr %s1045, 192
        %s1047 = scalar_lea.vmem [#allocation8], %s1046
        %p1048 = pneg %p121
        %p1049 = pneg %p118
        %s1050 = sand.u32 %s36, 1
        %s1051 = scalar_lea.sflag [#allocation4], %s1050
        %s1052 = sand.u32 %s134, 1
        %s1053 = smul.addr %s1052, 3
        %s1054 = scalar_lea.vmem [#allocation9], %s1053
        %p1055 = pneg %p147
        %p1056 = pneg %p144
        %s1057 = sand.u32 %s36, 1
        %s1058 = scalar_lea.sflag [#allocation4], %s1057
        %s1059 = sand.u32 %s160, 1
        %s1060 = smul.addr %s1059, 64
        %s1061 = scalar_lea.vmem [#allocation10], %s1060
        %p1062 = pneg %p173
        %p1063 = pneg %p170
        %s1064 = sand.u32 %s36, 1
        %s1065 = scalar_lea.sflag [#allocation4], %s1064
        %s1066 = sand.u32 %s186, 1
        %s1067 = scalar_lea.vmem [#allocation11], %s1066
        %p1068 = pneg %p199
        %p1069 = pneg %p196
        %s1070 = sand.u32 %s36, 1
        %s1071 = scalar_lea.sflag [#allocation4], %s1070
        %s1072 = sand.u32 %s212, 1
        %s1073 = smul.addr %s1072, 64
        %s1074 = scalar_lea.vmem [#allocation12], %s1073
        %p1075 = pneg %p225
        %p1076 = pneg %p222
        %p1077 = scmp.lt.s32.totalorder %s41, 1
        %s1078 = scalar_select %p1077, %s41, 1
        %s1079 = scalar_lea.vmem %s7, %s1078
        %p1080 = pneg %p251
        %p1081 = pneg %p248
        %s1082 = sand.u32 %s36, 1
        %s1083 = scalar_lea.sflag [#allocation4], %s1082
        %s1084 = sand.u32 %s264, 1
        %s1085 = smul.addr %s1084, 128
        %s1086 = scalar_lea.vmem [#allocation13], %s1085
        %p1087 = pneg %p277
        %p1088 = pneg %p274
        %p1089 = scmp.lt.s32.totalorder %s41, 1
        %s1090 = scalar_select %p1089, %s41, 1
        %s1091 = smul.addr %s1090, 2
        %s1092 = scalar_lea.vmem %s9, %s1091
        %p1093 = pneg %p303
        %p1094 = pneg %p300
        %s1095 = sand.u32 %s36, 1
        %s1096 = scalar_lea.sflag [#allocation4], %s1095
        %s1097 = sand.u32 %s316, 1
        %s1098 = smul.addr %s1097, 64
        %s1099 = scalar_lea.vmem [#allocation14], %s1098
        %p1100 = pneg %p329
        %p1101 = pneg %p326
        %p1102 = scmp.lt.s32.totalorder %s41, 1
        %s1103 = scalar_select %p1102, %s41, 1
        %s1104 = scalar_lea.vmem %s11, %s1103
        %p1105 = pneg %p355
        %p1106 = pneg %p352
        %s1107 = sand.u32 %s36, 1
        %s1108 = scalar_lea.sflag [#allocation4], %s1107
        %s1109 = sand.u32 %s368, 1
        %s1110 = smul.addr %s1109, 128
        %s1111 = scalar_lea.vmem [#allocation15], %s1110
        %p1112 = pneg %p381
        %p1113 = pneg %p378
        %p1114 = scmp.lt.s32.totalorder %s41, 1
        %s1115 = scalar_select %p1114, %s41, 1
        %s1116 = smul.addr %s1115, 2
        %s1117 = scalar_lea.vmem %s13, %s1116
        %p1118 = pneg %p407
        %p1119 = pneg %p404
        %s1120 = sand.u32 %s36, 1
        %s1121 = scalar_lea.sflag [#allocation4], %s1120
        %s1122 = sand.u32 %s420, 1
        %s1123 = smul.addr %s1122, 128
        %s1124 = scalar_lea.vmem [#allocation16], %s1123
        %p1125 = pneg %p433
        %p1126 = pneg %p430
        %p1127 = scmp.lt.s32.totalorder %s41, 1
        %s1128 = scalar_select %p1127, %s41, 1
        %s1129 = scalar_lea.vmem %s15, %s1128
        %p1130 = pneg %p459
        %p1131 = pneg %p456
        %p1132 = scmp.lt.s32.totalorder %s41, 1
        %s1133 = scalar_select %p1132, %s41, 1
        %s1134 = scalar_lea.vmem %s16, %s1133
        %p1135 = pneg %p485
        %p1136 = pneg %p482
        %p1137 = scmp.lt.s32.totalorder %s41, 1
        %s1138 = scalar_select %p1137, %s41, 1
        %s1139 = scalar_lea.vmem %s17, %s1138
        %p1140 = pneg %p511
        %p1141 = pneg %p508
        %p1142 = scmp.lt.s32.totalorder %s41, 1
        %s1143 = scalar_select %p1142, %s41, 1
        %s1144 = scalar_lea.vmem %s18, %s1143
        %p1145 = pneg %p537
        %p1146 = pneg %p534
        %p1147 = scmp.lt.s32.totalorder %s41, 1
        %s1148 = scalar_select %p1147, %s41, 1
        %s1149 = scalar_lea.vmem %s19, %s1148
        %p1150 = pneg %p563
        %p1151 = pneg %p560
        %p1152 = scmp.lt.s32.totalorder %s41, 1
        %s1153 = scalar_select %p1152, %s41, 1
        %s1154 = scalar_lea.vmem %s20, %s1153
        %p1155 = pneg %p589
        %p1156 = pneg %p586
        %p1157 = scmp.lt.s32.totalorder %s41, 1
        %s1158 = scalar_select %p1157, %s41, 1
        %s1159 = scalar_lea.vmem %s21, %s1158
        %p1160 = pneg %p615
        %p1161 = pneg %p612
        %p1162 = pneg %p641
        %p1163 = pneg %p638
        %s1164 = smul.u32 2, %s40
        %s1165 = smul.u32 2, %s40
        %p1166 = scmp.lt.s32.totalorder %s41, 1
        %s1167 = scalar_select %p1166, %s41, 1
        %s1168 = scalar_lea.vmem %s7, %s1167
        %p1169 = scmp.lt.s32.totalorder %s41, 1
        %s1170 = scalar_select %p1169, %s41, 1
        %s1171 = smul.addr %s1170, 2
        %s1172 = scalar_lea.vmem %s9, %s1171
        %p1173 = scmp.lt.s32.totalorder %s41, 1
        %s1174 = scalar_select %p1173, %s41, 1
        %s1175 = scalar_lea.vmem %s11, %s1174
        %p1176 = scmp.lt.s32.totalorder %s41, 1
        %s1177 = scalar_select %p1176, %s41, 1
        %s1178 = smul.addr %s1177, 2
        %s1179 = scalar_lea.vmem %s13, %s1178
        %p1180 = scmp.lt.s32.totalorder %s41, 1
        %s1181 = scalar_select %p1180, %s41, 1
        %s1182 = scalar_lea.vmem %s15, %s1181
        %p1183 = scmp.lt.s32.totalorder %s41, 1
        %s1184 = scalar_select %p1183, %s41, 1
        %s1185 = scalar_lea.vmem %s16, %s1184
        %p1186 = scmp.lt.s32.totalorder %s41, 1
        %s1187 = scalar_select %p1186, %s41, 1
        %s1188 = scalar_lea.vmem %s17, %s1187
        %p1189 = scmp.lt.s32.totalorder %s41, 1
        %s1190 = scalar_select %p1189, %s41, 1
        %s1191 = scalar_lea.vmem %s18, %s1190
        %p1192 = scmp.lt.s32.totalorder %s41, 1
        %s1193 = scalar_select %p1192, %s41, 1
        %s1194 = scalar_lea.vmem %s19, %s1193
        %p1195 = scmp.lt.s32.totalorder %s41, 1
        %s1196 = scalar_select %p1195, %s41, 1
        %s1197 = scalar_lea.vmem %s20, %s1196
        %p1198 = scmp.lt.s32.totalorder %s41, 1
        %s1199 = scalar_select %p1198, %s41, 1
        %s1200 = scalar_lea.vmem %s21, %s1199
        %s1201 = smul.u32 2, %s40
        %p1203 = scmp.eq.s32.totalorder %s41, 0
        // Predicated region
        $region153: #{tpu_custom_call.1} parent=107 // pred_check
          %p1204 = pneg %p1203
        $region154: #{tpu_custom_call.1} parent=107 // pred_check_branch
          %1206 = sbr.rel (%p1204) target = $region156
        $region155: #{tpu_custom_call.1} parent=107 // pred_region
          %v1207 = vld [vmem:[#allocation3] sm:$0xff]
          %v1208 = vld [vmem:[#allocation3 + $0x8] sm:$0xff]
          %1209 = vst [vmem:[#allocation2] sm:$0xff] %v1207
          %1210 = vst [vmem:[#allocation2 + $0x8] sm:$0xff] %v1208
        $region156: #{tpu_custom_call.1} parent=107 // pred_fallthru
          _
        %v1211 = vld [vmem:[#allocation2] sm:$0xff]
        %v1212 = vld [vmem:[#allocation2 + $0x8] sm:$0xff]
        %v1213 = vld [vmem:[#allocation6] sm:$0xf]
        %v1214 = vld [vmem:[#allocation6 + $0x4] sm:$0xf]
        %v1215 = vld [vmem:[#allocation6 + $0x8] sm:$0xf]
        %v1216 = vld [vmem:[#allocation6 + $0xc] sm:$0xf]
        %v1217 = vpack.c.bf16 %v1212, %v1211
        %v1218 = vld [vmem:[%s963] sm:$0xff]
        %v1219 = vld [vmem:[%s963 + $0x8] sm:$0xf]
        %v1220 = vld [vmem:[%s963 + $0xc] sm:$0xff]
        %v1221 = vld [vmem:[%s963 + $0x14] sm:$0xf]
        %v1222 = vld [vmem:[%s963 + $0x18] sm:$0xff]
        %v1223 = vld [vmem:[%s963 + $0x20] sm:$0xf]
        %v1224 = vld [vmem:[%s963 + $0x24] sm:$0xff]
        %v1225 = vld [vmem:[%s963 + $0x2c] sm:$0xf]
        %v1226 = vld [vmem:[%s963 + $0x30] sm:$0xff]
        %v1227 = vld [vmem:[%s963 + $0x38] sm:$0xf]
        %v1228 = vld [vmem:[%s963 + $0x3c] sm:$0xff]
        %v1229 = vld [vmem:[%s963 + $0x44] sm:$0xf]
        %v1230 = vld [vmem:[%s963 + $0x48] sm:$0xff]
        %v1231 = vld [vmem:[%s963 + $0x50] sm:$0xf]
        %v1232 = vld [vmem:[%s963 + $0x54] sm:$0xff]
        %v1233 = vld [vmem:[%s963 + $0x5c] sm:$0xf]
        %v1234 = vld [vmem:[%s963 + $0x60] sm:$0xff]
        %v1235 = vld [vmem:[%s963 + $0x68] sm:$0xf]
        %v1236 = vld [vmem:[%s963 + $0x6c] sm:$0xff]
        %v1237 = vld [vmem:[%s963 + $0x74] sm:$0xf]
        %v1238 = vld [vmem:[%s963 + $0x78] sm:$0xff]
        %v1239 = vld [vmem:[%s963 + $0x80] sm:$0xf]
        %v1240 = vld [vmem:[%s963 + $0x84] sm:$0xff]
        %v1241 = vld [vmem:[%s963 + $0x8c] sm:$0xf]
        %v1242 = vld [vmem:[%s963 + $0x90] sm:$0xff]
        %v1243 = vld [vmem:[%s963 + $0x98] sm:$0xf]
        %v1244 = vld [vmem:[%s963 + $0x9c] sm:$0xff]
        %v1245 = vld [vmem:[%s963 + $0xa4] sm:$0xf]
        %v1246 = vld [vmem:[%s963 + $0xa8] sm:$0xff]
        %v1247 = vld [vmem:[%s963 + $0xb0] sm:$0xf]
        %v1248 = vld [vmem:[%s963 + $0xb4] sm:$0xff]
        %v1249 = vld [vmem:[%s963 + $0xbc] sm:$0xf]
        %v1282 = vunpack.c.l.b16 %v1218
        %v1283 = vunpack.c.h.b16 %v1218
        %v1284 = vunpack.c.l.b16 %v1219
        %v1285 = vunpack.c.l.b16 %v1220
        %v1286 = vunpack.c.h.b16 %v1220
        %v1287 = vunpack.c.l.b16 %v1221
        %v1288 = vunpack.c.l.b16 %v1222
        %v1289 = vunpack.c.h.b16 %v1222
        %v1290 = vunpack.c.l.b16 %v1223
        %v1291 = vunpack.c.l.b16 %v1224
        %v1292 = vunpack.c.h.b16 %v1224
        %v1293 = vunpack.c.l.b16 %v1225
        %v1294 = vunpack.c.l.b16 %v1226
        %v1295 = vunpack.c.h.b16 %v1226
        %v1296 = vunpack.c.l.b16 %v1227
        %v1297 = vunpack.c.l.b16 %v1228
        %v1298 = vunpack.c.h.b16 %v1228
        %v1299 = vunpack.c.l.b16 %v1229
        %v1300 = vunpack.c.l.b16 %v1230
        %v1301 = vunpack.c.h.b16 %v1230
        %v1302 = vunpack.c.l.b16 %v1231
        %v1303 = vunpack.c.l.b16 %v1232
        %v1304 = vunpack.c.h.b16 %v1232
        %v1305 = vunpack.c.l.b16 %v1233
        %v1306 = vunpack.c.l.b16 %v1234
        %v1307 = vunpack.c.h.b16 %v1234
        %v1308 = vunpack.c.l.b16 %v1235
        %v1309 = vunpack.c.l.b16 %v1236
        %v1310 = vunpack.c.h.b16 %v1236
        %v1311 = vunpack.c.l.b16 %v1237
        %v1312 = vunpack.c.l.b16 %v1238
        %v1313 = vunpack.c.h.b16 %v1238
        %v1314 = vunpack.c.l.b16 %v1239
        %v1315 = vunpack.c.l.b16 %v1240
        %v1316 = vunpack.c.h.b16 %v1240
        %v1317 = vunpack.c.l.b16 %v1241
        %v1318 = vunpack.c.l.b16 %v1242
        %v1319 = vunpack.c.h.b16 %v1242
        %v1320 = vunpack.c.l.b16 %v1243
        %v1321 = vunpack.c.l.b16 %v1244
        %v1322 = vunpack.c.h.b16 %v1244
        %v1323 = vunpack.c.l.b16 %v1245
        %v1324 = vunpack.c.l.b16 %v1246
        %v1325 = vunpack.c.h.b16 %v1246
        %v1326 = vunpack.c.l.b16 %v1247
        %v1327 = vunpack.c.l.b16 %v1248
        %v1328 = vunpack.c.h.b16 %v1248
        %v1329 = vunpack.c.l.b16 %v1249
        %v1330 = vpack.c.b16 %v1285, %v1282
        %v1331 = vpack.c.b16 %v1286, %v1283
        %v1332 = vpack.c.b16 %v1287, %v1284
        %v1333 = vpack.c.b16 %v1291, %v1288
        %v1334 = vpack.c.b16 %v1292, %v1289
        %v1335 = vpack.c.b16 %v1293, %v1290
        %v1336 = vpack.c.b16 %v1297, %v1294
        %v1337 = vpack.c.b16 %v1298, %v1295
        %v1338 = vpack.c.b16 %v1299, %v1296
        %v1339 = vpack.c.b16 %v1303, %v1300
        %v1340 = vpack.c.b16 %v1304, %v1301
        %v1341 = vpack.c.b16 %v1305, %v1302
        %v1342 = vpack.c.b16 %v1309, %v1306
        %v1343 = vpack.c.b16 %v1310, %v1307
        %v1344 = vpack.c.b16 %v1311, %v1308
        %v1345 = vpack.c.b16 %v1315, %v1312
        %v1346 = vpack.c.b16 %v1316, %v1313
        %v1347 = vpack.c.b16 %v1317, %v1314
        %v1348 = vpack.c.b16 %v1321, %v1318
        %v1349 = vpack.c.b16 %v1322, %v1319
        %v1350 = vpack.c.b16 %v1323, %v1320
        %v1351 = vpack.c.b16 %v1327, %v1324
        %v1352 = vpack.c.b16 %v1328, %v1325
        %v1353 = vpack.c.b16 %v1329, %v1326
        %1378 = vmatprep.subr.bf16.mxu0 %v1352
        %1379 = vmatpush1.bf16.msra.mxu0 %v1351
        %1380 = vmatprep.subr.bf16.mxu0 %v1349
        %1381 = vmatpush1.bf16.msra.mxu0 %v1348
        %1382 = vmatprep.subr.bf16.mxu0 %v1346
        %1383 = vmatpush1.bf16.msra.mxu0 %v1345
        %1384 = vmatprep.subr.bf16.mxu0 %v1343
        %1385 = vmatpush1.bf16.msra.mxu0 %v1342
        %1386 = vmatprep.subr.bf16.mxu0 %v1340
        %1387 = vmatpush1.bf16.msra.mxu0 %v1339
        %1388 = vmatprep.subr.bf16.mxu0 %v1337
        %1389 = vmatpush1.bf16.msra.mxu0 %v1336
        %1390 = vmatprep.subr.bf16.mxu0 %v1334
        %1391 = vmatpush1.bf16.msra.mxu0 %v1333
        %1392 = vmatprep.subr.bf16.mxu0 %v1331
        %1393 = vmatpush1.bf16.msra.mxu0 %v1330
        %1394 = vmatprep.subr.bf16.mxu0 0
        %1395 = vmatpush2.bf16.msra.mxu0 0
        %1396 = vmatprep.subr.bf16.mxu0 0
        %1397 = vmatpush2.bf16.msra.mxu0 0
        %1398 = vmatprep.subr.bf16.mxu0 0
        %1399 = vmatpush2.bf16.msra.mxu0 0
        %1400 = vmatprep.subr.bf16.mxu0 0
        %1401 = vmatpush2.bf16.msra.mxu0 0
        %1402 = vmatprep.subr.bf16.mxu0 0
        %1403 = vmatpush2.bf16.msra.mxu0 0
        %1404 = vmatprep.subr.bf16.mxu0 0
        %1405 = vmatpush2.bf16.msra.mxu0 0
        %1406 = vmatprep.subr.bf16.mxu0 0
        %1407 = vmatpush2.bf16.msra.mxu0 0
        %1408 = vmatprep.subr.bf16.mxu0 0
        %1409 = vmatpush2.bf16.msra.mxu0 0
        %1410 = vmatprep.mubr.bf16.mxu0 0
        %1411 = vmatmul.mubr.bf16.gmra.mxu0 %v1217
        %v1412 = vpop.f32.mrf.mxu0
        %v1413 = vadd.f32 0.0, %v1412
        %v1414 = vpop.f32.mrf.mxu0
        %v1415 = vadd.f32 0.0, %v1414
        %v1416 = vpop.f32.mrf.mxu0
        %v1417 = vadd.f32 0.0, %v1416
        %v1418 = vpop.f32.mrf.mxu0
        %v1419 = vadd.f32 0.0, %v1418
        %1420 = vdwg.mxu0
        %1421 = vmatprep.subr.bf16.mxu0 0
        %1422 = vmatpush1.bf16.msra.mxu0 %v1353
        %1423 = vmatprep.subr.bf16.mxu0 0
        %1424 = vmatpush1.bf16.msra.mxu0 %v1350
        %1425 = vmatprep.subr.bf16.mxu0 0
        %1426 = vmatpush1.bf16.msra.mxu0 %v1347
        %1427 = vmatprep.subr.bf16.mxu0 0
        %1428 = vmatpush1.bf16.msra.mxu0 %v1344
        %1429 = vmatprep.subr.bf16.mxu0 0
        %1430 = vmatpush1.bf16.msra.mxu0 %v1341
        %1431 = vmatprep.subr.bf16.mxu0 0
        %1432 = vmatpush1.bf16.msra.mxu0 %v1338
        %1433 = vmatprep.subr.bf16.mxu0 0
        %1434 = vmatpush1.bf16.msra.mxu0 %v1335
        %1435 = vmatprep.subr.bf16.mxu0 0
        %1436 = vmatpush1.bf16.msra.mxu0 %v1332
        %1437 = vmatprep.subr.bf16.mxu0 0
        %1438 = vmatpush2.bf16.msra.mxu0 0
        %1439 = vmatprep.subr.bf16.mxu0 0
        %1440 = vmatpush2.bf16.msra.mxu0 0
        %1441 = vmatprep.subr.bf16.mxu0 0
        %1442 = vmatpush2.bf16.msra.mxu0 0
        %1443 = vmatprep.subr.bf16.mxu0 0
        %1444 = vmatpush2.bf16.msra.mxu0 0
        %1445 = vmatprep.subr.bf16.mxu0 0
        %1446 = vmatpush2.bf16.msra.mxu0 0
        %1447 = vmatprep.subr.bf16.mxu0 0
        %1448 = vmatpush2.bf16.msra.mxu0 0
        %1449 = vmatprep.subr.bf16.mxu0 0
        %1450 = vmatpush2.bf16.msra.mxu0 0
        %1451 = vmatprep.subr.bf16.mxu0 0
        %1452 = vmatpush2.bf16.msra.mxu0 0
        %1453 = vmatprep.mubr.bf16.mxu0 0
        %1454 = vmatmul.mubr.bf16.gmra.mxu0 %v1217
        %v1455 = vpop.f32.mrf.mxu0
        %v1456 = vadd.f32 0.0, %v1455
        %v1457 = vpop.f32.mrf.mxu0
        %v1458 = vpop.f32.mrf.mxu0
        %v1459 = vadd.f32 0.0, %v1458
        %v1460 = vpop.f32.mrf.mxu0
        %1461 = vdwg.mxu0
        %v1462 = vld [vmem:[%s972] sm:$0x7]
        %v1464 = vlaneseq
        %v1465 = vshrl.u32 %v1464, 7
        %v1466 = vsub.s32 0, %v1465
        %v1467 = vrot.slane %v1462, %v1466
        %v1468 = vlaneseq
        %v1469 = vshrl.u32 %v1468, 7
        %v1470 = vsub.s32 1, %v1469
        %v1471 = vrot.slane %v1462, %v1470
        %v1472 = vlaneseq
        %v1473 = vshrl.u32 %v1472, 7
        %v1474 = vsub.s32 2, %v1473
        %v1475 = vrot.slane %v1462, %v1474
        %v1479 = vadd.f32 %v1413, %v1467
        %v1480 = vadd.f32 %v1415, %v1471
        %v1481 = vadd.f32 %v1456, %v1475
        %v1482 = vadd.f32 %v1417, %v1467
        %v1483 = vadd.f32 %v1419, %v1471
        %v1484 = vadd.f32 %v1459, %v1475
        %v1485 = vmul.f32 %v1479, 0.17677669
        %v1486 = vmul.f32 %v1482, 0.17677669
        %v1487 = vpack.c.bf16 %v1485, %v1485
        %v1488 = vpack.c.bf16 %v1486, %v1486
        %v1489 = vpack.c.bf16 %v1480, %v1480
        %v1490 = vpack.c.bf16 %v1483, %v1483
        %v1491 = vpack.c.bf16 %v1481, %v1481
        %v1492 = vpack.c.bf16 %v1484, %v1484
        %vm1493 = vcmask 261120
        %v1495 = vsel %vm1493, %v1487, 0
        %v1498 = vsel %vm1493, %v1489, 0
        %1500 = vmatprep.subr.bf16.mxu0 0
        %1501 = vmatpush1.bf16.xpose.msra.mxu0 0
        %1502 = vmatprep.subr.bf16.mxu0 0
        %1503 = vmatpush1.bf16.xpose.msra.mxu0 0
        %1504 = vmatprep.subr.bf16.mxu0 0
        %1505 = vmatpush1.bf16.xpose.msra.mxu0 0
        %1506 = vmatprep.subr.bf16.mxu0 0
        %1507 = vmatpush1.bf16.xpose.msra.mxu0 0
        %1508 = vmatprep.subr.bf16.mxu0 0
        %1509 = vmatpush1.bf16.xpose.msra.mxu0 0
        %1510 = vmatprep.subr.bf16.mxu0 0
        %1511 = vmatpush1.bf16.xpose.msra.mxu0 0
        %1512 = vmatprep.subr.bf16.mxu0 0
        %1513 = vmatpush1.bf16.xpose.msra.mxu0 0
        %1514 = vmatprep.subr.bf16.mxu0 0
        %1515 = vmatpush1.bf16.xpose.msra.mxu0 %v1498
        %1516 = vmatprep.subr.bf16.mxu0 0
        %1517 = vmatpush2.bf16.xpose.msra.mxu0 0
        %1518 = vmatprep.subr.bf16.mxu0 0
        %1519 = vmatpush2.bf16.xpose.msra.mxu0 0
        %1520 = vmatprep.subr.bf16.mxu0 0
        %1521 = vmatpush2.bf16.xpose.msra.mxu0 0
        %1522 = vmatprep.subr.bf16.mxu0 0
        %1523 = vmatpush2.bf16.xpose.msra.mxu0 0
        %1524 = vmatprep.subr.bf16.mxu0 0
        %1525 = vmatpush2.bf16.xpose.msra.mxu0 0
        %1526 = vmatprep.subr.bf16.mxu0 0
        %1527 = vmatpush2.bf16.xpose.msra.mxu0 0
        %1528 = vmatprep.subr.bf16.mxu0 0
        %1529 = vmatpush2.bf16.xpose.msra.mxu0 0
        %1530 = vmatprep.subr.bf16.mxu0 0
        %1531 = vmatpush2.bf16.xpose.msra.mxu0 0
        %1532 = vmatprep.mubr.bf16.mxu0 0
        %1533 = vmatmul.mubr.bf16.gmra.mxu0 %v1495
        %v1534 = vpop.f32.mrf.mxu0
        %v1535 = vadd.f32 0.0, %v1534
        %v1536 = vpop.f32.mrf.mxu0
        %v1537 = vpop.f32.mrf.mxu0
        %v1538 = vpop.f32.mrf.mxu0
        %1539 = vdwg.mxu0
        %v1541 = vsel %vm1493, %v1488, 0
        %v1544 = vsel %vm1493, %v1490, 0
        %1546 = vmatprep.subr.bf16.mxu0 0
        %1547 = vmatpush1.bf16.xpose.msra.mxu0 0
        %1548 = vmatprep.subr.bf16.mxu0 0
        %1549 = vmatpush1.bf16.xpose.msra.mxu0 0
        %1550 = vmatprep.subr.bf16.mxu0 0
        %1551 = vmatpush1.bf16.xpose.msra.mxu0 0
        %1552 = vmatprep.subr.bf16.mxu0 0
        %1553 = vmatpush1.bf16.xpose.msra.mxu0 0
        %1554 = vmatprep.subr.bf16.mxu0 0
        %1555 = vmatpush1.bf16.xpose.msra.mxu0 0
        %1556 = vmatprep.subr.bf16.mxu0 0
        %1557 = vmatpush1.bf16.xpose.msra.mxu0 0
        %1558 = vmatprep.subr.bf16.mxu0 0
        %1559 = vmatpush1.bf16.xpose.msra.mxu0 0
        %1560 = vmatprep.subr.bf16.mxu0 0
        %1561 = vmatpush1.bf16.xpose.msra.mxu0 %v1544
        %1562 = vmatprep.subr.bf16.mxu0 0
        %1563 = vmatpush2.bf16.xpose.msra.mxu0 0
        %1564 = vmatprep.subr.bf16.mxu0 0
        %1565 = vmatpush2.bf16.xpose.msra.mxu0 0
        %1566 = vmatprep.subr.bf16.mxu0 0
        %1567 = vmatpush2.bf16.xpose.msra.mxu0 0
        %1568 = vmatprep.subr.bf16.mxu0 0
        %1569 = vmatpush2.bf16.xpose.msra.mxu0 0
        %1570 = vmatprep.subr.bf16.mxu0 0
        %1571 = vmatpush2.bf16.xpose.msra.mxu0 0
        %1572 = vmatprep.subr.bf16.mxu0 0
        %1573 = vmatpush2.bf16.xpose.msra.mxu0 0
        %1574 = vmatprep.subr.bf16.mxu0 0
        %1575 = vmatpush2.bf16.xpose.msra.mxu0 0
        %1576 = vmatprep.subr.bf16.mxu0 0
        %1577 = vmatpush2.bf16.xpose.msra.mxu0 0
        %1578 = vmatprep.mubr.bf16.mxu0 0
        %1579 = vmatmul.mubr.bf16.gmra.mxu0 %v1541
        %v1580 = vpop.f32.mrf.mxu0
        %v1581 = vadd.f32 0.0, %v1580
        %v1582 = vpop.f32.mrf.mxu0
        %v1583 = vpop.f32.mrf.mxu0
        %v1584 = vpop.f32.mrf.mxu0
        %1585 = vdwg.mxu0
        %vm1586 = vcmask 64512
        %v1587 = vsel %vm1586, %v1535, -inf
        %1588 = vmax.xlane.f32.xlu0 %v1587
        %v1589 = vpop.xlane.xlu0 %1588
        %v1590 = vsel %vm1586, %v1581, -inf
        %1591 = vmax.xlane.f32.xlu0 %v1590
        %v1592 = vpop.xlane.xlu0 %1591
        %v1593 = vsub.f32 %v1535, %v1589
        %v1594 = vsub.f32 %v1581, %v1592
        %v1595 = vmul.f32 %v1593, 1.442695
        %v1596 = vpow.pop %v1595
        %v1597 = vmul.f32 %v1594, 1.442695
        %v1598 = vpow.pop %v1597
        %v1599 = vsel %vm1586, %v1596, 0.0
        %1600 = vadd.xlane.f32.xlu0 %v1599
        %v1601 = vpop.xlane.xlu0 %1600
        %v1602 = vsel %vm1586, %v1598, 0.0
        %1603 = vadd.xlane.f32.xlu0 %v1602
        %v1604 = vpop.xlane.xlu0 %1603
        %v1605 = vpack.c.bf16 %v1596, %v1596
        %v1606 = vpack.c.bf16 %v1598, %v1598
        %v1608 = vsel %vm1586, %v1605, 0
        %vm1610 = vcmask 1043456
        %v1612 = vsel %vm1610, %v1491, 0
        %1614 = vmatprep.subr.bf16.mxu0 0
        %1615 = vmatpush1.bf16.msra.mxu0 0
        %1616 = vmatprep.subr.bf16.mxu0 0
        %1617 = vmatpush1.bf16.msra.mxu0 0
        %1618 = vmatprep.subr.bf16.mxu0 0
        %1619 = vmatpush1.bf16.msra.mxu0 0
        %1620 = vmatprep.subr.bf16.mxu0 0
        %1621 = vmatpush1.bf16.msra.mxu0 0
        %1622 = vmatprep.subr.bf16.mxu0 0
        %1623 = vmatpush1.bf16.msra.mxu0 0
        %1624 = vmatprep.subr.bf16.mxu0 0
        %1625 = vmatpush1.bf16.msra.mxu0 0
        %1626 = vmatprep.subr.bf16.mxu0 0
        %1627 = vmatpush1.bf16.msra.mxu0 0
        %1628 = vmatprep.subr.bf16.mxu0 0
        %1629 = vmatpush1.bf16.msra.mxu0 %v1612
        %1630 = vmatprep.subr.bf16.mxu0 0
        %1631 = vmatpush2.bf16.msra.mxu0 0
        %1632 = vmatprep.subr.bf16.mxu0 0
        %1633 = vmatpush2.bf16.msra.mxu0 0
        %1634 = vmatprep.subr.bf16.mxu0 0
        %1635 = vmatpush2.bf16.msra.mxu0 0
        %1636 = vmatprep.subr.bf16.mxu0 0
        %1637 = vmatpush2.bf16.msra.mxu0 0
        %1638 = vmatprep.subr.bf16.mxu0 0
        %1639 = vmatpush2.bf16.msra.mxu0 0
        %1640 = vmatprep.subr.bf16.mxu0 0
        %1641 = vmatpush2.bf16.msra.mxu0 0
        %1642 = vmatprep.subr.bf16.mxu0 0
        %1643 = vmatpush2.bf16.msra.mxu0 0
        %1644 = vmatprep.subr.bf16.mxu0 0
        %1645 = vmatpush2.bf16.msra.mxu0 0
        %1646 = vmatprep.mubr.bf16.mxu0 0
        %1647 = vmatmul.mubr.bf16.gmra.mxu0 %v1608
        %v1648 = vpop.f32.mrf.mxu0
        %v1649 = vadd.f32 0.0, %v1648
        %v1650 = vpop.f32.mrf.mxu0
        %v1651 = vpop.f32.mrf.mxu0
        %v1652 = vpop.f32.mrf.mxu0
        %1653 = vdwg.mxu0
        %v1655 = vsel %vm1586, %v1606, 0
        %v1658 = vsel %vm1610, %v1492, 0
        %1660 = vmatprep.subr.bf16.mxu0 0
        %1661 = vmatpush1.bf16.msra.mxu0 0
        %1662 = vmatprep.subr.bf16.mxu0 0
        %1663 = vmatpush1.bf16.msra.mxu0 0
        %1664 = vmatprep.subr.bf16.mxu0 0
        %1665 = vmatpush1.bf16.msra.mxu0 0
        %1666 = vmatprep.subr.bf16.mxu0 0
        %1667 = vmatpush1.bf16.msra.mxu0 0
        %1668 = vmatprep.subr.bf16.mxu0 0
        %1669 = vmatpush1.bf16.msra.mxu0 0
        %1670 = vmatprep.subr.bf16.mxu0 0
        %1671 = vmatpush1.bf16.msra.mxu0 0
        %1672 = vmatprep.subr.bf16.mxu0 0
        %1673 = vmatpush1.bf16.msra.mxu0 0
        %1674 = vmatprep.subr.bf16.mxu0 0
        %1675 = vmatpush1.bf16.msra.mxu0 %v1658
        %1676 = vmatprep.subr.bf16.mxu0 0
        %1677 = vmatpush2.bf16.msra.mxu0 0
        %1678 = vmatprep.subr.bf16.mxu0 0
        %1679 = vmatpush2.bf16.msra.mxu0 0
        %1680 = vmatprep.subr.bf16.mxu0 0
        %1681 = vmatpush2.bf16.msra.mxu0 0
        %1682 = vmatprep.subr.bf16.mxu0 0
        %1683 = vmatpush2.bf16.msra.mxu0 0
        %1684 = vmatprep.subr.bf16.mxu0 0
        %1685 = vmatpush2.bf16.msra.mxu0 0
        %1686 = vmatprep.subr.bf16.mxu0 0
        %1687 = vmatpush2.bf16.msra.mxu0 0
        %1688 = vmatprep.subr.bf16.mxu0 0
        %1689 = vmatpush2.bf16.msra.mxu0 0
        %1690 = vmatprep.subr.bf16.mxu0 0
        %1691 = vmatpush2.bf16.msra.mxu0 0
        %1692 = vmatprep.mubr.bf16.mxu0 0
        %1693 = vmatmul.mubr.bf16.gmra.mxu0 %v1655
        %v1694 = vpop.f32.mrf.mxu0
        %v1695 = vadd.f32 0.0, %v1694
        %v1696 = vpop.f32.mrf.mxu0
        %v1697 = vpop.f32.mrf.mxu0
        %v1698 = vpop.f32.mrf.mxu0
        %1699 = vdwg.mxu0
        %v1700 = vrcp.pop %v1601
        %v1701 = vrcp.pop %v1604
        %v1702 = vmul.f32 %v1649, %v1700
        %v1703 = vmul.f32 %v1695, %v1701
        %v1704 = vpack.c.bf16 %v1702, %v1702
        %v1705 = vpack.c.bf16 %v1703, %v1703
        %1707 = vrot.lane.b32.xlu0 %v1487, 96
        %v1708 = vpop.permute.xlu0 %1707
        %1710 = vrot.lane.b32.xlu0 %v1489, 96
        %v1711 = vpop.permute.xlu0 %1710
        %v1713 = vsel %vm1493, %v1708, 0
        %v1716 = vsel %vm1493, %v1711, 0
        %1718 = vmatprep.subr.bf16.mxu0 0
        %1719 = vmatpush1.bf16.xpose.msra.mxu0 0
        %1720 = vmatprep.subr.bf16.mxu0 0
        %1721 = vmatpush1.bf16.xpose.msra.mxu0 0
        %1722 = vmatprep.subr.bf16.mxu0 0
        %1723 = vmatpush1.bf16.xpose.msra.mxu0 0
        %1724 = vmatprep.subr.bf16.mxu0 0
        %1725 = vmatpush1.bf16.xpose.msra.mxu0 0
        %1726 = vmatprep.subr.bf16.mxu0 0
        %1727 = vmatpush1.bf16.xpose.msra.mxu0 0
        %1728 = vmatprep.subr.bf16.mxu0 0
        %1729 = vmatpush1.bf16.xpose.msra.mxu0 0
        %1730 = vmatprep.subr.bf16.mxu0 0
        %1731 = vmatpush1.bf16.xpose.msra.mxu0 0
        %1732 = vmatprep.subr.bf16.mxu0 0
        %1733 = vmatpush1.bf16.xpose.msra.mxu0 %v1716
        %1734 = vmatprep.subr.bf16.mxu0 0
        %1735 = vmatpush2.bf16.xpose.msra.mxu0 0
        %1736 = vmatprep.subr.bf16.mxu0 0
        %1737 = vmatpush2.bf16.xpose.msra.mxu0 0
        %1738 = vmatprep.subr.bf16.mxu0 0
        %1739 = vmatpush2.bf16.xpose.msra.mxu0 0
        %1740 = vmatprep.subr.bf16.mxu0 0
        %1741 = vmatpush2.bf16.xpose.msra.mxu0 0
        %1742 = vmatprep.subr.bf16.mxu0 0
        %1743 = vmatpush2.bf16.xpose.msra.mxu0 0
        %1744 = vmatprep.subr.bf16.mxu0 0
        %1745 = vmatpush2.bf16.xpose.msra.mxu0 0
        %1746 = vmatprep.subr.bf16.mxu0 0
        %1747 = vmatpush2.bf16.xpose.msra.mxu0 0
        %1748 = vmatprep.subr.bf16.mxu0 0
        %1749 = vmatpush2.bf16.xpose.msra.mxu0 0
        %1750 = vmatprep.mubr.bf16.mxu0 0
        %1751 = vmatmul.mubr.bf16.gmra.mxu0 %v1713
        %v1752 = vpop.f32.mrf.mxu0
        %v1753 = vadd.f32 0.0, %v1752
        %v1754 = vpop.f32.mrf.mxu0
        %v1755 = vpop.f32.mrf.mxu0
        %v1756 = vpop.f32.mrf.mxu0
        %1757 = vdwg.mxu0
        %1759 = vrot.lane.b32.xlu0 %v1488, 96
        %v1760 = vpop.permute.xlu0 %1759
        %1762 = vrot.lane.b32.xlu0 %v1490, 96
        %v1763 = vpop.permute.xlu0 %1762
        %v1765 = vsel %vm1493, %v1760, 0
        %v1768 = vsel %vm1493, %v1763, 0
        %1770 = vmatprep.subr.bf16.mxu0 0
        %1771 = vmatpush1.bf16.xpose.msra.mxu0 0
        %1772 = vmatprep.subr.bf16.mxu0 0
        %1773 = vmatpush1.bf16.xpose.msra.mxu0 0
        %1774 = vmatprep.subr.bf16.mxu0 0
        %1775 = vmatpush1.bf16.xpose.msra.mxu0 0
        %1776 = vmatprep.subr.bf16.mxu0 0
        %1777 = vmatpush1.bf16.xpose.msra.mxu0 0
        %1778 = vmatprep.subr.bf16.mxu0 0
        %1779 = vmatpush1.bf16.xpose.msra.mxu0 0
        %1780 = vmatprep.subr.bf16.mxu0 0
        %1781 = vmatpush1.bf16.xpose.msra.mxu0 0
        %1782 = vmatprep.subr.bf16.mxu0 0
        %1783 = vmatpush1.bf16.xpose.msra.mxu0 0
        %1784 = vmatprep.subr.bf16.mxu0 0
        %1785 = vmatpush1.bf16.xpose.msra.mxu0 %v1768
        %1786 = vmatprep.subr.bf16.mxu0 0
        %1787 = vmatpush2.bf16.xpose.msra.mxu0 0
        %1788 = vmatprep.subr.bf16.mxu0 0
        %1789 = vmatpush2.bf16.xpose.msra.mxu0 0
        %1790 = vmatprep.subr.bf16.mxu0 0
        %1791 = vmatpush2.bf16.xpose.msra.mxu0 0
        %1792 = vmatprep.subr.bf16.mxu0 0
        %1793 = vmatpush2.bf16.xpose.msra.mxu0 0
        %1794 = vmatprep.subr.bf16.mxu0 0
        %1795 = vmatpush2.bf16.xpose.msra.mxu0 0
        %1796 = vmatprep.subr.bf16.mxu0 0
        %1797 = vmatpush2.bf16.xpose.msra.mxu0 0
        %1798 = vmatprep.subr.bf16.mxu0 0
        %1799 = vmatpush2.bf16.xpose.msra.mxu0 0
        %1800 = vmatprep.subr.bf16.mxu0 0
        %1801 = vmatpush2.bf16.xpose.msra.mxu0 0
        %1802 = vmatprep.mubr.bf16.mxu0 0
        %1803 = vmatmul.mubr.bf16.gmra.mxu0 %v1765
        %v1804 = vpop.f32.mrf.mxu0
        %v1805 = vadd.f32 0.0, %v1804
        %v1806 = vpop.f32.mrf.mxu0
        %v1807 = vpop.f32.mrf.mxu0
        %v1808 = vpop.f32.mrf.mxu0
        %1809 = vdwg.mxu0
        %v1810 = vsel %vm1586, %v1753, -inf
        %1811 = vmax.xlane.f32.xlu0 %v1810
        %v1812 = vpop.xlane.xlu0 %1811
        %v1813 = vsel %vm1586, %v1805, -inf
        %1814 = vmax.xlane.f32.xlu0 %v1813
        %v1815 = vpop.xlane.xlu0 %1814
        %v1816 = vsub.f32 %v1753, %v1812
        %v1817 = vsub.f32 %v1805, %v1815
        %v1818 = vmul.f32 %v1816, 1.442695
        %v1819 = vpow.pop %v1818
        %v1820 = vmul.f32 %v1817, 1.442695
        %v1821 = vpow.pop %v1820
        %v1822 = vsel %vm1586, %v1819, 0.0
        %1823 = vadd.xlane.f32.xlu0 %v1822
        %v1824 = vpop.xlane.xlu0 %1823
        %v1825 = vsel %vm1586, %v1821, 0.0
        %1826 = vadd.xlane.f32.xlu0 %v1825
        %v1827 = vpop.xlane.xlu0 %1826
        %v1828 = vpack.c.bf16 %v1819, %v1819
        %v1829 = vpack.c.bf16 %v1821, %v1821
        %1831 = vrot.lane.b32.xlu0 %v1491, 96
        %v1832 = vpop.permute.xlu0 %1831
        %v1834 = vsel %vm1586, %v1828, 0
        %v1837 = vsel %vm1610, %v1832, 0
        %1839 = vmatprep.subr.bf16.mxu0 0
        %1840 = vmatpush1.bf16.msra.mxu0 0
        %1841 = vmatprep.subr.bf16.mxu0 0
        %1842 = vmatpush1.bf16.msra.mxu0 0
        %1843 = vmatprep.subr.bf16.mxu0 0
        %1844 = vmatpush1.bf16.msra.mxu0 0
        %1845 = vmatprep.subr.bf16.mxu0 0
        %1846 = vmatpush1.bf16.msra.mxu0 0
        %1847 = vmatprep.subr.bf16.mxu0 0
        %1848 = vmatpush1.bf16.msra.mxu0 0
        %1849 = vmatprep.subr.bf16.mxu0 0
        %1850 = vmatpush1.bf16.msra.mxu0 0
        %1851 = vmatprep.subr.bf16.mxu0 0
        %1852 = vmatpush1.bf16.msra.mxu0 0
        %1853 = vmatprep.subr.bf16.mxu0 0
        %1854 = vmatpush1.bf16.msra.mxu0 %v1837
        %1855 = vmatprep.subr.bf16.mxu0 0
        %1856 = vmatpush2.bf16.msra.mxu0 0
        %1857 = vmatprep.subr.bf16.mxu0 0
        %1858 = vmatpush2.bf16.msra.mxu0 0
        %1859 = vmatprep.subr.bf16.mxu0 0
        %1860 = vmatpush2.bf16.msra.mxu0 0
        %1861 = vmatprep.subr.bf16.mxu0 0
        %1862 = vmatpush2.bf16.msra.mxu0 0
        %1863 = vmatprep.subr.bf16.mxu0 0
        %1864 = vmatpush2.bf16.msra.mxu0 0
        %1865 = vmatprep.subr.bf16.mxu0 0
        %1866 = vmatpush2.bf16.msra.mxu0 0
        %1867 = vmatprep.subr.bf16.mxu0 0
        %1868 = vmatpush2.bf16.msra.mxu0 0
        %1869 = vmatprep.subr.bf16.mxu0 0
        %1870 = vmatpush2.bf16.msra.mxu0 0
        %1871 = vmatprep.mubr.bf16.mxu0 0
        %1872 = vmatmul.mubr.bf16.gmra.mxu0 %v1834
        %v1873 = vpop.f32.mrf.mxu0
        %v1874 = vadd.f32 0.0, %v1873
        %v1875 = vpop.f32.mrf.mxu0
        %v1876 = vpop.f32.mrf.mxu0
        %v1877 = vpop.f32.mrf.mxu0
        %1878 = vdwg.mxu0
        %1880 = vrot.lane.b32.xlu0 %v1492, 96
        %v1881 = vpop.permute.xlu0 %1880
        %v1883 = vsel %vm1586, %v1829, 0
        %v1886 = vsel %vm1610, %v1881, 0
        %1888 = vmatprep.subr.bf16.mxu0 0
        %1889 = vmatpush1.bf16.msra.mxu0 0
        %1890 = vmatprep.subr.bf16.mxu0 0
        %1891 = vmatpush1.bf16.msra.mxu0 0
        %1892 = vmatprep.subr.bf16.mxu0 0
        %1893 = vmatpush1.bf16.msra.mxu0 0
        %1894 = vmatprep.subr.bf16.mxu0 0
        %1895 = vmatpush1.bf16.msra.mxu0 0
        %1896 = vmatprep.subr.bf16.mxu0 0
        %1897 = vmatpush1.bf16.msra.mxu0 0
        %1898 = vmatprep.subr.bf16.mxu0 0
        %1899 = vmatpush1.bf16.msra.mxu0 0
        %1900 = vmatprep.subr.bf16.mxu0 0
        %1901 = vmatpush1.bf16.msra.mxu0 0
        %1902 = vmatprep.subr.bf16.mxu0 0
        %1903 = vmatpush1.bf16.msra.mxu0 %v1886
        %1904 = vmatprep.subr.bf16.mxu0 0
        %1905 = vmatpush2.bf16.msra.mxu0 0
        %1906 = vmatprep.subr.bf16.mxu0 0
        %1907 = vmatpush2.bf16.msra.mxu0 0
        %1908 = vmatprep.subr.bf16.mxu0 0
        %1909 = vmatpush2.bf16.msra.mxu0 0
        %1910 = vmatprep.subr.bf16.mxu0 0
        %1911 = vmatpush2.bf16.msra.mxu0 0
        %1912 = vmatprep.subr.bf16.mxu0 0
        %1913 = vmatpush2.bf16.msra.mxu0 0
        %1914 = vmatprep.subr.bf16.mxu0 0
        %1915 = vmatpush2.bf16.msra.mxu0 0
        %1916 = vmatprep.subr.bf16.mxu0 0
        %1917 = vmatpush2.bf16.msra.mxu0 0
        %1918 = vmatprep.subr.bf16.mxu0 0
        %1919 = vmatpush2.bf16.msra.mxu0 0
        %1920 = vmatprep.mubr.bf16.mxu0 0
        %1921 = vmatmul.mubr.bf16.gmra.mxu0 %v1883
        %v1922 = vpop.f32.mrf.mxu0
        %v1923 = vadd.f32 0.0, %v1922
        %v1924 = vpop.f32.mrf.mxu0
        %v1925 = vpop.f32.mrf.mxu0
        %v1926 = vpop.f32.mrf.mxu0
        %1927 = vdwg.mxu0
        %v1928 = vrcp.pop %v1824
        %v1929 = vrcp.pop %v1827
        %v1930 = vmul.f32 %v1874, %v1928
        %v1931 = vmul.f32 %v1923, %v1929
        %v1932 = vpack.c.bf16 %v1930, %v1930
        %v1933 = vpack.c.bf16 %v1931, %v1931
        %1934 = vrot.lane.b32.xlu0 %v1487, 64
        %v1935 = vpop.permute.xlu0 %1934
        %1936 = vrot.lane.b32.xlu0 %v1489, 64
        %v1937 = vpop.permute.xlu0 %1936
        %v1939 = vsel %vm1493, %v1935, 0
        %v1942 = vsel %vm1493, %v1937, 0
        %1944 = vmatprep.subr.bf16.mxu0 0
        %1945 = vmatpush1.bf16.xpose.msra.mxu0 0
        %1946 = vmatprep.subr.bf16.mxu0 0
        %1947 = vmatpush1.bf16.xpose.msra.mxu0 0
        %1948 = vmatprep.subr.bf16.mxu0 0
        %1949 = vmatpush1.bf16.xpose.msra.mxu0 0
        %1950 = vmatprep.subr.bf16.mxu0 0
        %1951 = vmatpush1.bf16.xpose.msra.mxu0 0
        %1952 = vmatprep.subr.bf16.mxu0 0
        %1953 = vmatpush1.bf16.xpose.msra.mxu0 0
        %1954 = vmatprep.subr.bf16.mxu0 0
        %1955 = vmatpush1.bf16.xpose.msra.mxu0 0
        %1956 = vmatprep.subr.bf16.mxu0 0
        %1957 = vmatpush1.bf16.xpose.msra.mxu0 0
        %1958 = vmatprep.subr.bf16.mxu0 0
        %1959 = vmatpush1.bf16.xpose.msra.mxu0 %v1942
        %1960 = vmatprep.subr.bf16.mxu0 0
        %1961 = vmatpush2.bf16.xpose.msra.mxu0 0
        %1962 = vmatprep.subr.bf16.mxu0 0
        %1963 = vmatpush2.bf16.xpose.msra.mxu0 0
        %1964 = vmatprep.subr.bf16.mxu0 0
        %1965 = vmatpush2.bf16.xpose.msra.mxu0 0
        %1966 = vmatprep.subr.bf16.mxu0 0
        %1967 = vmatpush2.bf16.xpose.msra.mxu0 0
        %1968 = vmatprep.subr.bf16.mxu0 0
        %1969 = vmatpush2.bf16.xpose.msra.mxu0 0
        %1970 = vmatprep.subr.bf16.mxu0 0
        %1971 = vmatpush2.bf16.xpose.msra.mxu0 0
        %1972 = vmatprep.subr.bf16.mxu0 0
        %1973 = vmatpush2.bf16.xpose.msra.mxu0 0
        %1974 = vmatprep.subr.bf16.mxu0 0
        %1975 = vmatpush2.bf16.xpose.msra.mxu0 0
        %1976 = vmatprep.mubr.bf16.mxu0 0
        %1977 = vmatmul.mubr.bf16.gmra.mxu0 %v1939
        %v1978 = vpop.f32.mrf.mxu0
        %v1979 = vadd.f32 0.0, %v1978
        %v1980 = vpop.f32.mrf.mxu0
        %v1981 = vpop.f32.mrf.mxu0
        %v1982 = vpop.f32.mrf.mxu0
        %1983 = vdwg.mxu0
        %1984 = vrot.lane.b32.xlu0 %v1488, 64
        %v1985 = vpop.permute.xlu0 %1984
        %1986 = vrot.lane.b32.xlu0 %v1490, 64
        %v1987 = vpop.permute.xlu0 %1986
        %v1989 = vsel %vm1493, %v1985, 0
        %v1992 = vsel %vm1493, %v1987, 0
        %1994 = vmatprep.subr.bf16.mxu0 0
        %1995 = vmatpush1.bf16.xpose.msra.mxu0 0
        %1996 = vmatprep.subr.bf16.mxu0 0
        %1997 = vmatpush1.bf16.xpose.msra.mxu0 0
        %1998 = vmatprep.subr.bf16.mxu0 0
        %1999 = vmatpush1.bf16.xpose.msra.mxu0 0
        %2000 = vmatprep.subr.bf16.mxu0 0
        %2001 = vmatpush1.bf16.xpose.msra.mxu0 0
        %2002 = vmatprep.subr.bf16.mxu0 0
        %2003 = vmatpush1.bf16.xpose.msra.mxu0 0
        %2004 = vmatprep.subr.bf16.mxu0 0
        %2005 = vmatpush1.bf16.xpose.msra.mxu0 0
        %2006 = vmatprep.subr.bf16.mxu0 0
        %2007 = vmatpush1.bf16.xpose.msra.mxu0 0
        %2008 = vmatprep.subr.bf16.mxu0 0
        %2009 = vmatpush1.bf16.xpose.msra.mxu0 %v1992
        %2010 = vmatprep.subr.bf16.mxu0 0
        %2011 = vmatpush2.bf16.xpose.msra.mxu0 0
        %2012 = vmatprep.subr.bf16.mxu0 0
        %2013 = vmatpush2.bf16.xpose.msra.mxu0 0
        %2014 = vmatprep.subr.bf16.mxu0 0
        %2015 = vmatpush2.bf16.xpose.msra.mxu0 0
        %2016 = vmatprep.subr.bf16.mxu0 0
        %2017 = vmatpush2.bf16.xpose.msra.mxu0 0
        %2018 = vmatprep.subr.bf16.mxu0 0
        %2019 = vmatpush2.bf16.xpose.msra.mxu0 0
        %2020 = vmatprep.subr.bf16.mxu0 0
        %2021 = vmatpush2.bf16.xpose.msra.mxu0 0
        %2022 = vmatprep.subr.bf16.mxu0 0
        %2023 = vmatpush2.bf16.xpose.msra.mxu0 0
        %2024 = vmatprep.subr.bf16.mxu0 0
        %2025 = vmatpush2.bf16.xpose.msra.mxu0 0
        %2026 = vmatprep.mubr.bf16.mxu0 0
        %2027 = vmatmul.mubr.bf16.gmra.mxu0 %v1989
        %v2028 = vpop.f32.mrf.mxu0
        %v2029 = vadd.f32 0.0, %v2028
        %v2030 = vpop.f32.mrf.mxu0
        %v2031 = vpop.f32.mrf.mxu0
        %v2032 = vpop.f32.mrf.mxu0
        %2033 = vdwg.mxu0
        %v2034 = vsel %vm1586, %v1979, -inf
        %2035 = vmax.xlane.f32.xlu0 %v2034
        %v2036 = vpop.xlane.xlu0 %2035
        %v2037 = vsel %vm1586, %v2029, -inf
        %2038 = vmax.xlane.f32.xlu0 %v2037
        %v2039 = vpop.xlane.xlu0 %2038
        %v2040 = vsub.f32 %v1979, %v2036
        %v2041 = vsub.f32 %v2029, %v2039
        %v2042 = vmul.f32 %v2040, 1.442695
        %v2043 = vpow.pop %v2042
        %v2044 = vmul.f32 %v2041, 1.442695
        %v2045 = vpow.pop %v2044
        %v2046 = vsel %vm1586, %v2043, 0.0
        %2047 = vadd.xlane.f32.xlu0 %v2046
        %v2048 = vpop.xlane.xlu0 %2047
        %v2049 = vsel %vm1586, %v2045, 0.0
        %2050 = vadd.xlane.f32.xlu0 %v2049
        %v2051 = vpop.xlane.xlu0 %2050
        %v2052 = vpack.c.bf16 %v2043, %v2043
        %v2053 = vpack.c.bf16 %v2045, %v2045
        %2054 = vrot.lane.b32.xlu0 %v1491, 64
        %v2055 = vpop.permute.xlu0 %2054
        %v2057 = vsel %vm1586, %v2052, 0
        %v2060 = vsel %vm1610, %v2055, 0
        %2062 = vmatprep.subr.bf16.mxu0 0
        %2063 = vmatpush1.bf16.msra.mxu0 0
        %2064 = vmatprep.subr.bf16.mxu0 0
        %2065 = vmatpush1.bf16.msra.mxu0 0
        %2066 = vmatprep.subr.bf16.mxu0 0
        %2067 = vmatpush1.bf16.msra.mxu0 0
        %2068 = vmatprep.subr.bf16.mxu0 0
        %2069 = vmatpush1.bf16.msra.mxu0 0
        %2070 = vmatprep.subr.bf16.mxu0 0
        %2071 = vmatpush1.bf16.msra.mxu0 0
        %2072 = vmatprep.subr.bf16.mxu0 0
        %2073 = vmatpush1.bf16.msra.mxu0 0
        %2074 = vmatprep.subr.bf16.mxu0 0
        %2075 = vmatpush1.bf16.msra.mxu0 0
        %2076 = vmatprep.subr.bf16.mxu0 0
        %2077 = vmatpush1.bf16.msra.mxu0 %v2060
        %2078 = vmatprep.subr.bf16.mxu0 0
        %2079 = vmatpush2.bf16.msra.mxu0 0
        %2080 = vmatprep.subr.bf16.mxu0 0
        %2081 = vmatpush2.bf16.msra.mxu0 0
        %2082 = vmatprep.subr.bf16.mxu0 0
        %2083 = vmatpush2.bf16.msra.mxu0 0
        %2084 = vmatprep.subr.bf16.mxu0 0
        %2085 = vmatpush2.bf16.msra.mxu0 0
        %2086 = vmatprep.subr.bf16.mxu0 0
        %2087 = vmatpush2.bf16.msra.mxu0 0
        %2088 = vmatprep.subr.bf16.mxu0 0
        %2089 = vmatpush2.bf16.msra.mxu0 0
        %2090 = vmatprep.subr.bf16.mxu0 0
        %2091 = vmatpush2.bf16.msra.mxu0 0
        %2092 = vmatprep.subr.bf16.mxu0 0
        %2093 = vmatpush2.bf16.msra.mxu0 0
        %2094 = vmatprep.mubr.bf16.mxu0 0
        %2095 = vmatmul.mubr.bf16.gmra.mxu0 %v2057
        %v2096 = vpop.f32.mrf.mxu0
        %v2097 = vadd.f32 0.0, %v2096
        %v2098 = vpop.f32.mrf.mxu0
        %v2099 = vpop.f32.mrf.mxu0
        %v2100 = vpop.f32.mrf.mxu0
        %2101 = vdwg.mxu0
        %2102 = vrot.lane.b32.xlu0 %v1492, 64
        %v2103 = vpop.permute.xlu0 %2102
        %v2105 = vsel %vm1586, %v2053, 0
        %v2108 = vsel %vm1610, %v2103, 0
        %2110 = vmatprep.subr.bf16.mxu0 0
        %2111 = vmatpush1.bf16.msra.mxu0 0
        %2112 = vmatprep.subr.bf16.mxu0 0
        %2113 = vmatpush1.bf16.msra.mxu0 0
        %2114 = vmatprep.subr.bf16.mxu0 0
        %2115 = vmatpush1.bf16.msra.mxu0 0
        %2116 = vmatprep.subr.bf16.mxu0 0
        %2117 = vmatpush1.bf16.msra.mxu0 0
        %2118 = vmatprep.subr.bf16.mxu0 0
        %2119 = vmatpush1.bf16.msra.mxu0 0
        %2120 = vmatprep.subr.bf16.mxu0 0
        %2121 = vmatpush1.bf16.msra.mxu0 0
        %2122 = vmatprep.subr.bf16.mxu0 0
        %2123 = vmatpush1.bf16.msra.mxu0 0
        %2124 = vmatprep.subr.bf16.mxu0 0
        %2125 = vmatpush1.bf16.msra.mxu0 %v2108
        %2126 = vmatprep.subr.bf16.mxu0 0
        %2127 = vmatpush2.bf16.msra.mxu0 0
        %2128 = vmatprep.subr.bf16.mxu0 0
        %2129 = vmatpush2.bf16.msra.mxu0 0
        %2130 = vmatprep.subr.bf16.mxu0 0
        %2131 = vmatpush2.bf16.msra.mxu0 0
        %2132 = vmatprep.subr.bf16.mxu0 0
        %2133 = vmatpush2.bf16.msra.mxu0 0
        %2134 = vmatprep.subr.bf16.mxu0 0
        %2135 = vmatpush2.bf16.msra.mxu0 0
        %2136 = vmatprep.subr.bf16.mxu0 0
        %2137 = vmatpush2.bf16.msra.mxu0 0
        %2138 = vmatprep.subr.bf16.mxu0 0
        %2139 = vmatpush2.bf16.msra.mxu0 0
        %2140 = vmatprep.subr.bf16.mxu0 0
        %2141 = vmatpush2.bf16.msra.mxu0 0
        %2142 = vmatprep.mubr.bf16.mxu0 0
        %2143 = vmatmul.mubr.bf16.gmra.mxu0 %v2105
        %v2144 = vpop.f32.mrf.mxu0
        %v2145 = vadd.f32 0.0, %v2144
        %v2146 = vpop.f32.mrf.mxu0
        %v2147 = vpop.f32.mrf.mxu0
        %v2148 = vpop.f32.mrf.mxu0
        %2149 = vdwg.mxu0
        %v2150 = vrcp.pop %v2048
        %v2151 = vrcp.pop %v2051
        %v2152 = vmul.f32 %v2097, %v2150
        %v2153 = vmul.f32 %v2145, %v2151
        %v2154 = vpack.c.bf16 %v2152, %v2152
        %v2155 = vpack.c.bf16 %v2153, %v2153
        %2156 = vrot.lane.b32.xlu0 %v1487, 32
        %v2157 = vpop.permute.xlu0 %2156
        %2158 = vrot.lane.b32.xlu0 %v1489, 32
        %v2159 = vpop.permute.xlu0 %2158
        %v2161 = vsel %vm1493, %v2157, 0
        %v2164 = vsel %vm1493, %v2159, 0
        %2166 = vmatprep.subr.bf16.mxu0 0
        %2167 = vmatpush1.bf16.xpose.msra.mxu0 0
        %2168 = vmatprep.subr.bf16.mxu0 0
        %2169 = vmatpush1.bf16.xpose.msra.mxu0 0
        %2170 = vmatprep.subr.bf16.mxu0 0
        %2171 = vmatpush1.bf16.xpose.msra.mxu0 0
        %2172 = vmatprep.subr.bf16.mxu0 0
        %2173 = vmatpush1.bf16.xpose.msra.mxu0 0
        %2174 = vmatprep.subr.bf16.mxu0 0
        %2175 = vmatpush1.bf16.xpose.msra.mxu0 0
        %2176 = vmatprep.subr.bf16.mxu0 0
        %2177 = vmatpush1.bf16.xpose.msra.mxu0 0
        %2178 = vmatprep.subr.bf16.mxu0 0
        %2179 = vmatpush1.bf16.xpose.msra.mxu0 0
        %2180 = vmatprep.subr.bf16.mxu0 0
        %2181 = vmatpush1.bf16.xpose.msra.mxu0 %v2164
        %2182 = vmatprep.subr.bf16.mxu0 0
        %2183 = vmatpush2.bf16.xpose.msra.mxu0 0
        %2184 = vmatprep.subr.bf16.mxu0 0
        %2185 = vmatpush2.bf16.xpose.msra.mxu0 0
        %2186 = vmatprep.subr.bf16.mxu0 0
        %2187 = vmatpush2.bf16.xpose.msra.mxu0 0
        %2188 = vmatprep.subr.bf16.mxu0 0
        %2189 = vmatpush2.bf16.xpose.msra.mxu0 0
        %2190 = vmatprep.subr.bf16.mxu0 0
        %2191 = vmatpush2.bf16.xpose.msra.mxu0 0
        %2192 = vmatprep.subr.bf16.mxu0 0
        %2193 = vmatpush2.bf16.xpose.msra.mxu0 0
        %2194 = vmatprep.subr.bf16.mxu0 0
        %2195 = vmatpush2.bf16.xpose.msra.mxu0 0
        %2196 = vmatprep.subr.bf16.mxu0 0
        %2197 = vmatpush2.bf16.xpose.msra.mxu0 0
        %2198 = vmatprep.mubr.bf16.mxu0 0
        %2199 = vmatmul.mubr.bf16.gmra.mxu0 %v2161
        %v2200 = vpop.f32.mrf.mxu0
        %v2201 = vadd.f32 0.0, %v2200
        %v2202 = vpop.f32.mrf.mxu0
        %v2203 = vpop.f32.mrf.mxu0
        %v2204 = vpop.f32.mrf.mxu0
        %2205 = vdwg.mxu0
        %2206 = vrot.lane.b32.xlu0 %v1488, 32
        %v2207 = vpop.permute.xlu0 %2206
        %2208 = vrot.lane.b32.xlu0 %v1490, 32
        %v2209 = vpop.permute.xlu0 %2208
        %v2211 = vsel %vm1493, %v2207, 0
        %v2214 = vsel %vm1493, %v2209, 0
        %2216 = vmatprep.subr.bf16.mxu0 0
        %2217 = vmatpush1.bf16.xpose.msra.mxu0 0
        %2218 = vmatprep.subr.bf16.mxu0 0
        %2219 = vmatpush1.bf16.xpose.msra.mxu0 0
        %2220 = vmatprep.subr.bf16.mxu0 0
        %2221 = vmatpush1.bf16.xpose.msra.mxu0 0
        %2222 = vmatprep.subr.bf16.mxu0 0
        %2223 = vmatpush1.bf16.xpose.msra.mxu0 0
        %2224 = vmatprep.subr.bf16.mxu0 0
        %2225 = vmatpush1.bf16.xpose.msra.mxu0 0
        %2226 = vmatprep.subr.bf16.mxu0 0
        %2227 = vmatpush1.bf16.xpose.msra.mxu0 0
        %2228 = vmatprep.subr.bf16.mxu0 0
        %2229 = vmatpush1.bf16.xpose.msra.mxu0 0
        %2230 = vmatprep.subr.bf16.mxu0 0
        %2231 = vmatpush1.bf16.xpose.msra.mxu0 %v2214
        %2232 = vmatprep.subr.bf16.mxu0 0
        %2233 = vmatpush2.bf16.xpose.msra.mxu0 0
        %2234 = vmatprep.subr.bf16.mxu0 0
        %2235 = vmatpush2.bf16.xpose.msra.mxu0 0
        %2236 = vmatprep.subr.bf16.mxu0 0
        %2237 = vmatpush2.bf16.xpose.msra.mxu0 0
        %2238 = vmatprep.subr.bf16.mxu0 0
        %2239 = vmatpush2.bf16.xpose.msra.mxu0 0
        %2240 = vmatprep.subr.bf16.mxu0 0
        %2241 = vmatpush2.bf16.xpose.msra.mxu0 0
        %2242 = vmatprep.subr.bf16.mxu0 0
        %2243 = vmatpush2.bf16.xpose.msra.mxu0 0
        %2244 = vmatprep.subr.bf16.mxu0 0
        %2245 = vmatpush2.bf16.xpose.msra.mxu0 0
        %2246 = vmatprep.subr.bf16.mxu0 0
        %2247 = vmatpush2.bf16.xpose.msra.mxu0 0
        %2248 = vmatprep.mubr.bf16.mxu0 0
        %2249 = vmatmul.mubr.bf16.gmra.mxu0 %v2211
        %v2250 = vpop.f32.mrf.mxu0
        %v2251 = vadd.f32 0.0, %v2250
        %v2252 = vpop.f32.mrf.mxu0
        %v2253 = vpop.f32.mrf.mxu0
        %v2254 = vpop.f32.mrf.mxu0
        %2255 = vdwg.mxu0
        %v2256 = vsel %vm1586, %v2201, -inf
        %2257 = vmax.xlane.f32.xlu0 %v2256
        %v2258 = vpop.xlane.xlu0 %2257
        %v2259 = vsel %vm1586, %v2251, -inf
        %2260 = vmax.xlane.f32.xlu0 %v2259
        %v2261 = vpop.xlane.xlu0 %2260
        %v2262 = vsub.f32 %v2201, %v2258
        %v2263 = vsub.f32 %v2251, %v2261
        %v2264 = vmul.f32 %v2262, 1.442695
        %v2265 = vpow.pop %v2264
        %v2266 = vmul.f32 %v2263, 1.442695
        %v2267 = vpow.pop %v2266
        %v2268 = vsel %vm1586, %v2265, 0.0
        %2269 = vadd.xlane.f32.xlu0 %v2268
        %v2270 = vpop.xlane.xlu0 %2269
        %v2271 = vsel %vm1586, %v2267, 0.0
        %2272 = vadd.xlane.f32.xlu0 %v2271
        %v2273 = vpop.xlane.xlu0 %2272
        %v2274 = vpack.c.bf16 %v2265, %v2265
        %v2275 = vpack.c.bf16 %v2267, %v2267
        %2276 = vrot.lane.b32.xlu0 %v1491, 32
        %v2277 = vpop.permute.xlu0 %2276
        %v2279 = vsel %vm1586, %v2274, 0
        %v2282 = vsel %vm1610, %v2277, 0
        %2284 = vmatprep.subr.bf16.mxu0 0
        %2285 = vmatpush1.bf16.msra.mxu0 0
        %2286 = vmatprep.subr.bf16.mxu0 0
        %2287 = vmatpush1.bf16.msra.mxu0 0
        %2288 = vmatprep.subr.bf16.mxu0 0
        %2289 = vmatpush1.bf16.msra.mxu0 0
        %2290 = vmatprep.subr.bf16.mxu0 0
        %2291 = vmatpush1.bf16.msra.mxu0 0
        %2292 = vmatprep.subr.bf16.mxu0 0
        %2293 = vmatpush1.bf16.msra.mxu0 0
        %2294 = vmatprep.subr.bf16.mxu0 0
        %2295 = vmatpush1.bf16.msra.mxu0 0
        %2296 = vmatprep.subr.bf16.mxu0 0
        %2297 = vmatpush1.bf16.msra.mxu0 0
        %2298 = vmatprep.subr.bf16.mxu0 0
        %2299 = vmatpush1.bf16.msra.mxu0 %v2282
        %2300 = vmatprep.subr.bf16.mxu0 0
        %2301 = vmatpush2.bf16.msra.mxu0 0
        %2302 = vmatprep.subr.bf16.mxu0 0
        %2303 = vmatpush2.bf16.msra.mxu0 0
        %2304 = vmatprep.subr.bf16.mxu0 0
        %2305 = vmatpush2.bf16.msra.mxu0 0
        %2306 = vmatprep.subr.bf16.mxu0 0
        %2307 = vmatpush2.bf16.msra.mxu0 0
        %2308 = vmatprep.subr.bf16.mxu0 0
        %2309 = vmatpush2.bf16.msra.mxu0 0
        %2310 = vmatprep.subr.bf16.mxu0 0
        %2311 = vmatpush2.bf16.msra.mxu0 0
        %2312 = vmatprep.subr.bf16.mxu0 0
        %2313 = vmatpush2.bf16.msra.mxu0 0
        %2314 = vmatprep.subr.bf16.mxu0 0
        %2315 = vmatpush2.bf16.msra.mxu0 0
        %2316 = vmatprep.mubr.bf16.mxu0 0
        %2317 = vmatmul.mubr.bf16.gmra.mxu0 %v2279
        %v2318 = vpop.f32.mrf.mxu0
        %v2319 = vadd.f32 0.0, %v2318
        %v2320 = vpop.f32.mrf.mxu0
        %v2321 = vpop.f32.mrf.mxu0
        %v2322 = vpop.f32.mrf.mxu0
        %2323 = vdwg.mxu0
        %2324 = vrot.lane.b32.xlu0 %v1492, 32
        %v2325 = vpop.permute.xlu0 %2324
        %v2327 = vsel %vm1586, %v2275, 0
        %v2330 = vsel %vm1610, %v2325, 0
        %2332 = vmatprep.subr.bf16.mxu0 0
        %2333 = vmatpush1.bf16.msra.mxu0 0
        %2334 = vmatprep.subr.bf16.mxu0 0
        %2335 = vmatpush1.bf16.msra.mxu0 0
        %2336 = vmatprep.subr.bf16.mxu0 0
        %2337 = vmatpush1.bf16.msra.mxu0 0
        %2338 = vmatprep.subr.bf16.mxu0 0
        %2339 = vmatpush1.bf16.msra.mxu0 0
        %2340 = vmatprep.subr.bf16.mxu0 0
        %2341 = vmatpush1.bf16.msra.mxu0 0
        %2342 = vmatprep.subr.bf16.mxu0 0
        %2343 = vmatpush1.bf16.msra.mxu0 0
        %2344 = vmatprep.subr.bf16.mxu0 0
        %2345 = vmatpush1.bf16.msra.mxu0 0
        %2346 = vmatprep.subr.bf16.mxu0 0
        %2347 = vmatpush1.bf16.msra.mxu0 %v2330
        %2348 = vmatprep.subr.bf16.mxu0 0
        %2349 = vmatpush2.bf16.msra.mxu0 0
        %2350 = vmatprep.subr.bf16.mxu0 0
        %2351 = vmatpush2.bf16.msra.mxu0 0
        %2352 = vmatprep.subr.bf16.mxu0 0
        %2353 = vmatpush2.bf16.msra.mxu0 0
        %2354 = vmatprep.subr.bf16.mxu0 0
        %2355 = vmatpush2.bf16.msra.mxu0 0
        %2356 = vmatprep.subr.bf16.mxu0 0
        %2357 = vmatpush2.bf16.msra.mxu0 0
        %2358 = vmatprep.subr.bf16.mxu0 0
        %2359 = vmatpush2.bf16.msra.mxu0 0
        %2360 = vmatprep.subr.bf16.mxu0 0
        %2361 = vmatpush2.bf16.msra.mxu0 0
        %2362 = vmatprep.subr.bf16.mxu0 0
        %2363 = vmatpush2.bf16.msra.mxu0 0
        %2364 = vmatprep.mubr.bf16.mxu0 0
        %2365 = vmatmul.mubr.bf16.gmra.mxu0 %v2327
        %v2366 = vpop.f32.mrf.mxu0
        %v2367 = vadd.f32 0.0, %v2366
        %v2368 = vpop.f32.mrf.mxu0
        %v2369 = vpop.f32.mrf.mxu0
        %v2370 = vpop.f32.mrf.mxu0
        %2371 = vdwg.mxu0
        %v2372 = vrcp.pop %v2270
        %v2373 = vrcp.pop %v2273
        %v2374 = vmul.f32 %v2319, %v2372
        %v2375 = vmul.f32 %v2367, %v2373
        %v2376 = vpack.c.bf16 %v2374, %v2374
        %v2377 = vpack.c.bf16 %v2375, %v2375
        %2380 = vrot.lane.b32.xlu0 %v1932, 32
        %v2381 = vpop.permute.xlu0 %2380
        %2382 = vrot.lane.b32.xlu0 %v1933, 32
        %v2383 = vpop.permute.xlu0 %2382
        %2386 = vrot.lane.b32.xlu0 %v2154, 64
        %v2387 = vpop.permute.xlu0 %2386
        %2388 = vrot.lane.b32.xlu0 %v2155, 64
        %v2389 = vpop.permute.xlu0 %2388
        %2392 = vrot.lane.b32.xlu0 %v2376, 96
        %v2393 = vpop.permute.xlu0 %2392
        %2394 = vrot.lane.b32.xlu0 %v2377, 96
        %v2395 = vpop.permute.xlu0 %2394
        %v2398 = vsel %vm1493, %v1704, %v2381
        %v2401 = vsel %vm1493, %v1705, %v2383
        %vm2402 = vcmask 523264
        %v2404 = vsel %vm2402, %v2398, %v2387
        %v2406 = vsel %vm2402, %v2401, %v2389
        %vm2407 = vcmask 785408
        %v2409 = vsel %vm2407, %v2404, %v2393
        %v2411 = vsel %vm2407, %v2406, %v2395
        %v2412 = vld [vmem:[%s981] sm:$0xf]
        %v2413 = vld [vmem:[%s981 + $0x4] sm:$0xf]
        %v2414 = vld [vmem:[%s981 + $0x8] sm:$0xf]
        %v2415 = vld [vmem:[%s981 + $0xc] sm:$0xf]
        %v2416 = vld [vmem:[%s981 + $0x10] sm:$0xf]
        %v2417 = vld [vmem:[%s981 + $0x14] sm:$0xf]
        %v2418 = vld [vmem:[%s981 + $0x18] sm:$0xf]
        %v2419 = vld [vmem:[%s981 + $0x1c] sm:$0xf]
        %v2420 = vld [vmem:[%s981 + $0x20] sm:$0xf]
        %v2421 = vld [vmem:[%s981 + $0x24] sm:$0xf]
        %v2422 = vld [vmem:[%s981 + $0x28] sm:$0xf]
        %v2423 = vld [vmem:[%s981 + $0x2c] sm:$0xf]
        %v2424 = vld [vmem:[%s981 + $0x30] sm:$0xf]
        %v2425 = vld [vmem:[%s981 + $0x34] sm:$0xf]
        %v2426 = vld [vmem:[%s981 + $0x38] sm:$0xf]
        %v2427 = vld [vmem:[%s981 + $0x3c] sm:$0xf]
        %v2430 = vunpack.c.l.b16 %v2409
        %v2431 = vunpack.c.l.b16 %v2411
        %v2432 = vpack.c.b16 %v2431, %v2430
        %v2450 = vunpack.c.l.b16 %v2412
        %v2451 = vunpack.c.l.b16 %v2413
        %v2452 = vunpack.c.l.b16 %v2414
        %v2453 = vunpack.c.l.b16 %v2415
        %v2454 = vunpack.c.l.b16 %v2416
        %v2455 = vunpack.c.l.b16 %v2417
        %v2456 = vunpack.c.l.b16 %v2418
        %v2457 = vunpack.c.l.b16 %v2419
        %v2458 = vunpack.c.l.b16 %v2420
        %v2459 = vunpack.c.l.b16 %v2421
        %v2460 = vunpack.c.l.b16 %v2422
        %v2461 = vunpack.c.l.b16 %v2423
        %v2462 = vunpack.c.l.b16 %v2424
        %v2463 = vunpack.c.l.b16 %v2425
        %v2464 = vunpack.c.l.b16 %v2426
        %v2465 = vunpack.c.l.b16 %v2427
        %v2466 = vpack.c.b16 %v2451, %v2450
        %v2467 = vpack.c.b16 %v2453, %v2452
        %v2468 = vpack.c.b16 %v2455, %v2454
        %v2469 = vpack.c.b16 %v2457, %v2456
        %v2470 = vpack.c.b16 %v2459, %v2458
        %v2471 = vpack.c.b16 %v2461, %v2460
        %v2472 = vpack.c.b16 %v2463, %v2462
        %v2473 = vpack.c.b16 %v2465, %v2464
        %2482 = vmatprep.subr.bf16.mxu0 0
        %2483 = vmatpush1.bf16.msra.mxu0 %v2473
        %2484 = vmatprep.subr.bf16.mxu0 0
        %2485 = vmatpush1.bf16.msra.mxu0 %v2472
        %2486 = vmatprep.subr.bf16.mxu0 0
        %2487 = vmatpush1.bf16.msra.mxu0 %v2471
        %2488 = vmatprep.subr.bf16.mxu0 0
        %2489 = vmatpush1.bf16.msra.mxu0 %v2470
        %2490 = vmatprep.subr.bf16.mxu0 0
        %2491 = vmatpush1.bf16.msra.mxu0 %v2469
        %2492 = vmatprep.subr.bf16.mxu0 0
        %2493 = vmatpush1.bf16.msra.mxu0 %v2468
        %2494 = vmatprep.subr.bf16.mxu0 0
        %2495 = vmatpush1.bf16.msra.mxu0 %v2467
        %2496 = vmatprep.subr.bf16.mxu0 0
        %2497 = vmatpush1.bf16.msra.mxu0 %v2466
        %2498 = vmatprep.subr.bf16.mxu0 0
        %2499 = vmatpush2.bf16.msra.mxu0 0
        %2500 = vmatprep.subr.bf16.mxu0 0
        %2501 = vmatpush2.bf16.msra.mxu0 0
        %2502 = vmatprep.subr.bf16.mxu0 0
        %2503 = vmatpush2.bf16.msra.mxu0 0
        %2504 = vmatprep.subr.bf16.mxu0 0
        %2505 = vmatpush2.bf16.msra.mxu0 0
        %2506 = vmatprep.subr.bf16.mxu0 0
        %2507 = vmatpush2.bf16.msra.mxu0 0
        %2508 = vmatprep.subr.bf16.mxu0 0
        %2509 = vmatpush2.bf16.msra.mxu0 0
        %2510 = vmatprep.subr.bf16.mxu0 0
        %2511 = vmatpush2.bf16.msra.mxu0 0
        %2512 = vmatprep.subr.bf16.mxu0 0
        %2513 = vmatpush2.bf16.msra.mxu0 0
        %2514 = vmatprep.mubr.bf16.mxu0 0
        %2515 = vmatmul.mubr.bf16.gmra.mxu0 %v2432
        %v2516 = vpop.f32.mrf.mxu0
        %v2517 = vadd.f32 0.0, %v2516
        %v2518 = vpop.f32.mrf.mxu0
        %v2519 = vpop.f32.mrf.mxu0
        %v2520 = vadd.f32 0.0, %v2519
        %v2521 = vpop.f32.mrf.mxu0
        %2522 = vdwg.mxu0
        %v2523 = vld [vmem:[%s989] sm:$0x1]
        %v2525 = vlaneseq
        %v2526 = vshrl.u32 %v2525, 7
        %v2527 = vsub.s32 0, %v2526
        %v2528 = vrot.slane %v2523, %v2527
        %v2530 = vadd.f32 %v2517, %v2528
        %v2531 = vadd.f32 %v2520, %v2528
        %v2532 = vadd.f32 %v1211, %v2530
        %v2533 = vadd.f32 %v1212, %v2531
        %2534 = vadd.xlane.f32.xlu0 %v2532
        %v2535 = vpop.xlane.xlu0 %2534
        %2536 = vadd.xlane.f32.xlu0 %v2533
        %v2537 = vpop.xlane.xlu0 %2536
        %v2538 = vrcp.pop 128.0
        %v2539 = vmul.f32 %v2535, %v2538
        %v2540 = vmul.f32 %v2537, %v2538
        %v2541 = vsub.f32 %v2532, %v2539
        %v2542 = vsub.f32 %v2533, %v2540
        %v2543 = vmul.f32 %v2541, %v2541
        %v2544 = vmul.f32 %v2542, %v2542
        %2545 = vadd.xlane.f32.xlu0 %v2543
        %v2546 = vpop.xlane.xlu0 %2545
        %2547 = vadd.xlane.f32.xlu0 %v2544
        %v2548 = vpop.xlane.xlu0 %2547
        %v2549 = vmul.f32 %v2546, %v2538
        %v2550 = vmul.f32 %v2548, %v2538
        %v2551 = vadd.f32 %v2549, 1e-05
        %v2552 = vadd.f32 %v2550, 1e-05
        %v2553 = vrsqrt.pop %v2551
        %v2554 = vrsqrt.pop %v2552
        %v2555 = vmul.f32 %v2541, %v2553
        %v2556 = vmul.f32 %v2542, %v2554
        %v2557 = vld [vmem:[%s1185] sm:$0x1]
        %v2559 = vlaneseq
        %v2560 = vshrl.u32 %v2559, 7
        %v2561 = vsub.s32 0, %v2560
        %v2562 = vrot.slane %v2557, %v2561
        %v2564 = vmul.f32 %v2555, %v2562
        %v2565 = vmul.f32 %v2556, %v2562
        %v2566 = vld [vmem:[%s1188] sm:$0x1]
        %v2568 = vlaneseq
        %v2569 = vshrl.u32 %v2568, 7
        %v2570 = vsub.s32 0, %v2569
        %v2571 = vrot.slane %v2566, %v2570
        %v2573 = vadd.f32 %v2564, %v2571
        %v2574 = vadd.f32 %v2565, %v2571
        %v2575 = vpack.c.bf16 %v2574, %v2573
        %v2576 = vld [vmem:[%s998] sm:$0xf]
        %v2577 = vld [vmem:[%s998 + $0x4] sm:$0xf]
        %v2578 = vld [vmem:[%s998 + $0x8] sm:$0xf]
        %v2579 = vld [vmem:[%s998 + $0xc] sm:$0xf]
        %v2580 = vld [vmem:[%s998 + $0x10] sm:$0xf]
        %v2581 = vld [vmem:[%s998 + $0x14] sm:$0xf]
        %v2582 = vld [vmem:[%s998 + $0x18] sm:$0xf]
        %v2583 = vld [vmem:[%s998 + $0x1c] sm:$0xf]
        %v2584 = vld [vmem:[%s998 + $0x20] sm:$0xf]
        %v2585 = vld [vmem:[%s998 + $0x24] sm:$0xf]
        %v2586 = vld [vmem:[%s998 + $0x28] sm:$0xf]
        %v2587 = vld [vmem:[%s998 + $0x2c] sm:$0xf]
        %v2588 = vld [vmem:[%s998 + $0x30] sm:$0xf]
        %v2589 = vld [vmem:[%s998 + $0x34] sm:$0xf]
        %v2590 = vld [vmem:[%s998 + $0x38] sm:$0xf]
        %v2591 = vld [vmem:[%s998 + $0x3c] sm:$0xf]
        %v2608 = vunpack.c.l.b16 %v2576
        %v2609 = vunpack.c.l.b16 %v2577
        %v2610 = vunpack.c.l.b16 %v2578
        %v2611 = vunpack.c.l.b16 %v2579
        %v2612 = vunpack.c.l.b16 %v2580
        %v2613 = vunpack.c.l.b16 %v2581
        %v2614 = vunpack.c.l.b16 %v2582
        %v2615 = vunpack.c.l.b16 %v2583
        %v2616 = vunpack.c.l.b16 %v2584
        %v2617 = vunpack.c.l.b16 %v2585
        %v2618 = vunpack.c.l.b16 %v2586
        %v2619 = vunpack.c.l.b16 %v2587
        %v2620 = vunpack.c.l.b16 %v2588
        %v2621 = vunpack.c.l.b16 %v2589
        %v2622 = vunpack.c.l.b16 %v2590
        %v2623 = vunpack.c.l.b16 %v2591
        %v2624 = vpack.c.b16 %v2609, %v2608
        %v2625 = vpack.c.b16 %v2611, %v2610
        %v2626 = vpack.c.b16 %v2613, %v2612
        %v2627 = vpack.c.b16 %v2615, %v2614
        %v2628 = vpack.c.b16 %v2617, %v2616
        %v2629 = vpack.c.b16 %v2619, %v2618
        %v2630 = vpack.c.b16 %v2621, %v2620
        %v2631 = vpack.c.b16 %v2623, %v2622
        %2640 = vmatprep.subr.bf16.mxu0 0
        %2641 = vmatpush1.bf16.msra.mxu0 %v2631
        %2642 = vmatprep.subr.bf16.mxu0 0
        %2643 = vmatpush1.bf16.msra.mxu0 %v2630
        %2644 = vmatprep.subr.bf16.mxu0 0
        %2645 = vmatpush1.bf16.msra.mxu0 %v2629
        %2646 = vmatprep.subr.bf16.mxu0 0
        %2647 = vmatpush1.bf16.msra.mxu0 %v2628
        %2648 = vmatprep.subr.bf16.mxu0 0
        %2649 = vmatpush1.bf16.msra.mxu0 %v2627
        %2650 = vmatprep.subr.bf16.mxu0 0
        %2651 = vmatpush1.bf16.msra.mxu0 %v2626
        %2652 = vmatprep.subr.bf16.mxu0 0
        %2653 = vmatpush1.bf16.msra.mxu0 %v2625
        %2654 = vmatprep.subr.bf16.mxu0 0
        %2655 = vmatpush1.bf16.msra.mxu0 %v2624
        %2656 = vmatprep.subr.bf16.mxu0 0
        %2657 = vmatpush2.bf16.msra.mxu0 0
        %2658 = vmatprep.subr.bf16.mxu0 0
        %2659 = vmatpush2.bf16.msra.mxu0 0
        %2660 = vmatprep.subr.bf16.mxu0 0
        %2661 = vmatpush2.bf16.msra.mxu0 0
        %2662 = vmatprep.subr.bf16.mxu0 0
        %2663 = vmatpush2.bf16.msra.mxu0 0
        %2664 = vmatprep.subr.bf16.mxu0 0
        %2665 = vmatpush2.bf16.msra.mxu0 0
        %2666 = vmatprep.subr.bf16.mxu0 0
        %2667 = vmatpush2.bf16.msra.mxu0 0
        %2668 = vmatprep.subr.bf16.mxu0 0
        %2669 = vmatpush2.bf16.msra.mxu0 0
        %2670 = vmatprep.subr.bf16.mxu0 0
        %2671 = vmatpush2.bf16.msra.mxu0 0
        %2672 = vmatprep.mubr.bf16.mxu0 0
        %2673 = vmatmul.mubr.bf16.gmra.mxu0 %v2575
        %v2674 = vpop.f32.mrf.mxu0
        %v2675 = vadd.f32 0.0, %v2674
        %v2676 = vpop.f32.mrf.mxu0
        %v2677 = vpop.f32.mrf.mxu0
        %v2678 = vadd.f32 0.0, %v2677
        %v2679 = vpop.f32.mrf.mxu0
        %2680 = vdwg.mxu0
        %v2681 = vld [vmem:[%s1168] sm:$0x1]
        %v2683 = vlaneseq
        %v2684 = vshrl.u32 %v2683, 7
        %v2685 = vsub.s32 0, %v2684
        %v2686 = vrot.slane %v2681, %v2685
        %v2688 = vadd.f32 %v2675, %v2686
        %v2689 = vadd.f32 %v2678, %v2686
        %v2690 = vmul.f32 %v2688, 0.17677669
        %v2691 = vmul.f32 %v2689, 0.17677669
        %v2692 = vpack.c.bf16 %v2690, %v2690
        %v2693 = vpack.c.bf16 %v2691, %v2691
        %v2694 = vld [vmem:[%s1007] sm:$0xff]
        %v2695 = vld [vmem:[%s1007 + $0x8] sm:$0xff]
        %v2696 = vld [vmem:[%s1007 + $0x10] sm:$0xff]
        %v2697 = vld [vmem:[%s1007 + $0x18] sm:$0xff]
        %v2698 = vld [vmem:[%s1007 + $0x20] sm:$0xff]
        %v2699 = vld [vmem:[%s1007 + $0x28] sm:$0xff]
        %v2700 = vld [vmem:[%s1007 + $0x30] sm:$0xff]
        %v2701 = vld [vmem:[%s1007 + $0x38] sm:$0xff]
        %v2702 = vld [vmem:[%s1007 + $0x40] sm:$0xff]
        %v2703 = vld [vmem:[%s1007 + $0x48] sm:$0xff]
        %v2704 = vld [vmem:[%s1007 + $0x50] sm:$0xff]
        %v2705 = vld [vmem:[%s1007 + $0x58] sm:$0xff]
        %v2706 = vld [vmem:[%s1007 + $0x60] sm:$0xff]
        %v2707 = vld [vmem:[%s1007 + $0x68] sm:$0xff]
        %v2708 = vld [vmem:[%s1007 + $0x70] sm:$0xff]
        %v2709 = vld [vmem:[%s1007 + $0x78] sm:$0xff]
        %v2714 = vunpack.c.l.b16 %v1213
        %v2715 = vunpack.c.l.b16 %v1214
        %v2716 = vunpack.c.l.b16 %v1215
        %v2717 = vunpack.c.l.b16 %v1216
        %v2718 = vpack.c.b16 %v2715, %v2714
        %v2719 = vpack.c.b16 %v2717, %v2716
        %v2738 = vunpack.c.l.b16 %v2694
        %v2739 = vunpack.c.h.b16 %v2694
        %v2740 = vunpack.c.l.b16 %v2695
        %v2741 = vunpack.c.h.b16 %v2695
        %v2742 = vunpack.c.l.b16 %v2696
        %v2743 = vunpack.c.h.b16 %v2696
        %v2744 = vunpack.c.l.b16 %v2697
        %v2745 = vunpack.c.h.b16 %v2697
        %v2746 = vunpack.c.l.b16 %v2698
        %v2747 = vunpack.c.h.b16 %v2698
        %v2748 = vunpack.c.l.b16 %v2699
        %v2749 = vunpack.c.h.b16 %v2699
        %v2750 = vunpack.c.l.b16 %v2700
        %v2751 = vunpack.c.h.b16 %v2700
        %v2752 = vunpack.c.l.b16 %v2701
        %v2753 = vunpack.c.h.b16 %v2701
        %v2754 = vunpack.c.l.b16 %v2702
        %v2755 = vunpack.c.h.b16 %v2702
        %v2756 = vunpack.c.l.b16 %v2703
        %v2757 = vunpack.c.h.b16 %v2703
        %v2758 = vunpack.c.l.b16 %v2704
        %v2759 = vunpack.c.h.b16 %v2704
        %v2760 = vunpack.c.l.b16 %v2705
        %v2761 = vunpack.c.h.b16 %v2705
        %v2762 = vunpack.c.l.b16 %v2706
        %v2763 = vunpack.c.h.b16 %v2706
        %v2764 = vunpack.c.l.b16 %v2707
        %v2765 = vunpack.c.h.b16 %v2707
        %v2766 = vunpack.c.l.b16 %v2708
        %v2767 = vunpack.c.h.b16 %v2708
        %v2768 = vunpack.c.l.b16 %v2709
        %v2769 = vunpack.c.h.b16 %v2709
        %v2770 = vpack.c.b16 %v2740, %v2738
        %v2771 = vpack.c.b16 %v2741, %v2739
        %v2772 = vpack.c.b16 %v2744, %v2742
        %v2773 = vpack.c.b16 %v2745, %v2743
        %v2774 = vpack.c.b16 %v2748, %v2746
        %v2775 = vpack.c.b16 %v2749, %v2747
        %v2776 = vpack.c.b16 %v2752, %v2750
        %v2777 = vpack.c.b16 %v2753, %v2751
        %v2778 = vpack.c.b16 %v2756, %v2754
        %v2779 = vpack.c.b16 %v2757, %v2755
        %v2780 = vpack.c.b16 %v2760, %v2758
        %v2781 = vpack.c.b16 %v2761, %v2759
        %v2782 = vpack.c.b16 %v2764, %v2762
        %v2783 = vpack.c.b16 %v2765, %v2763
        %v2784 = vpack.c.b16 %v2768, %v2766
        %v2785 = vpack.c.b16 %v2769, %v2767
        %2802 = vmatprep.subr.bf16.mxu0 %v2785
        %2803 = vmatpush1.bf16.msra.mxu0 %v2784
        %2804 = vmatprep.subr.bf16.mxu0 %v2783
        %2805 = vmatpush1.bf16.msra.mxu0 %v2782
        %2806 = vmatprep.subr.bf16.mxu0 %v2781
        %2807 = vmatpush1.bf16.msra.mxu0 %v2780
        %2808 = vmatprep.subr.bf16.mxu0 %v2779
        %2809 = vmatpush1.bf16.msra.mxu0 %v2778
        %2810 = vmatprep.subr.bf16.mxu0 %v2777
        %2811 = vmatpush1.bf16.msra.mxu0 %v2776
        %2812 = vmatprep.subr.bf16.mxu0 %v2775
        %2813 = vmatpush1.bf16.msra.mxu0 %v2774
        %2814 = vmatprep.subr.bf16.mxu0 %v2773
        %2815 = vmatpush1.bf16.msra.mxu0 %v2772
        %2816 = vmatprep.subr.bf16.mxu0 %v2771
        %2817 = vmatpush1.bf16.msra.mxu0 %v2770
        %2818 = vmatprep.subr.bf16.mxu0 0
        %2819 = vmatpush2.bf16.msra.mxu0 0
        %2820 = vmatprep.subr.bf16.mxu0 0
        %2821 = vmatpush2.bf16.msra.mxu0 0
        %2822 = vmatprep.subr.bf16.mxu0 0
        %2823 = vmatpush2.bf16.msra.mxu0 0
        %2824 = vmatprep.subr.bf16.mxu0 0
        %2825 = vmatpush2.bf16.msra.mxu0 0
        %2826 = vmatprep.subr.bf16.mxu0 0
        %2827 = vmatpush2.bf16.msra.mxu0 0
        %2828 = vmatprep.subr.bf16.mxu0 0
        %2829 = vmatpush2.bf16.msra.mxu0 0
        %2830 = vmatprep.subr.bf16.mxu0 0
        %2831 = vmatpush2.bf16.msra.mxu0 0
        %2832 = vmatprep.subr.bf16.mxu0 0
        %2833 = vmatpush2.bf16.msra.mxu0 0
        %2834 = vmatprep.mubr.bf16.mxu0 0
        %2835 = vmatmul.mubr.bf16.gmra.mxu0 %v2718
        %v2836 = vpop.f32.mrf.mxu0
        %v2837 = vadd.f32 0.0, %v2836
        %v2838 = vpop.f32.mrf.mxu0
        %v2839 = vadd.f32 0.0, %v2838
        %v2840 = vpop.f32.mrf.mxu0
        %v2841 = vadd.f32 0.0, %v2840
        %v2842 = vpop.f32.mrf.mxu0
        %v2843 = vadd.f32 0.0, %v2842
        %2844 = vmatprep.mubr.bf16.mxu0 0
        %2845 = vmatmul.mubr.bf16.gmra.mxu0 %v2719
        %v2846 = vpop.f32.mrf.mxu0
        %v2847 = vadd.f32 0.0, %v2846
        %v2848 = vpop.f32.mrf.mxu0
        %v2849 = vadd.f32 0.0, %v2848
        %v2850 = vpop.f32.mrf.mxu0
        %v2851 = vadd.f32 0.0, %v2850
        %v2852 = vpop.f32.mrf.mxu0
        %v2853 = vadd.f32 0.0, %v2852
        %2854 = vdwg.mxu0
        %v2855 = vld [vmem:[%s1172] sm:$0x3]
        %v2857 = vlaneseq
        %v2858 = vshrl.u32 %v2857, 7
        %v2859 = vsub.s32 0, %v2858
        %v2860 = vrot.slane %v2855, %v2859
        %v2861 = vlaneseq
        %v2862 = vshrl.u32 %v2861, 7
        %v2863 = vsub.s32 1, %v2862
        %v2864 = vrot.slane %v2855, %v2863
        %v2867 = vadd.f32 %v2837, %v2860
        %v2868 = vadd.f32 %v2839, %v2864
        %v2869 = vadd.f32 %v2841, %v2860
        %v2870 = vadd.f32 %v2843, %v2864
        %v2871 = vadd.f32 %v2847, %v2860
        %v2872 = vadd.f32 %v2849, %v2864
        %v2873 = vadd.f32 %v2851, %v2860
        %v2874 = vadd.f32 %v2853, %v2864
        %v2875 = vpack.c.bf16 %v2869, %v2867
        %v2876 = vpack.c.bf16 %v2873, %v2871
        %v2877 = vpack.c.bf16 %v2870, %v2868
        %v2878 = vpack.c.bf16 %v2874, %v2872
        %v2880 = vsel %vm1493, %v2692, 0
        %v2883 = vsel %vm1493, %v2875, 0
        %2885 = vmatprep.subr.bf16.mxu0 0
        %2886 = vmatpush1.bf16.xpose.msra.mxu0 0
        %2887 = vmatprep.subr.bf16.mxu0 0
        %2888 = vmatpush1.bf16.xpose.msra.mxu0 0
        %2889 = vmatprep.subr.bf16.mxu0 0
        %2890 = vmatpush1.bf16.xpose.msra.mxu0 0
        %2891 = vmatprep.subr.bf16.mxu0 0
        %2892 = vmatpush1.bf16.xpose.msra.mxu0 0
        %2893 = vmatprep.subr.bf16.mxu0 0
        %2894 = vmatpush1.bf16.xpose.msra.mxu0 0
        %2895 = vmatprep.subr.bf16.mxu0 0
        %2896 = vmatpush1.bf16.xpose.msra.mxu0 0
        %2897 = vmatprep.subr.bf16.mxu0 0
        %2898 = vmatpush1.bf16.xpose.msra.mxu0 0
        %2899 = vmatprep.subr.bf16.mxu0 0
        %2900 = vmatpush1.bf16.xpose.msra.mxu0 %v2883
        %2901 = vmatprep.subr.bf16.mxu0 0
        %2902 = vmatpush2.bf16.xpose.msra.mxu0 0
        %2903 = vmatprep.subr.bf16.mxu0 0
        %2904 = vmatpush2.bf16.xpose.msra.mxu0 0
        %2905 = vmatprep.subr.bf16.mxu0 0
        %2906 = vmatpush2.bf16.xpose.msra.mxu0 0
        %2907 = vmatprep.subr.bf16.mxu0 0
        %2908 = vmatpush2.bf16.xpose.msra.mxu0 0
        %2909 = vmatprep.subr.bf16.mxu0 0
        %2910 = vmatpush2.bf16.xpose.msra.mxu0 0
        %2911 = vmatprep.subr.bf16.mxu0 0
        %2912 = vmatpush2.bf16.xpose.msra.mxu0 0
        %2913 = vmatprep.subr.bf16.mxu0 0
        %2914 = vmatpush2.bf16.xpose.msra.mxu0 0
        %2915 = vmatprep.subr.bf16.mxu0 0
        %2916 = vmatpush2.bf16.xpose.msra.mxu0 0
        %2917 = vmatprep.mubr.bf16.mxu0 0
        %2918 = vmatmul.mubr.bf16.gmra.mxu0 %v2880
        %v2919 = vpop.f32.mrf.mxu0
        %v2920 = vadd.f32 0.0, %v2919
        %v2921 = vpop.f32.mrf.mxu0
        %v2922 = vpop.f32.mrf.mxu0
        %v2923 = vpop.f32.mrf.mxu0
        %2924 = vdwg.mxu0
        %v2926 = vsel %vm1493, %v2693, 0
        %v2929 = vsel %vm1493, %v2876, 0
        %2931 = vmatprep.subr.bf16.mxu0 0
        %2932 = vmatpush1.bf16.xpose.msra.mxu0 0
        %2933 = vmatprep.subr.bf16.mxu0 0
        %2934 = vmatpush1.bf16.xpose.msra.mxu0 0
        %2935 = vmatprep.subr.bf16.mxu0 0
        %2936 = vmatpush1.bf16.xpose.msra.mxu0 0
        %2937 = vmatprep.subr.bf16.mxu0 0
        %2938 = vmatpush1.bf16.xpose.msra.mxu0 0
        %2939 = vmatprep.subr.bf16.mxu0 0
        %2940 = vmatpush1.bf16.xpose.msra.mxu0 0
        %2941 = vmatprep.subr.bf16.mxu0 0
        %2942 = vmatpush1.bf16.xpose.msra.mxu0 0
        %2943 = vmatprep.subr.bf16.mxu0 0
        %2944 = vmatpush1.bf16.xpose.msra.mxu0 0
        %2945 = vmatprep.subr.bf16.mxu0 0
        %2946 = vmatpush1.bf16.xpose.msra.mxu0 %v2929
        %2947 = vmatprep.subr.bf16.mxu0 0
        %2948 = vmatpush2.bf16.xpose.msra.mxu0 0
        %2949 = vmatprep.subr.bf16.mxu0 0
        %2950 = vmatpush2.bf16.xpose.msra.mxu0 0
        %2951 = vmatprep.subr.bf16.mxu0 0
        %2952 = vmatpush2.bf16.xpose.msra.mxu0 0
        %2953 = vmatprep.subr.bf16.mxu0 0
        %2954 = vmatpush2.bf16.xpose.msra.mxu0 0
        %2955 = vmatprep.subr.bf16.mxu0 0
        %2956 = vmatpush2.bf16.xpose.msra.mxu0 0
        %2957 = vmatprep.subr.bf16.mxu0 0
        %2958 = vmatpush2.bf16.xpose.msra.mxu0 0
        %2959 = vmatprep.subr.bf16.mxu0 0
        %2960 = vmatpush2.bf16.xpose.msra.mxu0 0
        %2961 = vmatprep.subr.bf16.mxu0 0
        %2962 = vmatpush2.bf16.xpose.msra.mxu0 0
        %2963 = vmatprep.mubr.bf16.mxu0 0
        %2964 = vmatmul.mubr.bf16.gmra.mxu0 %v2926
        %v2965 = vpop.f32.mrf.mxu0
        %v2966 = vadd.f32 0.0, %v2965
        %v2967 = vpop.f32.mrf.mxu0
        %v2968 = vpop.f32.mrf.mxu0
        %v2969 = vpop.f32.mrf.mxu0
        %2970 = vdwg.mxu0
        %vm2971 = vcmask 130048
        %v2972 = vsel %vm2971, %v2920, -inf
        %2973 = vmax.xlane.f32.xlu0 %v2972
        %v2974 = vpop.xlane.xlu0 %2973
        %v2975 = vsel %vm2971, %v2966, -inf
        %2976 = vmax.xlane.f32.xlu0 %v2975
        %v2977 = vpop.xlane.xlu0 %2976
        %v2978 = vsub.f32 %v2920, %v2974
        %v2979 = vsub.f32 %v2966, %v2977
        %v2980 = vmul.f32 %v2978, 1.442695
        %v2981 = vpow.pop %v2980
        %v2982 = vmul.f32 %v2979, 1.442695
        %v2983 = vpow.pop %v2982
        %v2984 = vsel %vm2971, %v2981, 0.0
        %2985 = vadd.xlane.f32.xlu0 %v2984
        %v2986 = vpop.xlane.xlu0 %2985
        %v2987 = vsel %vm2971, %v2983, 0.0
        %2988 = vadd.xlane.f32.xlu0 %v2987
        %v2989 = vpop.xlane.xlu0 %2988
        %v2990 = vpack.c.bf16 %v2981, %v2981
        %v2991 = vpack.c.bf16 %v2983, %v2983
        %v2993 = vsel %vm2971, %v2990, 0
        %2995 = vmatprep.subr.bf16.mxu0 0
        %2996 = vmatpush1.bf16.msra.mxu0 0
        %2997 = vmatprep.subr.bf16.mxu0 0
        %2998 = vmatpush1.bf16.msra.mxu0 0
        %2999 = vmatprep.subr.bf16.mxu0 0
        %3000 = vmatpush1.bf16.msra.mxu0 0
        %3001 = vmatprep.subr.bf16.mxu0 0
        %3002 = vmatpush1.bf16.msra.mxu0 0
        %3003 = vmatprep.subr.bf16.mxu0 0
        %3004 = vmatpush1.bf16.msra.mxu0 0
        %3005 = vmatprep.subr.bf16.mxu0 0
        %3006 = vmatpush1.bf16.msra.mxu0 0
        %3007 = vmatprep.subr.bf16.mxu0 0
        %3008 = vmatpush1.bf16.msra.mxu0 0
        %3009 = vmatprep.subr.bf16.mxu0 0
        %3010 = vmatpush1.bf16.msra.mxu0 %v2877
        %3011 = vmatprep.subr.bf16.mxu0 0
        %3012 = vmatpush2.bf16.msra.mxu0 0
        %3013 = vmatprep.subr.bf16.mxu0 0
        %3014 = vmatpush2.bf16.msra.mxu0 0
        %3015 = vmatprep.subr.bf16.mxu0 0
        %3016 = vmatpush2.bf16.msra.mxu0 0
        %3017 = vmatprep.subr.bf16.mxu0 0
        %3018 = vmatpush2.bf16.msra.mxu0 0
        %3019 = vmatprep.subr.bf16.mxu0 0
        %3020 = vmatpush2.bf16.msra.mxu0 0
        %3021 = vmatprep.subr.bf16.mxu0 0
        %3022 = vmatpush2.bf16.msra.mxu0 0
        %3023 = vmatprep.subr.bf16.mxu0 0
        %3024 = vmatpush2.bf16.msra.mxu0 0
        %3025 = vmatprep.subr.bf16.mxu0 0
        %3026 = vmatpush2.bf16.msra.mxu0 0
        %3027 = vmatprep.mubr.bf16.mxu0 0
        %3028 = vmatmul.mubr.bf16.gmra.mxu0 %v2993
        %v3029 = vpop.f32.mrf.mxu0
        %v3030 = vadd.f32 0.0, %v3029
        %v3031 = vpop.f32.mrf.mxu0
        %v3032 = vpop.f32.mrf.mxu0
        %v3033 = vpop.f32.mrf.mxu0
        %3034 = vdwg.mxu0
        %v3036 = vsel %vm2971, %v2991, 0
        %3038 = vmatprep.subr.bf16.mxu0 0
        %3039 = vmatpush1.bf16.msra.mxu0 0
        %3040 = vmatprep.subr.bf16.mxu0 0
        %3041 = vmatpush1.bf16.msra.mxu0 0
        %3042 = vmatprep.subr.bf16.mxu0 0
        %3043 = vmatpush1.bf16.msra.mxu0 0
        %3044 = vmatprep.subr.bf16.mxu0 0
        %3045 = vmatpush1.bf16.msra.mxu0 0
        %3046 = vmatprep.subr.bf16.mxu0 0
        %3047 = vmatpush1.bf16.msra.mxu0 0
        %3048 = vmatprep.subr.bf16.mxu0 0
        %3049 = vmatpush1.bf16.msra.mxu0 0
        %3050 = vmatprep.subr.bf16.mxu0 0
        %3051 = vmatpush1.bf16.msra.mxu0 0
        %3052 = vmatprep.subr.bf16.mxu0 0
        %3053 = vmatpush1.bf16.msra.mxu0 %v2878
        %3054 = vmatprep.subr.bf16.mxu0 0
        %3055 = vmatpush2.bf16.msra.mxu0 0
        %3056 = vmatprep.subr.bf16.mxu0 0
        %3057 = vmatpush2.bf16.msra.mxu0 0
        %3058 = vmatprep.subr.bf16.mxu0 0
        %3059 = vmatpush2.bf16.msra.mxu0 0
        %3060 = vmatprep.subr.bf16.mxu0 0
        %3061 = vmatpush2.bf16.msra.mxu0 0
        %3062 = vmatprep.subr.bf16.mxu0 0
        %3063 = vmatpush2.bf16.msra.mxu0 0
        %3064 = vmatprep.subr.bf16.mxu0 0
        %3065 = vmatpush2.bf16.msra.mxu0 0
        %3066 = vmatprep.subr.bf16.mxu0 0
        %3067 = vmatpush2.bf16.msra.mxu0 0
        %3068 = vmatprep.subr.bf16.mxu0 0
        %3069 = vmatpush2.bf16.msra.mxu0 0
        %3070 = vmatprep.mubr.bf16.mxu0 0
        %3071 = vmatmul.mubr.bf16.gmra.mxu0 %v3036
        %v3072 = vpop.f32.mrf.mxu0
        %v3073 = vadd.f32 0.0, %v3072
        %v3074 = vpop.f32.mrf.mxu0
        %v3075 = vpop.f32.mrf.mxu0
        %v3076 = vpop.f32.mrf.mxu0
        %3077 = vdwg.mxu0
        %v3078 = vrcp.pop %v2986
        %v3079 = vrcp.pop %v2989
        %v3080 = vmul.f32 %v3030, %v3078
        %v3081 = vmul.f32 %v3073, %v3079
        %v3082 = vpack.c.bf16 %v3080, %v3080
        %v3083 = vpack.c.bf16 %v3081, %v3081
        %3085 = vrot.lane.b32.xlu0 %v2692, 96
        %v3086 = vpop.permute.xlu0 %3085
        %3088 = vrot.lane.b32.xlu0 %v2875, 96
        %v3089 = vpop.permute.xlu0 %3088
        %v3091 = vsel %vm1493, %v3086, 0
        %v3094 = vsel %vm1493, %v3089, 0
        %3096 = vmatprep.subr.bf16.mxu0 0
        %3097 = vmatpush1.bf16.xpose.msra.mxu0 0
        %3098 = vmatprep.subr.bf16.mxu0 0
        %3099 = vmatpush1.bf16.xpose.msra.mxu0 0
        %3100 = vmatprep.subr.bf16.mxu0 0
        %3101 = vmatpush1.bf16.xpose.msra.mxu0 0
        %3102 = vmatprep.subr.bf16.mxu0 0
        %3103 = vmatpush1.bf16.xpose.msra.mxu0 0
        %3104 = vmatprep.subr.bf16.mxu0 0
        %3105 = vmatpush1.bf16.xpose.msra.mxu0 0
        %3106 = vmatprep.subr.bf16.mxu0 0
        %3107 = vmatpush1.bf16.xpose.msra.mxu0 0
        %3108 = vmatprep.subr.bf16.mxu0 0
        %3109 = vmatpush1.bf16.xpose.msra.mxu0 0
        %3110 = vmatprep.subr.bf16.mxu0 0
        %3111 = vmatpush1.bf16.xpose.msra.mxu0 %v3094
        %3112 = vmatprep.subr.bf16.mxu0 0
        %3113 = vmatpush2.bf16.xpose.msra.mxu0 0
        %3114 = vmatprep.subr.bf16.mxu0 0
        %3115 = vmatpush2.bf16.xpose.msra.mxu0 0
        %3116 = vmatprep.subr.bf16.mxu0 0
        %3117 = vmatpush2.bf16.xpose.msra.mxu0 0
        %3118 = vmatprep.subr.bf16.mxu0 0
        %3119 = vmatpush2.bf16.xpose.msra.mxu0 0
        %3120 = vmatprep.subr.bf16.mxu0 0
        %3121 = vmatpush2.bf16.xpose.msra.mxu0 0
        %3122 = vmatprep.subr.bf16.mxu0 0
        %3123 = vmatpush2.bf16.xpose.msra.mxu0 0
        %3124 = vmatprep.subr.bf16.mxu0 0
        %3125 = vmatpush2.bf16.xpose.msra.mxu0 0
        %3126 = vmatprep.subr.bf16.mxu0 0
        %3127 = vmatpush2.bf16.xpose.msra.mxu0 0
        %3128 = vmatprep.mubr.bf16.mxu0 0
        %3129 = vmatmul.mubr.bf16.gmra.mxu0 %v3091
        %v3130 = vpop.f32.mrf.mxu0
        %v3131 = vadd.f32 0.0, %v3130
        %v3132 = vpop.f32.mrf.mxu0
        %v3133 = vpop.f32.mrf.mxu0
        %v3134 = vpop.f32.mrf.mxu0
        %3135 = vdwg.mxu0
        %3137 = vrot.lane.b32.xlu0 %v2693, 96
        %v3138 = vpop.permute.xlu0 %3137
        %3140 = vrot.lane.b32.xlu0 %v2876, 96
        %v3141 = vpop.permute.xlu0 %3140
        %v3143 = vsel %vm1493, %v3138, 0
        %v3146 = vsel %vm1493, %v3141, 0
        %3148 = vmatprep.subr.bf16.mxu0 0
        %3149 = vmatpush1.bf16.xpose.msra.mxu0 0
        %3150 = vmatprep.subr.bf16.mxu0 0
        %3151 = vmatpush1.bf16.xpose.msra.mxu0 0
        %3152 = vmatprep.subr.bf16.mxu0 0
        %3153 = vmatpush1.bf16.xpose.msra.mxu0 0
        %3154 = vmatprep.subr.bf16.mxu0 0
        %3155 = vmatpush1.bf16.xpose.msra.mxu0 0
        %3156 = vmatprep.subr.bf16.mxu0 0
        %3157 = vmatpush1.bf16.xpose.msra.mxu0 0
        %3158 = vmatprep.subr.bf16.mxu0 0
        %3159 = vmatpush1.bf16.xpose.msra.mxu0 0
        %3160 = vmatprep.subr.bf16.mxu0 0
        %3161 = vmatpush1.bf16.xpose.msra.mxu0 0
        %3162 = vmatprep.subr.bf16.mxu0 0
        %3163 = vmatpush1.bf16.xpose.msra.mxu0 %v3146
        %3164 = vmatprep.subr.bf16.mxu0 0
        %3165 = vmatpush2.bf16.xpose.msra.mxu0 0
        %3166 = vmatprep.subr.bf16.mxu0 0
        %3167 = vmatpush2.bf16.xpose.msra.mxu0 0
        %3168 = vmatprep.subr.bf16.mxu0 0
        %3169 = vmatpush2.bf16.xpose.msra.mxu0 0
        %3170 = vmatprep.subr.bf16.mxu0 0
        %3171 = vmatpush2.bf16.xpose.msra.mxu0 0
        %3172 = vmatprep.subr.bf16.mxu0 0
        %3173 = vmatpush2.bf16.xpose.msra.mxu0 0
        %3174 = vmatprep.subr.bf16.mxu0 0
        %3175 = vmatpush2.bf16.xpose.msra.mxu0 0
        %3176 = vmatprep.subr.bf16.mxu0 0
        %3177 = vmatpush2.bf16.xpose.msra.mxu0 0
        %3178 = vmatprep.subr.bf16.mxu0 0
        %3179 = vmatpush2.bf16.xpose.msra.mxu0 0
        %3180 = vmatprep.mubr.bf16.mxu0 0
        %3181 = vmatmul.mubr.bf16.gmra.mxu0 %v3143
        %v3182 = vpop.f32.mrf.mxu0
        %v3183 = vadd.f32 0.0, %v3182
        %v3184 = vpop.f32.mrf.mxu0
        %v3185 = vpop.f32.mrf.mxu0
        %v3186 = vpop.f32.mrf.mxu0
        %3187 = vdwg.mxu0
        %v3188 = vsel %vm2971, %v3131, -inf
        %3189 = vmax.xlane.f32.xlu0 %v3188
        %v3190 = vpop.xlane.xlu0 %3189
        %v3191 = vsel %vm2971, %v3183, -inf
        %3192 = vmax.xlane.f32.xlu0 %v3191
        %v3193 = vpop.xlane.xlu0 %3192
        %v3194 = vsub.f32 %v3131, %v3190
        %v3195 = vsub.f32 %v3183, %v3193
        %v3196 = vmul.f32 %v3194, 1.442695
        %v3197 = vpow.pop %v3196
        %v3198 = vmul.f32 %v3195, 1.442695
        %v3199 = vpow.pop %v3198
        %v3200 = vsel %vm2971, %v3197, 0.0
        %3201 = vadd.xlane.f32.xlu0 %v3200
        %v3202 = vpop.xlane.xlu0 %3201
        %v3203 = vsel %vm2971, %v3199, 0.0
        %3204 = vadd.xlane.f32.xlu0 %v3203
        %v3205 = vpop.xlane.xlu0 %3204
        %v3206 = vpack.c.bf16 %v3197, %v3197
        %v3207 = vpack.c.bf16 %v3199, %v3199
        %3209 = vrot.lane.b32.xlu0 %v2877, 96
        %v3210 = vpop.permute.xlu0 %3209
        %v3213 = vsel %vm2971, %v3206, 0
        %3215 = vmatprep.subr.bf16.mxu0 0
        %3216 = vmatpush1.bf16.msra.mxu0 0
        %3217 = vmatprep.subr.bf16.mxu0 0
        %3218 = vmatpush1.bf16.msra.mxu0 0
        %3219 = vmatprep.subr.bf16.mxu0 0
        %3220 = vmatpush1.bf16.msra.mxu0 0
        %3221 = vmatprep.subr.bf16.mxu0 0
        %3222 = vmatpush1.bf16.msra.mxu0 0
        %3223 = vmatprep.subr.bf16.mxu0 0
        %3224 = vmatpush1.bf16.msra.mxu0 0
        %3225 = vmatprep.subr.bf16.mxu0 0
        %3226 = vmatpush1.bf16.msra.mxu0 0
        %3227 = vmatprep.subr.bf16.mxu0 0
        %3228 = vmatpush1.bf16.msra.mxu0 0
        %3229 = vmatprep.subr.bf16.mxu0 0
        %3230 = vmatpush1.bf16.msra.mxu0 %v3210
        %3231 = vmatprep.subr.bf16.mxu0 0
        %3232 = vmatpush2.bf16.msra.mxu0 0
        %3233 = vmatprep.subr.bf16.mxu0 0
        %3234 = vmatpush2.bf16.msra.mxu0 0
        %3235 = vmatprep.subr.bf16.mxu0 0
        %3236 = vmatpush2.bf16.msra.mxu0 0
        %3237 = vmatprep.subr.bf16.mxu0 0
        %3238 = vmatpush2.bf16.msra.mxu0 0
        %3239 = vmatprep.subr.bf16.mxu0 0
        %3240 = vmatpush2.bf16.msra.mxu0 0
        %3241 = vmatprep.subr.bf16.mxu0 0
        %3242 = vmatpush2.bf16.msra.mxu0 0
        %3243 = vmatprep.subr.bf16.mxu0 0
        %3244 = vmatpush2.bf16.msra.mxu0 0
        %3245 = vmatprep.subr.bf16.mxu0 0
        %3246 = vmatpush2.bf16.msra.mxu0 0
        %3247 = vmatprep.mubr.bf16.mxu0 0
        %3248 = vmatmul.mubr.bf16.gmra.mxu0 %v3213
        %v3249 = vpop.f32.mrf.mxu0
        %v3250 = vadd.f32 0.0, %v3249
        %v3251 = vpop.f32.mrf.mxu0
        %v3252 = vpop.f32.mrf.mxu0
        %v3253 = vpop.f32.mrf.mxu0
        %3254 = vdwg.mxu0
        %3256 = vrot.lane.b32.xlu0 %v2878, 96
        %v3257 = vpop.permute.xlu0 %3256
        %v3260 = vsel %vm2971, %v3207, 0
        %3262 = vmatprep.subr.bf16.mxu0 0
        %3263 = vmatpush1.bf16.msra.mxu0 0
        %3264 = vmatprep.subr.bf16.mxu0 0
        %3265 = vmatpush1.bf16.msra.mxu0 0
        %3266 = vmatprep.subr.bf16.mxu0 0
        %3267 = vmatpush1.bf16.msra.mxu0 0
        %3268 = vmatprep.subr.bf16.mxu0 0
        %3269 = vmatpush1.bf16.msra.mxu0 0
        %3270 = vmatprep.subr.bf16.mxu0 0
        %3271 = vmatpush1.bf16.msra.mxu0 0
        %3272 = vmatprep.subr.bf16.mxu0 0
        %3273 = vmatpush1.bf16.msra.mxu0 0
        %3274 = vmatprep.subr.bf16.mxu0 0
        %3275 = vmatpush1.bf16.msra.mxu0 0
        %3276 = vmatprep.subr.bf16.mxu0 0
        %3277 = vmatpush1.bf16.msra.mxu0 %v3257
        %3278 = vmatprep.subr.bf16.mxu0 0
        %3279 = vmatpush2.bf16.msra.mxu0 0
        %3280 = vmatprep.subr.bf16.mxu0 0
        %3281 = vmatpush2.bf16.msra.mxu0 0
        %3282 = vmatprep.subr.bf16.mxu0 0
        %3283 = vmatpush2.bf16.msra.mxu0 0
        %3284 = vmatprep.subr.bf16.mxu0 0
        %3285 = vmatpush2.bf16.msra.mxu0 0
        %3286 = vmatprep.subr.bf16.mxu0 0
        %3287 = vmatpush2.bf16.msra.mxu0 0
        %3288 = vmatprep.subr.bf16.mxu0 0
        %3289 = vmatpush2.bf16.msra.mxu0 0
        %3290 = vmatprep.subr.bf16.mxu0 0
        %3291 = vmatpush2.bf16.msra.mxu0 0
        %3292 = vmatprep.subr.bf16.mxu0 0
        %3293 = vmatpush2.bf16.msra.mxu0 0
        %3294 = vmatprep.mubr.bf16.mxu0 0
        %3295 = vmatmul.mubr.bf16.gmra.mxu0 %v3260
        %v3296 = vpop.f32.mrf.mxu0
        %v3297 = vadd.f32 0.0, %v3296
        %v3298 = vpop.f32.mrf.mxu0
        %v3299 = vpop.f32.mrf.mxu0
        %v3300 = vpop.f32.mrf.mxu0
        %3301 = vdwg.mxu0
        %v3302 = vrcp.pop %v3202
        %v3303 = vrcp.pop %v3205
        %v3304 = vmul.f32 %v3250, %v3302
        %v3305 = vmul.f32 %v3297, %v3303
        %v3306 = vpack.c.bf16 %v3304, %v3304
        %v3307 = vpack.c.bf16 %v3305, %v3305
        %3308 = vrot.lane.b32.xlu0 %v2692, 64
        %v3309 = vpop.permute.xlu0 %3308
        %3310 = vrot.lane.b32.xlu0 %v2875, 64
        %v3311 = vpop.permute.xlu0 %3310
        %v3313 = vsel %vm1493, %v3309, 0
        %v3316 = vsel %vm1493, %v3311, 0
        %3318 = vmatprep.subr.bf16.mxu0 0
        %3319 = vmatpush1.bf16.xpose.msra.mxu0 0
        %3320 = vmatprep.subr.bf16.mxu0 0
        %3321 = vmatpush1.bf16.xpose.msra.mxu0 0
        %3322 = vmatprep.subr.bf16.mxu0 0
        %3323 = vmatpush1.bf16.xpose.msra.mxu0 0
        %3324 = vmatprep.subr.bf16.mxu0 0
        %3325 = vmatpush1.bf16.xpose.msra.mxu0 0
        %3326 = vmatprep.subr.bf16.mxu0 0
        %3327 = vmatpush1.bf16.xpose.msra.mxu0 0
        %3328 = vmatprep.subr.bf16.mxu0 0
        %3329 = vmatpush1.bf16.xpose.msra.mxu0 0
        %3330 = vmatprep.subr.bf16.mxu0 0
        %3331 = vmatpush1.bf16.xpose.msra.mxu0 0
        %3332 = vmatprep.subr.bf16.mxu0 0
        %3333 = vmatpush1.bf16.xpose.msra.mxu0 %v3316
        %3334 = vmatprep.subr.bf16.mxu0 0
        %3335 = vmatpush2.bf16.xpose.msra.mxu0 0
        %3336 = vmatprep.subr.bf16.mxu0 0
        %3337 = vmatpush2.bf16.xpose.msra.mxu0 0
        %3338 = vmatprep.subr.bf16.mxu0 0
        %3339 = vmatpush2.bf16.xpose.msra.mxu0 0
        %3340 = vmatprep.subr.bf16.mxu0 0
        %3341 = vmatpush2.bf16.xpose.msra.mxu0 0
        %3342 = vmatprep.subr.bf16.mxu0 0
        %3343 = vmatpush2.bf16.xpose.msra.mxu0 0
        %3344 = vmatprep.subr.bf16.mxu0 0
        %3345 = vmatpush2.bf16.xpose.msra.mxu0 0
        %3346 = vmatprep.subr.bf16.mxu0 0
        %3347 = vmatpush2.bf16.xpose.msra.mxu0 0
        %3348 = vmatprep.subr.bf16.mxu0 0
        %3349 = vmatpush2.bf16.xpose.msra.mxu0 0
        %3350 = vmatprep.mubr.bf16.mxu0 0
        %3351 = vmatmul.mubr.bf16.gmra.mxu0 %v3313
        %v3352 = vpop.f32.mrf.mxu0
        %v3353 = vadd.f32 0.0, %v3352
        %v3354 = vpop.f32.mrf.mxu0
        %v3355 = vpop.f32.mrf.mxu0
        %v3356 = vpop.f32.mrf.mxu0
        %3357 = vdwg.mxu0
        %3358 = vrot.lane.b32.xlu0 %v2693, 64
        %v3359 = vpop.permute.xlu0 %3358
        %3360 = vrot.lane.b32.xlu0 %v2876, 64
        %v3361 = vpop.permute.xlu0 %3360
        %v3363 = vsel %vm1493, %v3359, 0
        %v3366 = vsel %vm1493, %v3361, 0
        %3368 = vmatprep.subr.bf16.mxu0 0
        %3369 = vmatpush1.bf16.xpose.msra.mxu0 0
        %3370 = vmatprep.subr.bf16.mxu0 0
        %3371 = vmatpush1.bf16.xpose.msra.mxu0 0
        %3372 = vmatprep.subr.bf16.mxu0 0
        %3373 = vmatpush1.bf16.xpose.msra.mxu0 0
        %3374 = vmatprep.subr.bf16.mxu0 0
        %3375 = vmatpush1.bf16.xpose.msra.mxu0 0
        %3376 = vmatprep.subr.bf16.mxu0 0
        %3377 = vmatpush1.bf16.xpose.msra.mxu0 0
        %3378 = vmatprep.subr.bf16.mxu0 0
        %3379 = vmatpush1.bf16.xpose.msra.mxu0 0
        %3380 = vmatprep.subr.bf16.mxu0 0
        %3381 = vmatpush1.bf16.xpose.msra.mxu0 0
        %3382 = vmatprep.subr.bf16.mxu0 0
        %3383 = vmatpush1.bf16.xpose.msra.mxu0 %v3366
        %3384 = vmatprep.subr.bf16.mxu0 0
        %3385 = vmatpush2.bf16.xpose.msra.mxu0 0
        %3386 = vmatprep.subr.bf16.mxu0 0
        %3387 = vmatpush2.bf16.xpose.msra.mxu0 0
        %3388 = vmatprep.subr.bf16.mxu0 0
        %3389 = vmatpush2.bf16.xpose.msra.mxu0 0
        %3390 = vmatprep.subr.bf16.mxu0 0
        %3391 = vmatpush2.bf16.xpose.msra.mxu0 0
        %3392 = vmatprep.subr.bf16.mxu0 0
        %3393 = vmatpush2.bf16.xpose.msra.mxu0 0
        %3394 = vmatprep.subr.bf16.mxu0 0
        %3395 = vmatpush2.bf16.xpose.msra.mxu0 0
        %3396 = vmatprep.subr.bf16.mxu0 0
        %3397 = vmatpush2.bf16.xpose.msra.mxu0 0
        %3398 = vmatprep.subr.bf16.mxu0 0
        %3399 = vmatpush2.bf16.xpose.msra.mxu0 0
        %3400 = vmatprep.mubr.bf16.mxu0 0
        %3401 = vmatmul.mubr.bf16.gmra.mxu0 %v3363
        %v3402 = vpop.f32.mrf.mxu0
        %v3403 = vadd.f32 0.0, %v3402
        %v3404 = vpop.f32.mrf.mxu0
        %v3405 = vpop.f32.mrf.mxu0
        %v3406 = vpop.f32.mrf.mxu0
        %3407 = vdwg.mxu0
        %v3408 = vsel %vm2971, %v3353, -inf
        %3409 = vmax.xlane.f32.xlu0 %v3408
        %v3410 = vpop.xlane.xlu0 %3409
        %v3411 = vsel %vm2971, %v3403, -inf
        %3412 = vmax.xlane.f32.xlu0 %v3411
        %v3413 = vpop.xlane.xlu0 %3412
        %v3414 = vsub.f32 %v3353, %v3410
        %v3415 = vsub.f32 %v3403, %v3413
        %v3416 = vmul.f32 %v3414, 1.442695
        %v3417 = vpow.pop %v3416
        %v3418 = vmul.f32 %v3415, 1.442695
        %v3419 = vpow.pop %v3418
        %v3420 = vsel %vm2971, %v3417, 0.0
        %3421 = vadd.xlane.f32.xlu0 %v3420
        %v3422 = vpop.xlane.xlu0 %3421
        %v3423 = vsel %vm2971, %v3419, 0.0
        %3424 = vadd.xlane.f32.xlu0 %v3423
        %v3425 = vpop.xlane.xlu0 %3424
        %v3426 = vpack.c.bf16 %v3417, %v3417
        %v3427 = vpack.c.bf16 %v3419, %v3419
        %3428 = vrot.lane.b32.xlu0 %v2877, 64
        %v3429 = vpop.permute.xlu0 %3428
        %v3432 = vsel %vm2971, %v3426, 0
        %3434 = vmatprep.subr.bf16.mxu0 0
        %3435 = vmatpush1.bf16.msra.mxu0 0
        %3436 = vmatprep.subr.bf16.mxu0 0
        %3437 = vmatpush1.bf16.msra.mxu0 0
        %3438 = vmatprep.subr.bf16.mxu0 0
        %3439 = vmatpush1.bf16.msra.mxu0 0
        %3440 = vmatprep.subr.bf16.mxu0 0
        %3441 = vmatpush1.bf16.msra.mxu0 0
        %3442 = vmatprep.subr.bf16.mxu0 0
        %3443 = vmatpush1.bf16.msra.mxu0 0
        %3444 = vmatprep.subr.bf16.mxu0 0
        %3445 = vmatpush1.bf16.msra.mxu0 0
        %3446 = vmatprep.subr.bf16.mxu0 0
        %3447 = vmatpush1.bf16.msra.mxu0 0
        %3448 = vmatprep.subr.bf16.mxu0 0
        %3449 = vmatpush1.bf16.msra.mxu0 %v3429
        %3450 = vmatprep.subr.bf16.mxu0 0
        %3451 = vmatpush2.bf16.msra.mxu0 0
        %3452 = vmatprep.subr.bf16.mxu0 0
        %3453 = vmatpush2.bf16.msra.mxu0 0
        %3454 = vmatprep.subr.bf16.mxu0 0
        %3455 = vmatpush2.bf16.msra.mxu0 0
        %3456 = vmatprep.subr.bf16.mxu0 0
        %3457 = vmatpush2.bf16.msra.mxu0 0
        %3458 = vmatprep.subr.bf16.mxu0 0
        %3459 = vmatpush2.bf16.msra.mxu0 0
        %3460 = vmatprep.subr.bf16.mxu0 0
        %3461 = vmatpush2.bf16.msra.mxu0 0
        %3462 = vmatprep.subr.bf16.mxu0 0
        %3463 = vmatpush2.bf16.msra.mxu0 0
        %3464 = vmatprep.subr.bf16.mxu0 0
        %3465 = vmatpush2.bf16.msra.mxu0 0
        %3466 = vmatprep.mubr.bf16.mxu0 0
        %3467 = vmatmul.mubr.bf16.gmra.mxu0 %v3432
        %v3468 = vpop.f32.mrf.mxu0
        %v3469 = vadd.f32 0.0, %v3468
        %v3470 = vpop.f32.mrf.mxu0
        %v3471 = vpop.f32.mrf.mxu0
        %v3472 = vpop.f32.mrf.mxu0
        %3473 = vdwg.mxu0
        %3474 = vrot.lane.b32.xlu0 %v2878, 64
        %v3475 = vpop.permute.xlu0 %3474
        %v3478 = vsel %vm2971, %v3427, 0
        %3480 = vmatprep.subr.bf16.mxu0 0
        %3481 = vmatpush1.bf16.msra.mxu0 0
        %3482 = vmatprep.subr.bf16.mxu0 0
        %3483 = vmatpush1.bf16.msra.mxu0 0
        %3484 = vmatprep.subr.bf16.mxu0 0
        %3485 = vmatpush1.bf16.msra.mxu0 0
        %3486 = vmatprep.subr.bf16.mxu0 0
        %3487 = vmatpush1.bf16.msra.mxu0 0
        %3488 = vmatprep.subr.bf16.mxu0 0
        %3489 = vmatpush1.bf16.msra.mxu0 0
        %3490 = vmatprep.subr.bf16.mxu0 0
        %3491 = vmatpush1.bf16.msra.mxu0 0
        %3492 = vmatprep.subr.bf16.mxu0 0
        %3493 = vmatpush1.bf16.msra.mxu0 0
        %3494 = vmatprep.subr.bf16.mxu0 0
        %3495 = vmatpush1.bf16.msra.mxu0 %v3475
        %3496 = vmatprep.subr.bf16.mxu0 0
        %3497 = vmatpush2.bf16.msra.mxu0 0
        %3498 = vmatprep.subr.bf16.mxu0 0
        %3499 = vmatpush2.bf16.msra.mxu0 0
        %3500 = vmatprep.subr.bf16.mxu0 0
        %3501 = vmatpush2.bf16.msra.mxu0 0
        %3502 = vmatprep.subr.bf16.mxu0 0
        %3503 = vmatpush2.bf16.msra.mxu0 0
        %3504 = vmatprep.subr.bf16.mxu0 0
        %3505 = vmatpush2.bf16.msra.mxu0 0
        %3506 = vmatprep.subr.bf16.mxu0 0
        %3507 = vmatpush2.bf16.msra.mxu0 0
        %3508 = vmatprep.subr.bf16.mxu0 0
        %3509 = vmatpush2.bf16.msra.mxu0 0
        %3510 = vmatprep.subr.bf16.mxu0 0
        %3511 = vmatpush2.bf16.msra.mxu0 0
        %3512 = vmatprep.mubr.bf16.mxu0 0
        %3513 = vmatmul.mubr.bf16.gmra.mxu0 %v3478
        %v3514 = vpop.f32.mrf.mxu0
        %v3515 = vadd.f32 0.0, %v3514
        %v3516 = vpop.f32.mrf.mxu0
        %v3517 = vpop.f32.mrf.mxu0
        %v3518 = vpop.f32.mrf.mxu0
        %3519 = vdwg.mxu0
        %v3520 = vrcp.pop %v3422
        %v3521 = vrcp.pop %v3425
        %v3522 = vmul.f32 %v3469, %v3520
        %v3523 = vmul.f32 %v3515, %v3521
        %v3524 = vpack.c.bf16 %v3522, %v3522
        %v3525 = vpack.c.bf16 %v3523, %v3523
        %3526 = vrot.lane.b32.xlu0 %v2692, 32
        %v3527 = vpop.permute.xlu0 %3526
        %3528 = vrot.lane.b32.xlu0 %v2875, 32
        %v3529 = vpop.permute.xlu0 %3528
        %v3531 = vsel %vm1493, %v3527, 0
        %v3534 = vsel %vm1493, %v3529, 0
        %3536 = vmatprep.subr.bf16.mxu0 0
        %3537 = vmatpush1.bf16.xpose.msra.mxu0 0
        %3538 = vmatprep.subr.bf16.mxu0 0
        %3539 = vmatpush1.bf16.xpose.msra.mxu0 0
        %3540 = vmatprep.subr.bf16.mxu0 0
        %3541 = vmatpush1.bf16.xpose.msra.mxu0 0
        %3542 = vmatprep.subr.bf16.mxu0 0
        %3543 = vmatpush1.bf16.xpose.msra.mxu0 0
        %3544 = vmatprep.subr.bf16.mxu0 0
        %3545 = vmatpush1.bf16.xpose.msra.mxu0 0
        %3546 = vmatprep.subr.bf16.mxu0 0
        %3547 = vmatpush1.bf16.xpose.msra.mxu0 0
        %3548 = vmatprep.subr.bf16.mxu0 0
        %3549 = vmatpush1.bf16.xpose.msra.mxu0 0
        %3550 = vmatprep.subr.bf16.mxu0 0
        %3551 = vmatpush1.bf16.xpose.msra.mxu0 %v3534
        %3552 = vmatprep.subr.bf16.mxu0 0
        %3553 = vmatpush2.bf16.xpose.msra.mxu0 0
        %3554 = vmatprep.subr.bf16.mxu0 0
        %3555 = vmatpush2.bf16.xpose.msra.mxu0 0
        %3556 = vmatprep.subr.bf16.mxu0 0
        %3557 = vmatpush2.bf16.xpose.msra.mxu0 0
        %3558 = vmatprep.subr.bf16.mxu0 0
        %3559 = vmatpush2.bf16.xpose.msra.mxu0 0
        %3560 = vmatprep.subr.bf16.mxu0 0
        %3561 = vmatpush2.bf16.xpose.msra.mxu0 0
        %3562 = vmatprep.subr.bf16.mxu0 0
        %3563 = vmatpush2.bf16.xpose.msra.mxu0 0
        %3564 = vmatprep.subr.bf16.mxu0 0
        %3565 = vmatpush2.bf16.xpose.msra.mxu0 0
        %3566 = vmatprep.subr.bf16.mxu0 0
        %3567 = vmatpush2.bf16.xpose.msra.mxu0 0
        %3568 = vmatprep.mubr.bf16.mxu0 0
        %3569 = vmatmul.mubr.bf16.gmra.mxu0 %v3531
        %v3570 = vpop.f32.mrf.mxu0
        %v3571 = vadd.f32 0.0, %v3570
        %v3572 = vpop.f32.mrf.mxu0
        %v3573 = vpop.f32.mrf.mxu0
        %v3574 = vpop.f32.mrf.mxu0
        %3575 = vdwg.mxu0
        %3576 = vrot.lane.b32.xlu0 %v2693, 32
        %v3577 = vpop.permute.xlu0 %3576
        %3578 = vrot.lane.b32.xlu0 %v2876, 32
        %v3579 = vpop.permute.xlu0 %3578
        %v3581 = vsel %vm1493, %v3577, 0
        %v3584 = vsel %vm1493, %v3579, 0
        %3586 = vmatprep.subr.bf16.mxu0 0
        %3587 = vmatpush1.bf16.xpose.msra.mxu0 0
        %3588 = vmatprep.subr.bf16.mxu0 0
        %3589 = vmatpush1.bf16.xpose.msra.mxu0 0
        %3590 = vmatprep.subr.bf16.mxu0 0
        %3591 = vmatpush1.bf16.xpose.msra.mxu0 0
        %3592 = vmatprep.subr.bf16.mxu0 0
        %3593 = vmatpush1.bf16.xpose.msra.mxu0 0
        %3594 = vmatprep.subr.bf16.mxu0 0
        %3595 = vmatpush1.bf16.xpose.msra.mxu0 0
        %3596 = vmatprep.subr.bf16.mxu0 0
        %3597 = vmatpush1.bf16.xpose.msra.mxu0 0
        %3598 = vmatprep.subr.bf16.mxu0 0
        %3599 = vmatpush1.bf16.xpose.msra.mxu0 0
        %3600 = vmatprep.subr.bf16.mxu0 0
        %3601 = vmatpush1.bf16.xpose.msra.mxu0 %v3584
        %3602 = vmatprep.subr.bf16.mxu0 0
        %3603 = vmatpush2.bf16.xpose.msra.mxu0 0
        %3604 = vmatprep.subr.bf16.mxu0 0
        %3605 = vmatpush2.bf16.xpose.msra.mxu0 0
        %3606 = vmatprep.subr.bf16.mxu0 0
        %3607 = vmatpush2.bf16.xpose.msra.mxu0 0
        %3608 = vmatprep.subr.bf16.mxu0 0
        %3609 = vmatpush2.bf16.xpose.msra.mxu0 0
        %3610 = vmatprep.subr.bf16.mxu0 0
        %3611 = vmatpush2.bf16.xpose.msra.mxu0 0
        %3612 = vmatprep.subr.bf16.mxu0 0
        %3613 = vmatpush2.bf16.xpose.msra.mxu0 0
        %3614 = vmatprep.subr.bf16.mxu0 0
        %3615 = vmatpush2.bf16.xpose.msra.mxu0 0
        %3616 = vmatprep.subr.bf16.mxu0 0
        %3617 = vmatpush2.bf16.xpose.msra.mxu0 0
        %3618 = vmatprep.mubr.bf16.mxu0 0
        %3619 = vmatmul.mubr.bf16.gmra.mxu0 %v3581
        %v3620 = vpop.f32.mrf.mxu0
        %v3621 = vadd.f32 0.0, %v3620
        %v3622 = vpop.f32.mrf.mxu0
        %v3623 = vpop.f32.mrf.mxu0
        %v3624 = vpop.f32.mrf.mxu0
        %3625 = vdwg.mxu0
        %v3626 = vsel %vm2971, %v3571, -inf
        %3627 = vmax.xlane.f32.xlu0 %v3626
        %v3628 = vpop.xlane.xlu0 %3627
        %v3629 = vsel %vm2971, %v3621, -inf
        %3630 = vmax.xlane.f32.xlu0 %v3629
        %v3631 = vpop.xlane.xlu0 %3630
        %v3632 = vsub.f32 %v3571, %v3628
        %v3633 = vsub.f32 %v3621, %v3631
        %v3634 = vmul.f32 %v3632, 1.442695
        %v3635 = vpow.pop %v3634
        %v3636 = vmul.f32 %v3633, 1.442695
        %v3637 = vpow.pop %v3636
        %v3638 = vsel %vm2971, %v3635, 0.0
        %3639 = vadd.xlane.f32.xlu0 %v3638
        %v3640 = vpop.xlane.xlu0 %3639
        %v3641 = vsel %vm2971, %v3637, 0.0
        %3642 = vadd.xlane.f32.xlu0 %v3641
        %v3643 = vpop.xlane.xlu0 %3642
        %v3644 = vpack.c.bf16 %v3635, %v3635
        %v3645 = vpack.c.bf16 %v3637, %v3637
        %3646 = vrot.lane.b32.xlu0 %v2877, 32
        %v3647 = vpop.permute.xlu0 %3646
        %v3650 = vsel %vm2971, %v3644, 0
        %3652 = vmatprep.subr.bf16.mxu0 0
        %3653 = vmatpush1.bf16.msra.mxu0 0
        %3654 = vmatprep.subr.bf16.mxu0 0
        %3655 = vmatpush1.bf16.msra.mxu0 0
        %3656 = vmatprep.subr.bf16.mxu0 0
        %3657 = vmatpush1.bf16.msra.mxu0 0
        %3658 = vmatprep.subr.bf16.mxu0 0
        %3659 = vmatpush1.bf16.msra.mxu0 0
        %3660 = vmatprep.subr.bf16.mxu0 0
        %3661 = vmatpush1.bf16.msra.mxu0 0
        %3662 = vmatprep.subr.bf16.mxu0 0
        %3663 = vmatpush1.bf16.msra.mxu0 0
        %3664 = vmatprep.subr.bf16.mxu0 0
        %3665 = vmatpush1.bf16.msra.mxu0 0
        %3666 = vmatprep.subr.bf16.mxu0 0
        %3667 = vmatpush1.bf16.msra.mxu0 %v3647
        %3668 = vmatprep.subr.bf16.mxu0 0
        %3669 = vmatpush2.bf16.msra.mxu0 0
        %3670 = vmatprep.subr.bf16.mxu0 0
        %3671 = vmatpush2.bf16.msra.mxu0 0
        %3672 = vmatprep.subr.bf16.mxu0 0
        %3673 = vmatpush2.bf16.msra.mxu0 0
        %3674 = vmatprep.subr.bf16.mxu0 0
        %3675 = vmatpush2.bf16.msra.mxu0 0
        %3676 = vmatprep.subr.bf16.mxu0 0
        %3677 = vmatpush2.bf16.msra.mxu0 0
        %3678 = vmatprep.subr.bf16.mxu0 0
        %3679 = vmatpush2.bf16.msra.mxu0 0
        %3680 = vmatprep.subr.bf16.mxu0 0
        %3681 = vmatpush2.bf16.msra.mxu0 0
        %3682 = vmatprep.subr.bf16.mxu0 0
        %3683 = vmatpush2.bf16.msra.mxu0 0
        %3684 = vmatprep.mubr.bf16.mxu0 0
        %3685 = vmatmul.mubr.bf16.gmra.mxu0 %v3650
        %v3686 = vpop.f32.mrf.mxu0
        %v3687 = vadd.f32 0.0, %v3686
        %v3688 = vpop.f32.mrf.mxu0
        %v3689 = vpop.f32.mrf.mxu0
        %v3690 = vpop.f32.mrf.mxu0
        %3691 = vdwg.mxu0
        %3692 = vrot.lane.b32.xlu0 %v2878, 32
        %v3693 = vpop.permute.xlu0 %3692
        %v3696 = vsel %vm2971, %v3645, 0
        %3698 = vmatprep.subr.bf16.mxu0 0
        %3699 = vmatpush1.bf16.msra.mxu0 0
        %3700 = vmatprep.subr.bf16.mxu0 0
        %3701 = vmatpush1.bf16.msra.mxu0 0
        %3702 = vmatprep.subr.bf16.mxu0 0
        %3703 = vmatpush1.bf16.msra.mxu0 0
        %3704 = vmatprep.subr.bf16.mxu0 0
        %3705 = vmatpush1.bf16.msra.mxu0 0
        %3706 = vmatprep.subr.bf16.mxu0 0
        %3707 = vmatpush1.bf16.msra.mxu0 0
        %3708 = vmatprep.subr.bf16.mxu0 0
        %3709 = vmatpush1.bf16.msra.mxu0 0
        %3710 = vmatprep.subr.bf16.mxu0 0
        %3711 = vmatpush1.bf16.msra.mxu0 0
        %3712 = vmatprep.subr.bf16.mxu0 0
        %3713 = vmatpush1.bf16.msra.mxu0 %v3693
        %3714 = vmatprep.subr.bf16.mxu0 0
        %3715 = vmatpush2.bf16.msra.mxu0 0
        %3716 = vmatprep.subr.bf16.mxu0 0
        %3717 = vmatpush2.bf16.msra.mxu0 0
        %3718 = vmatprep.subr.bf16.mxu0 0
        %3719 = vmatpush2.bf16.msra.mxu0 0
        %3720 = vmatprep.subr.bf16.mxu0 0
        %3721 = vmatpush2.bf16.msra.mxu0 0
        %3722 = vmatprep.subr.bf16.mxu0 0
        %3723 = vmatpush2.bf16.msra.mxu0 0
        %3724 = vmatprep.subr.bf16.mxu0 0
        %3725 = vmatpush2.bf16.msra.mxu0 0
        %3726 = vmatprep.subr.bf16.mxu0 0
        %3727 = vmatpush2.bf16.msra.mxu0 0
        %3728 = vmatprep.subr.bf16.mxu0 0
        %3729 = vmatpush2.bf16.msra.mxu0 0
        %3730 = vmatprep.mubr.bf16.mxu0 0
        %3731 = vmatmul.mubr.bf16.gmra.mxu0 %v3696
        %v3732 = vpop.f32.mrf.mxu0
        %v3733 = vadd.f32 0.0, %v3732
        %v3734 = vpop.f32.mrf.mxu0
        %v3735 = vpop.f32.mrf.mxu0
        %v3736 = vpop.f32.mrf.mxu0
        %3737 = vdwg.mxu0
        %v3738 = vrcp.pop %v3640
        %v3739 = vrcp.pop %v3643
        %v3740 = vmul.f32 %v3687, %v3738
        %v3741 = vmul.f32 %v3733, %v3739
        %v3742 = vpack.c.bf16 %v3740, %v3740
        %v3743 = vpack.c.bf16 %v3741, %v3741
        %3746 = vrot.lane.b32.xlu0 %v3306, 32
        %v3747 = vpop.permute.xlu0 %3746
        %3748 = vrot.lane.b32.xlu0 %v3307, 32
        %v3749 = vpop.permute.xlu0 %3748
        %3752 = vrot.lane.b32.xlu0 %v3524, 64
        %v3753 = vpop.permute.xlu0 %3752
        %3754 = vrot.lane.b32.xlu0 %v3525, 64
        %v3755 = vpop.permute.xlu0 %3754
        %3758 = vrot.lane.b32.xlu0 %v3742, 96
        %v3759 = vpop.permute.xlu0 %3758
        %3760 = vrot.lane.b32.xlu0 %v3743, 96
        %v3761 = vpop.permute.xlu0 %3760
        %v3764 = vsel %vm1493, %v3082, %v3747
        %v3767 = vsel %vm1493, %v3083, %v3749
        %v3769 = vsel %vm2402, %v3764, %v3753
        %v3771 = vsel %vm2402, %v3767, %v3755
        %v3773 = vsel %vm2407, %v3769, %v3759
        %v3775 = vsel %vm2407, %v3771, %v3761
        %v3776 = vld [vmem:[%s1016] sm:$0xf]
        %v3777 = vld [vmem:[%s1016 + $0x4] sm:$0xf]
        %v3778 = vld [vmem:[%s1016 + $0x8] sm:$0xf]
        %v3779 = vld [vmem:[%s1016 + $0xc] sm:$0xf]
        %v3780 = vld [vmem:[%s1016 + $0x10] sm:$0xf]
        %v3781 = vld [vmem:[%s1016 + $0x14] sm:$0xf]
        %v3782 = vld [vmem:[%s1016 + $0x18] sm:$0xf]
        %v3783 = vld [vmem:[%s1016 + $0x1c] sm:$0xf]
        %v3784 = vld [vmem:[%s1016 + $0x20] sm:$0xf]
        %v3785 = vld [vmem:[%s1016 + $0x24] sm:$0xf]
        %v3786 = vld [vmem:[%s1016 + $0x28] sm:$0xf]
        %v3787 = vld [vmem:[%s1016 + $0x2c] sm:$0xf]
        %v3788 = vld [vmem:[%s1016 + $0x30] sm:$0xf]
        %v3789 = vld [vmem:[%s1016 + $0x34] sm:$0xf]
        %v3790 = vld [vmem:[%s1016 + $0x38] sm:$0xf]
        %v3791 = vld [vmem:[%s1016 + $0x3c] sm:$0xf]
        %v3794 = vunpack.c.l.b16 %v3773
        %v3795 = vunpack.c.l.b16 %v3775
        %v3796 = vpack.c.b16 %v3795, %v3794
        %v3814 = vunpack.c.l.b16 %v3776
        %v3815 = vunpack.c.l.b16 %v3777
        %v3816 = vunpack.c.l.b16 %v3778
        %v3817 = vunpack.c.l.b16 %v3779
        %v3818 = vunpack.c.l.b16 %v3780
        %v3819 = vunpack.c.l.b16 %v3781
        %v3820 = vunpack.c.l.b16 %v3782
        %v3821 = vunpack.c.l.b16 %v3783
        %v3822 = vunpack.c.l.b16 %v3784
        %v3823 = vunpack.c.l.b16 %v3785
        %v3824 = vunpack.c.l.b16 %v3786
        %v3825 = vunpack.c.l.b16 %v3787
        %v3826 = vunpack.c.l.b16 %v3788
        %v3827 = vunpack.c.l.b16 %v3789
        %v3828 = vunpack.c.l.b16 %v3790
        %v3829 = vunpack.c.l.b16 %v3791
        %v3830 = vpack.c.b16 %v3815, %v3814
        %v3831 = vpack.c.b16 %v3817, %v3816
        %v3832 = vpack.c.b16 %v3819, %v3818
        %v3833 = vpack.c.b16 %v3821, %v3820
        %v3834 = vpack.c.b16 %v3823, %v3822
        %v3835 = vpack.c.b16 %v3825, %v3824
        %v3836 = vpack.c.b16 %v3827, %v3826
        %v3837 = vpack.c.b16 %v3829, %v3828
        %3846 = vmatprep.subr.bf16.mxu0 0
        %3847 = vmatpush1.bf16.msra.mxu0 %v3837
        %3848 = vmatprep.subr.bf16.mxu0 0
        %3849 = vmatpush1.bf16.msra.mxu0 %v3836
        %3850 = vmatprep.subr.bf16.mxu0 0
        %3851 = vmatpush1.bf16.msra.mxu0 %v3835
        %3852 = vmatprep.subr.bf16.mxu0 0
        %3853 = vmatpush1.bf16.msra.mxu0 %v3834
        %3854 = vmatprep.subr.bf16.mxu0 0
        %3855 = vmatpush1.bf16.msra.mxu0 %v3833
        %3856 = vmatprep.subr.bf16.mxu0 0
        %3857 = vmatpush1.bf16.msra.mxu0 %v3832
        %3858 = vmatprep.subr.bf16.mxu0 0
        %3859 = vmatpush1.bf16.msra.mxu0 %v3831
        %3860 = vmatprep.subr.bf16.mxu0 0
        %3861 = vmatpush1.bf16.msra.mxu0 %v3830
        %3862 = vmatprep.subr.bf16.mxu0 0
        %3863 = vmatpush2.bf16.msra.mxu0 0
        %3864 = vmatprep.subr.bf16.mxu0 0
        %3865 = vmatpush2.bf16.msra.mxu0 0
        %3866 = vmatprep.subr.bf16.mxu0 0
        %3867 = vmatpush2.bf16.msra.mxu0 0
        %3868 = vmatprep.subr.bf16.mxu0 0
        %3869 = vmatpush2.bf16.msra.mxu0 0
        %3870 = vmatprep.subr.bf16.mxu0 0
        %3871 = vmatpush2.bf16.msra.mxu0 0
        %3872 = vmatprep.subr.bf16.mxu0 0
        %3873 = vmatpush2.bf16.msra.mxu0 0
        %3874 = vmatprep.subr.bf16.mxu0 0
        %3875 = vmatpush2.bf16.msra.mxu0 0
        %3876 = vmatprep.subr.bf16.mxu0 0
        %3877 = vmatpush2.bf16.msra.mxu0 0
        %3878 = vmatprep.mubr.bf16.mxu0 0
        %3879 = vmatmul.mubr.bf16.gmra.mxu0 %v3796
        %v3880 = vpop.f32.mrf.mxu0
        %v3881 = vadd.f32 0.0, %v3880
        %v3882 = vpop.f32.mrf.mxu0
        %v3883 = vpop.f32.mrf.mxu0
        %v3884 = vadd.f32 0.0, %v3883
        %v3885 = vpop.f32.mrf.mxu0
        %3886 = vdwg.mxu0
        %v3887 = vld [vmem:[%s1175] sm:$0x1]
        %v3889 = vlaneseq
        %v3890 = vshrl.u32 %v3889, 7
        %v3891 = vsub.s32 0, %v3890
        %v3892 = vrot.slane %v3887, %v3891
        %v3894 = vadd.f32 %v3881, %v3892
        %v3895 = vadd.f32 %v3884, %v3892
        %v3896 = vadd.f32 %v2573, %v3894
        %v3897 = vadd.f32 %v2574, %v3895
        %3898 = vadd.xlane.f32.xlu0 %v3896
        %v3899 = vpop.xlane.xlu0 %3898
        %3900 = vadd.xlane.f32.xlu0 %v3897
        %v3901 = vpop.xlane.xlu0 %3900
        %v3902 = vmul.f32 %v3899, %v2538
        %v3903 = vmul.f32 %v3901, %v2538
        %v3904 = vsub.f32 %v3896, %v3902
        %v3905 = vsub.f32 %v3897, %v3903
        %v3906 = vmul.f32 %v3904, %v3904
        %v3907 = vmul.f32 %v3905, %v3905
        %3908 = vadd.xlane.f32.xlu0 %v3906
        %v3909 = vpop.xlane.xlu0 %3908
        %3910 = vadd.xlane.f32.xlu0 %v3907
        %v3911 = vpop.xlane.xlu0 %3910
        %v3912 = vmul.f32 %v3909, %v2538
        %v3913 = vmul.f32 %v3911, %v2538
        %v3914 = vadd.f32 %v3912, 1e-05
        %v3915 = vadd.f32 %v3913, 1e-05
        %v3916 = vrsqrt.pop %v3914
        %v3917 = vrsqrt.pop %v3915
        %v3918 = vmul.f32 %v3904, %v3916
        %v3919 = vmul.f32 %v3905, %v3917
        %v3920 = vld [vmem:[%s1191] sm:$0x1]
        %v3922 = vlaneseq
        %v3923 = vshrl.u32 %v3922, 7
        %v3924 = vsub.s32 0, %v3923
        %v3925 = vrot.slane %v3920, %v3924
        %v3927 = vmul.f32 %v3918, %v3925
        %v3928 = vmul.f32 %v3919, %v3925
        %v3929 = vld [vmem:[%s1194] sm:$0x1]
        %v3931 = vlaneseq
        %v3932 = vshrl.u32 %v3931, 7
        %v3933 = vsub.s32 0, %v3932
        %v3934 = vrot.slane %v3929, %v3933
        %v3936 = vadd.f32 %v3927, %v3934
        %v3937 = vadd.f32 %v3928, %v3934
        %v3938 = vpack.c.bf16 %v3937, %v3936
        %v3939 = vld [vmem:[%s1025] sm:$0xff]
        %v3940 = vld [vmem:[%s1025 + $0x8] sm:$0xff]
        %v3941 = vld [vmem:[%s1025 + $0x10] sm:$0xff]
        %v3942 = vld [vmem:[%s1025 + $0x18] sm:$0xff]
        %v3943 = vld [vmem:[%s1025 + $0x20] sm:$0xff]
        %v3944 = vld [vmem:[%s1025 + $0x28] sm:$0xff]
        %v3945 = vld [vmem:[%s1025 + $0x30] sm:$0xff]
        %v3946 = vld [vmem:[%s1025 + $0x38] sm:$0xff]
        %v3947 = vld [vmem:[%s1025 + $0x40] sm:$0xff]
        %v3948 = vld [vmem:[%s1025 + $0x48] sm:$0xff]
        %v3949 = vld [vmem:[%s1025 + $0x50] sm:$0xff]
        %v3950 = vld [vmem:[%s1025 + $0x58] sm:$0xff]
        %v3951 = vld [vmem:[%s1025 + $0x60] sm:$0xff]
        %v3952 = vld [vmem:[%s1025 + $0x68] sm:$0xff]
        %v3953 = vld [vmem:[%s1025 + $0x70] sm:$0xff]
        %v3954 = vld [vmem:[%s1025 + $0x78] sm:$0xff]
        %v3971 = vunpack.c.l.b16 %v3939
        %v3972 = vunpack.c.h.b16 %v3939
        %v3973 = vunpack.c.l.b16 %v3940
        %v3974 = vunpack.c.h.b16 %v3940
        %v3975 = vunpack.c.l.b16 %v3941
        %v3976 = vunpack.c.h.b16 %v3941
        %v3977 = vunpack.c.l.b16 %v3942
        %v3978 = vunpack.c.h.b16 %v3942
        %v3979 = vunpack.c.l.b16 %v3943
        %v3980 = vunpack.c.h.b16 %v3943
        %v3981 = vunpack.c.l.b16 %v3944
        %v3982 = vunpack.c.h.b16 %v3944
        %v3983 = vunpack.c.l.b16 %v3945
        %v3984 = vunpack.c.h.b16 %v3945
        %v3985 = vunpack.c.l.b16 %v3946
        %v3986 = vunpack.c.h.b16 %v3946
        %v3987 = vunpack.c.l.b16 %v3947
        %v3988 = vunpack.c.h.b16 %v3947
        %v3989 = vunpack.c.l.b16 %v3948
        %v3990 = vunpack.c.h.b16 %v3948
        %v3991 = vunpack.c.l.b16 %v3949
        %v3992 = vunpack.c.h.b16 %v3949
        %v3993 = vunpack.c.l.b16 %v3950
        %v3994 = vunpack.c.h.b16 %v3950
        %v3995 = vunpack.c.l.b16 %v3951
        %v3996 = vunpack.c.h.b16 %v3951
        %v3997 = vunpack.c.l.b16 %v3952
        %v3998 = vunpack.c.h.b16 %v3952
        %v3999 = vunpack.c.l.b16 %v3953
        %v4000 = vunpack.c.h.b16 %v3953
        %v4001 = vunpack.c.l.b16 %v3954
        %v4002 = vunpack.c.h.b16 %v3954
        %v4003 = vpack.c.b16 %v3973, %v3971
        %v4004 = vpack.c.b16 %v3974, %v3972
        %v4005 = vpack.c.b16 %v3977, %v3975
        %v4006 = vpack.c.b16 %v3978, %v3976
        %v4007 = vpack.c.b16 %v3981, %v3979
        %v4008 = vpack.c.b16 %v3982, %v3980
        %v4009 = vpack.c.b16 %v3985, %v3983
        %v4010 = vpack.c.b16 %v3986, %v3984
        %v4011 = vpack.c.b16 %v3989, %v3987
        %v4012 = vpack.c.b16 %v3990, %v3988
        %v4013 = vpack.c.b16 %v3993, %v3991
        %v4014 = vpack.c.b16 %v3994, %v3992
        %v4015 = vpack.c.b16 %v3997, %v3995
        %v4016 = vpack.c.b16 %v3998, %v3996
        %v4017 = vpack.c.b16 %v4001, %v3999
        %v4018 = vpack.c.b16 %v4002, %v4000
        %4035 = vmatprep.subr.bf16.mxu0 %v4018
        %4036 = vmatpush1.bf16.msra.mxu0 %v4017
        %4037 = vmatprep.subr.bf16.mxu0 %v4016
        %4038 = vmatpush1.bf16.msra.mxu0 %v4015
        %4039 = vmatprep.subr.bf16.mxu0 %v4014
        %4040 = vmatpush1.bf16.msra.mxu0 %v4013
        %4041 = vmatprep.subr.bf16.mxu0 %v4012
        %4042 = vmatpush1.bf16.msra.mxu0 %v4011
        %4043 = vmatprep.subr.bf16.mxu0 %v4010
        %4044 = vmatpush1.bf16.msra.mxu0 %v4009
        %4045 = vmatprep.subr.bf16.mxu0 %v4008
        %4046 = vmatpush1.bf16.msra.mxu0 %v4007
        %4047 = vmatprep.subr.bf16.mxu0 %v4006
        %4048 = vmatpush1.bf16.msra.mxu0 %v4005
        %4049 = vmatprep.subr.bf16.mxu0 %v4004
        %4050 = vmatpush1.bf16.msra.mxu0 %v4003
        %4051 = vmatprep.subr.bf16.mxu0 0
        %4052 = vmatpush2.bf16.msra.mxu0 0
        %4053 = vmatprep.subr.bf16.mxu0 0
        %4054 = vmatpush2.bf16.msra.mxu0 0
        %4055 = vmatprep.subr.bf16.mxu0 0
        %4056 = vmatpush2.bf16.msra.mxu0 0
        %4057 = vmatprep.subr.bf16.mxu0 0
        %4058 = vmatpush2.bf16.msra.mxu0 0
        %4059 = vmatprep.subr.bf16.mxu0 0
        %4060 = vmatpush2.bf16.msra.mxu0 0
        %4061 = vmatprep.subr.bf16.mxu0 0
        %4062 = vmatpush2.bf16.msra.mxu0 0
        %4063 = vmatprep.subr.bf16.mxu0 0
        %4064 = vmatpush2.bf16.msra.mxu0 0
        %4065 = vmatprep.subr.bf16.mxu0 0
        %4066 = vmatpush2.bf16.msra.mxu0 0
        %4067 = vmatprep.mubr.bf16.mxu0 0
        %4068 = vmatmul.mubr.bf16.gmra.mxu0 %v3938
        %v4069 = vpop.f32.mrf.mxu0
        %v4070 = vadd.f32 0.0, %v4069
        %v4071 = vpop.f32.mrf.mxu0
        %v4072 = vadd.f32 0.0, %v4071
        %v4073 = vpop.f32.mrf.mxu0
        %v4074 = vadd.f32 0.0, %v4073
        %v4075 = vpop.f32.mrf.mxu0
        %v4076 = vadd.f32 0.0, %v4075
        %4077 = vdwg.mxu0
        %v4078 = vld [vmem:[%s1179] sm:$0x3]
        %v4080 = vlaneseq
        %v4081 = vshrl.u32 %v4080, 7
        %v4082 = vsub.s32 0, %v4081
        %v4083 = vrot.slane %v4078, %v4082
        %v4084 = vlaneseq
        %v4085 = vshrl.u32 %v4084, 7
        %v4086 = vsub.s32 1, %v4085
        %v4087 = vrot.slane %v4078, %v4086
        %v4090 = vadd.f32 %v4070, %v4083
        %v4091 = vadd.f32 %v4072, %v4087
        %v4092 = vadd.f32 %v4074, %v4083
        %v4093 = vadd.f32 %v4076, %v4087
        %v4094 = vmax.f32 %v4090, 0.0
        %v4095 = vmax.f32 %v4091, 0.0
        %v4096 = vmax.f32 %v4092, 0.0
        %v4097 = vmax.f32 %v4093, 0.0
        %v4098 = vpack.c.bf16 %v4094, %v4094
        %v4099 = vpack.c.bf16 %v4095, %v4095
        %v4100 = vpack.c.bf16 %v4096, %v4096
        %v4101 = vpack.c.bf16 %v4097, %v4097
        %v4106 = vunpack.c.l.b16 %v4098
        %v4107 = vunpack.c.l.b16 %v4099
        %v4108 = vunpack.c.l.b16 %v4100
        %v4109 = vunpack.c.l.b16 %v4101
        %v4110 = vld [vmem:[%s1034] sm:$0xf]
        %v4111 = vld [vmem:[%s1034 + $0x4] sm:$0xf]
        %v4112 = vld [vmem:[%s1034 + $0x8] sm:$0xf]
        %v4113 = vld [vmem:[%s1034 + $0xc] sm:$0xf]
        %v4114 = vld [vmem:[%s1034 + $0x10] sm:$0xf]
        %v4115 = vld [vmem:[%s1034 + $0x14] sm:$0xf]
        %v4116 = vld [vmem:[%s1034 + $0x18] sm:$0xf]
        %v4117 = vld [vmem:[%s1034 + $0x1c] sm:$0xf]
        %v4118 = vld [vmem:[%s1034 + $0x20] sm:$0xf]
        %v4119 = vld [vmem:[%s1034 + $0x24] sm:$0xf]
        %v4120 = vld [vmem:[%s1034 + $0x28] sm:$0xf]
        %v4121 = vld [vmem:[%s1034 + $0x2c] sm:$0xf]
        %v4122 = vld [vmem:[%s1034 + $0x30] sm:$0xf]
        %v4123 = vld [vmem:[%s1034 + $0x34] sm:$0xf]
        %v4124 = vld [vmem:[%s1034 + $0x38] sm:$0xf]
        %v4125 = vld [vmem:[%s1034 + $0x3c] sm:$0xf]
        %v4126 = vld [vmem:[%s1034 + $0x40] sm:$0xf]
        %v4127 = vld [vmem:[%s1034 + $0x44] sm:$0xf]
        %v4128 = vld [vmem:[%s1034 + $0x48] sm:$0xf]
        %v4129 = vld [vmem:[%s1034 + $0x4c] sm:$0xf]
        %v4130 = vld [vmem:[%s1034 + $0x50] sm:$0xf]
        %v4131 = vld [vmem:[%s1034 + $0x54] sm:$0xf]
        %v4132 = vld [vmem:[%s1034 + $0x58] sm:$0xf]
        %v4133 = vld [vmem:[%s1034 + $0x5c] sm:$0xf]
        %v4134 = vld [vmem:[%s1034 + $0x60] sm:$0xf]
        %v4135 = vld [vmem:[%s1034 + $0x64] sm:$0xf]
        %v4136 = vld [vmem:[%s1034 + $0x68] sm:$0xf]
        %v4137 = vld [vmem:[%s1034 + $0x6c] sm:$0xf]
        %v4138 = vld [vmem:[%s1034 + $0x70] sm:$0xf]
        %v4139 = vld [vmem:[%s1034 + $0x74] sm:$0xf]
        %v4140 = vld [vmem:[%s1034 + $0x78] sm:$0xf]
        %v4141 = vld [vmem:[%s1034 + $0x7c] sm:$0xf]
        %v4142 = vpack.c.b16 %v4108, %v4106
        %v4143 = vpack.c.b16 %v4109, %v4107
        %v4178 = vunpack.c.l.b16 %v4110
        %v4179 = vunpack.c.l.b16 %v4111
        %v4180 = vunpack.c.l.b16 %v4112
        %v4181 = vunpack.c.l.b16 %v4113
        %v4182 = vunpack.c.l.b16 %v4114
        %v4183 = vunpack.c.l.b16 %v4115
        %v4184 = vunpack.c.l.b16 %v4116
        %v4185 = vunpack.c.l.b16 %v4117
        %v4186 = vunpack.c.l.b16 %v4118
        %v4187 = vunpack.c.l.b16 %v4119
        %v4188 = vunpack.c.l.b16 %v4120
        %v4189 = vunpack.c.l.b16 %v4121
        %v4190 = vunpack.c.l.b16 %v4122
        %v4191 = vunpack.c.l.b16 %v4123
        %v4192 = vunpack.c.l.b16 %v4124
        %v4193 = vunpack.c.l.b16 %v4125
        %v4194 = vunpack.c.l.b16 %v4126
        %v4195 = vunpack.c.l.b16 %v4127
        %v4196 = vunpack.c.l.b16 %v4128
        %v4197 = vunpack.c.l.b16 %v4129
        %v4198 = vunpack.c.l.b16 %v4130
        %v4199 = vunpack.c.l.b16 %v4131
        %v4200 = vunpack.c.l.b16 %v4132
        %v4201 = vunpack.c.l.b16 %v4133
        %v4202 = vunpack.c.l.b16 %v4134
        %v4203 = vunpack.c.l.b16 %v4135
        %v4204 = vunpack.c.l.b16 %v4136
        %v4205 = vunpack.c.l.b16 %v4137
        %v4206 = vunpack.c.l.b16 %v4138
        %v4207 = vunpack.c.l.b16 %v4139
        %v4208 = vunpack.c.l.b16 %v4140
        %v4209 = vunpack.c.l.b16 %v4141
        %v4210 = vpack.c.b16 %v4179, %v4178
        %v4211 = vpack.c.b16 %v4181, %v4180
        %v4212 = vpack.c.b16 %v4183, %v4182
        %v4213 = vpack.c.b16 %v4185, %v4184
        %v4214 = vpack.c.b16 %v4187, %v4186
        %v4215 = vpack.c.b16 %v4189, %v4188
        %v4216 = vpack.c.b16 %v4191, %v4190
        %v4217 = vpack.c.b16 %v4193, %v4192
        %v4218 = vpack.c.b16 %v4195, %v4194
        %v4219 = vpack.c.b16 %v4197, %v4196
        %v4220 = vpack.c.b16 %v4199, %v4198
        %v4221 = vpack.c.b16 %v4201, %v4200
        %v4222 = vpack.c.b16 %v4203, %v4202
        %v4223 = vpack.c.b16 %v4205, %v4204
        %v4224 = vpack.c.b16 %v4207, %v4206
        %v4225 = vpack.c.b16 %v4209, %v4208
        %4242 = vmatprep.subr.bf16.mxu0 0
        %4243 = vmatpush1.bf16.msra.mxu0 %v4217
        %4244 = vmatprep.subr.bf16.mxu0 0
        %4245 = vmatpush1.bf16.msra.mxu0 %v4216
        %4246 = vmatprep.subr.bf16.mxu0 0
        %4247 = vmatpush1.bf16.msra.mxu0 %v4215
        %4248 = vmatprep.subr.bf16.mxu0 0
        %4249 = vmatpush1.bf16.msra.mxu0 %v4214
        %4250 = vmatprep.subr.bf16.mxu0 0
        %4251 = vmatpush1.bf16.msra.mxu0 %v4213
        %4252 = vmatprep.subr.bf16.mxu0 0
        %4253 = vmatpush1.bf16.msra.mxu0 %v4212
        %4254 = vmatprep.subr.bf16.mxu0 0
        %4255 = vmatpush1.bf16.msra.mxu0 %v4211
        %4256 = vmatprep.subr.bf16.mxu0 0
        %4257 = vmatpush1.bf16.msra.mxu0 %v4210
        %4258 = vmatprep.subr.bf16.mxu0 0
        %4259 = vmatpush2.bf16.msra.mxu0 %v4225
        %4260 = vmatprep.subr.bf16.mxu0 0
        %4261 = vmatpush2.bf16.msra.mxu0 %v4224
        %4262 = vmatprep.subr.bf16.mxu0 0
        %4263 = vmatpush2.bf16.msra.mxu0 %v4223
        %4264 = vmatprep.subr.bf16.mxu0 0
        %4265 = vmatpush2.bf16.msra.mxu0 %v4222
        %4266 = vmatprep.subr.bf16.mxu0 0
        %4267 = vmatpush2.bf16.msra.mxu0 %v4221
        %4268 = vmatprep.subr.bf16.mxu0 0
        %4269 = vmatpush2.bf16.msra.mxu0 %v4220
        %4270 = vmatprep.subr.bf16.mxu0 0
        %4271 = vmatpush2.bf16.msra.mxu0 %v4219
        %4272 = vmatprep.subr.bf16.mxu0 0
        %4273 = vmatpush2.bf16.msra.mxu0 %v4218
        %4274 = vmatprep.mubr.bf16.mxu0 %v4143
        %4275 = vmatmul.mubr.bf16.gmra.mxu0 %v4142
        %v4276 = vpop.f32.mrf.mxu0
        %v4277 = vadd.f32 0.0, %v4276
        %v4278 = vpop.f32.mrf.mxu0
        %v4279 = vpop.f32.mrf.mxu0
        %v4280 = vadd.f32 0.0, %v4279
        %v4281 = vpop.f32.mrf.mxu0
        %4282 = vdwg.mxu0
        %v4283 = vld [vmem:[%s1182] sm:$0x1]
        %v4285 = vlaneseq
        %v4286 = vshrl.u32 %v4285, 7
        %v4287 = vsub.s32 0, %v4286
        %v4288 = vrot.slane %v4283, %v4287
        %v4290 = vadd.f32 %v4277, %v4288
        %v4291 = vadd.f32 %v4280, %v4288
        %v4292 = vadd.f32 %v3936, %v4290
        %v4293 = vadd.f32 %v3937, %v4291
        %4294 = vadd.xlane.f32.xlu0 %v4292
        %v4295 = vpop.xlane.xlu0 %4294
        %4296 = vadd.xlane.f32.xlu0 %v4293
        %v4297 = vpop.xlane.xlu0 %4296
        %v4298 = vmul.f32 %v4295, %v2538
        %v4299 = vmul.f32 %v4297, %v2538
        %v4300 = vsub.f32 %v4292, %v4298
        %v4301 = vsub.f32 %v4293, %v4299
        %v4302 = vmul.f32 %v4300, %v4300
        %v4303 = vmul.f32 %v4301, %v4301
        %4304 = vadd.xlane.f32.xlu0 %v4302
        %v4305 = vpop.xlane.xlu0 %4304
        %4306 = vadd.xlane.f32.xlu0 %v4303
        %v4307 = vpop.xlane.xlu0 %4306
        %v4308 = vmul.f32 %v4305, %v2538
        %v4309 = vmul.f32 %v4307, %v2538
        %v4310 = vadd.f32 %v4308, 1e-05
        %v4311 = vadd.f32 %v4309, 1e-05
        %v4312 = vrsqrt.pop %v4310
        %v4313 = vrsqrt.pop %v4311
        %v4314 = vmul.f32 %v4300, %v4312
        %v4315 = vmul.f32 %v4301, %v4313
        %v4316 = vld [vmem:[%s1197] sm:$0x1]
        %v4318 = vlaneseq
        %v4319 = vshrl.u32 %v4318, 7
        %v4320 = vsub.s32 0, %v4319
        %v4321 = vrot.slane %v4316, %v4320
        %v4323 = vmul.f32 %v4314, %v4321
        %v4324 = vmul.f32 %v4315, %v4321
        %v4325 = vld [vmem:[%s1200] sm:$0x1]
        %v4327 = vlaneseq
        %v4328 = vshrl.u32 %v4327, 7
        %v4329 = vsub.s32 0, %v4328
        %v4330 = vrot.slane %v4325, %v4329
        %v4332 = vadd.f32 %v4323, %v4330
        %v4333 = vadd.f32 %v4324, %v4330
        %4334 = vst [vmem:[#allocation2] sm:$0xff] %v4332
        %4335 = vst [vmem:[#allocation2 + $0x8] sm:$0xff] %v4333
        %p4336 = scmp.eq.s32.totalorder %s41, 1
        // Predicated region
        $region157: #{tpu_custom_call.1} parent=107 // pred_check
          %p4337 = pneg %p4336
        $region158: #{tpu_custom_call.1} parent=107 // pred_check_branch
          %4339 = sbr.rel (%p4337) target = $region160
        $region159: #{tpu_custom_call.1} parent=107 // pred_region
          %4340 = vst [vmem:[#allocation17] sm:$0xff] %v4332
          %4341 = vst [vmem:[#allocation17 + $0x8] sm:$0xff] %v4333
        $region160: #{tpu_custom_call.1} parent=107 // pred_fallthru
          _
        // Predicated region
        $region161: #{tpu_custom_call.1} parent=107 // pred_check
          %p4342 = pneg %p638
        $region162: #{tpu_custom_call.1} parent=107 // pred_check_branch
          %4344 = sbr.rel (%p4342) target = $region164
        $region163: #{tpu_custom_call.1} parent=107 // pred_region
          %s4345 = smul.u32 2, %s40
          %s4347 = ssub.s32 256, 256
          %4348 = vsyncadd [#allocation5], %s4347
          %s4349 = smul.addr %s4345, 128
          %s4350 = scalar_lea.hbm %s22, %s4349
          %s4351 = sshll.u32 [#allocation17], 4
          %s4352 = int_to_ptr.vmem [resolvable:$true] %s4351
          %4357 = dma.vmem_to_hbm [thread:$0]  %s4352, 256, %s4350, [#allocation5], 128, 128, 8
        $region164: #{tpu_custom_call.1} parent=107 // pred_fallthru
          _
        // Predicated region
        $region165: #{tpu_custom_call.1} parent=107 // pred_check
          %p4358 = pneg %p638
        $region166: #{tpu_custom_call.1} parent=107 // pred_check_branch
          %4360 = sbr.rel (%p4358) target = $region168
        $region167: #{tpu_custom_call.1} parent=107 // pred_region
          %4361 = dma.done [#allocation5], 256
        $region168: #{tpu_custom_call.1} parent=107 // pred_fallthru
          _
      $region108: #{tpu_custom_call.1} parent=5 // pred_fallthru
        _
      %p4362 = scmp.le.s32.totalorder 2, %s31
      // Predicated region
      $region169: #{tpu_custom_call.1} parent=5 // pred_check
        %p4363 = pneg %p4362
      $region170: #{tpu_custom_call.1} parent=5 // pred_check_branch
        %4365 = sbr.rel (%p4363) target = $region172
      $region171: #{tpu_custom_call.1} parent=5 // pred_region
        %s4366 = ssub.s32 %s31, 2
      $region172: #{tpu_custom_call.1} parent=5 // pred_fallthru
        _
    $region6: #{tpu_custom_call.1} parent=1 // loop_footer
      %s35 = sadd.s32 1, %s31
    $region7: #{tpu_custom_call.1} parent=1 // loop_footer_branch
      %30 = sbr.rel target = $region3
    $region8: #{tpu_custom_call.1} parent=1 // loop_exit
      _
    %4367 = vsyncpa [#allocation4], 1
    %s4368 = scalar_lea.sflag [#allocation4], 1
    %4369 = vsyncpa %s4368, 1
    %4370 = vsyncpa [#allocation7], 1
    %4371 = vsyncpa [#allocation5], 1
    %s4372 = scalar_lea.sflag [#allocation5], 1
    %4373 = vsyncpa %s4372, 1

</llo_original>
